<compile_context>
chip_gen: v7x
topology: tpu7x:2x2x1
jax: 0.10.0
libtpu: 0.0.40
codegen_flags: <defaults>
</compile_context>

<pallas_src>
import functools

import jax
import jax.numpy as jnp
import numpy as np
from jax.experimental import pallas as pl
from jax.experimental.pallas import tpu as pltpu


def _round_up(v, m):
    return ((v + m - 1) // m) * m


# ----------------------------------------------------------------------------
# Fused kernel: (conv3x3 + folded-BN + ReLU) x 2 for one (batch, row-tile).
# ----------------------------------------------------------------------------
def _double_conv_kernel(x_hbm, w1_ref, b1_ref, w2_ref, b2_ref, o_ref,
                        xbuf, a1_ref, a2_ref, *, TH, H, W, Wp, cin_p, cout_p):
    n = pl.program_id(0)
    t = pl.program_id(1)

    # Fetch the (TH + 4)-row input window (2-row halo each side; the wrapper
    # pre-pads x with 2 zero rows top/bottom, flattened as (N*(H+4), W, cin_p)).
    row0 = n * (H + 4) + t * TH
    pltpu.sync_copy(x_hbm.at[pl.ds(row0, TH + 4)], xbuf)

    # Zero only the conv zero-padding column stripes (never touched by the
    # data stores below); halo rows come from the pre-padded input / pl.when.
    zc1 = jnp.zeros((TH + 4, 1, cin_p), a1_ref.dtype)
    a1_ref[:, 1:2, 0:cin_p] = zc1                       # left pad col, dx=0 block
    a1_ref[:, W:W + 1, 2 * cin_p:3 * cin_p] = zc1       # right pad col, dx=2 block
    zc2 = jnp.zeros((TH + 2, 1, cout_p), a2_ref.dtype)
    a2_ref[:, 1:2, 0:cout_p] = zc2
    a2_ref[:, W:W + 1, 2 * cout_p:3 * cout_p] = zc2

    # Build the dx-stacked im2col slab for conv1 (bf16, lane-aligned channel
    # blocks):  a1[r, x, dx*C + c] = x_window[r, x + dx - 2, c].
    x0 = xbuf[...]                                      # (TH+4, W, cin_p) bf16
    a1_ref[:, 2:W + 2, 0 * cin_p:1 * cin_p] = x0
    a1_ref[:, 1:W + 1, 1 * cin_p:2 * cin_p] = x0
    a1_ref[:, 0:W,     2 * cin_p:3 * cin_p] = x0

    # --- conv1: 3 big-K MXU matmuls (one per dy tap), f32 accumulation.
    rows1 = TH + 2
    HW1 = rows1 * Wp
    acc = jnp.dot(a1_ref[0:rows1].reshape(HW1, 3 * cin_p), w1_ref[0],
                  preferred_element_type=jnp.float32)
    for dy in (1, 2):
        acc = acc + jnp.dot(a1_ref[dy:dy + rows1].reshape(HW1, 3 * cin_p),
                            w1_ref[dy], preferred_element_type=jnp.float32)
    # BN scale already folded into w1; epilogue is bias + ReLU only.
    h1 = jnp.maximum(acc + b1_ref[...], 0.0)
    h1 = h1.reshape(rows1, Wp, cout_p)[:, 1:W + 1, :].astype(a2_ref.dtype)

    # --- slab for conv2 from the in-VMEM intermediate (never touches HBM).
    a2_ref[:, 2:W + 2, 0 * cout_p:1 * cout_p] = h1
    a2_ref[:, 1:W + 1, 1 * cout_p:2 * cout_p] = h1
    a2_ref[:, 0:W,     2 * cout_p:3 * cout_p] = h1

    # conv2's zero padding rows at the image top/bottom boundary tiles.
    zrow = jnp.zeros((1, Wp, 3 * cout_p), a2_ref.dtype)

    @pl.when(t == 0)
    def _():
        a2_ref[0:1] = zrow

    @pl.when(t == pl.num_programs(1) - 1)
    def _():
        a2_ref[TH + 1:TH + 2] = zrow

    # --- conv2.
    HW2 = TH * Wp
    acc2 = jnp.dot(a2_ref[0:TH].reshape(HW2, 3 * cout_p), w2_ref[0],
                   preferred_element_type=jnp.float32)
    for dy in (1, 2):
        acc2 = acc2 + jnp.dot(a2_ref[dy:dy + TH].reshape(HW2, 3 * cout_p),
                              w2_ref[dy], preferred_element_type=jnp.float32)
    y = jnp.maximum(acc2 + b2_ref[...], 0.0)
    o_ref[0] = y.reshape(TH, Wp, cout_p)[:, 1:W + 1, :].astype(o_ref.dtype)


# ----------------------------------------------------------------------------
# Parameter packing helpers.
# ----------------------------------------------------------------------------
def _pack_conv_weight(w_oihw, scale, cin_p, cout_p):
    """(Cout, Cin, 3, 3) torch layout -> (3, 3*cin_p, cout_p) bf16 big-K taps,
    with the folded BatchNorm scale multiplied in (f32, before the bf16 cast)."""
    cout, cin = w_oihw.shape[0], w_oihw.shape[1]
    w = jnp.transpose(w_oihw, (2, 3, 1, 0)) * scale[None, None, None, :]
    w = jnp.pad(w, ((0, 0), (0, 0), (0, cin_p - cin), (0, cout_p - cout)))
    return w.reshape(3, 3 * cin_p, cout_p).astype(jnp.bfloat16)


def _fold_bn(conv_b, gamma, beta, mean, var, cout_p, eps):
    """Inference BN folded: scale goes into the weights, bias stays separate."""
    scale = gamma / jnp.sqrt(var + eps)                        # (Cout,)
    bias = beta + (conv_b - mean) * scale
    bias = jnp.pad(bias, (0, cout_p - bias.shape[0])).reshape(1, cout_p)
    return scale.astype(jnp.float32), bias.astype(jnp.float32)


def _choose_row_tile(H, W, Wp, cin_p, cout_p, budget_bytes=40 * 1024 * 1024):
    """Largest divisor of H whose per-step VMEM footprint fits the budget."""
    def footprint(th):
        b = (th + 4) * W * cin_p * 2            # x row window (bf16)
        b += (th + 4) * Wp * 3 * cin_p * 2      # conv1 im2col slab (bf16)
        b += (th + 2) * Wp * 3 * cout_p * 2     # conv2 im2col slab (bf16)
        b += (th + 2) * Wp * cout_p * 4         # conv1 f32 accumulator
        b += th * Wp * cout_p * 4               # conv2 f32 accumulator
        b += 2 * th * W * cout_p * 4            # double-buffered output block
        return b
    best = 1
    for th in range(1, min(H, 512) + 1):
        if H % th == 0 and footprint(th) <= budget_bytes:
            best = th
    return best


# ----------------------------------------------------------------------------
# DoubleConv.forward (NCHW in -> NCHW out, matching PyTorch convention).
# ----------------------------------------------------------------------------
def double_conv(x_nchw, params, eps=1e-5, row_tile=None, out_dtype=jnp.float32):
    x = jnp.transpose(x_nchw, (0, 2, 3, 1))                    # NHWC
    N, H, W, Cin = x.shape
    Cout = params["c1_w"].shape[0]

    cin_p = _round_up(Cin, 128)        # lane-dense channel padding
    cout_p = _round_up(Cout, 128)
    Wp = _round_up(W + 2, 16)          # bf16 sublane tile is 16

    # Single input prep pass: bf16 cast, 2-row zero halo top/bottom (for row
    # tiling), channel pad; flattened to (N*(H+4), W, cin_p) for the row DMA.
    x_p = jnp.pad(x.astype(jnp.bfloat16),
                  ((0, 0), (2, 2), (0, 0), (0, cin_p - Cin)))
    x_p = x_p.reshape(N * (H + 4), W, cin_p)

    s1, b1 = _fold_bn(params["c1_b"], params["bn1_g"], params["bn1_b"],
                      params["bn1_m"], params["bn1_v"], cout_p, eps)
    s2, b2 = _fold_bn(params["c2_b"], params["bn2_g"], params["bn2_b"],
                      params["bn2_m"], params["bn2_v"], cout_p, eps)
    w1 = _pack_conv_weight(params["c1_w"], s1, cin_p, cout_p)
    w2 = _pack_conv_weight(params["c2_w"], s2, cout_p, cout_p)

    TH = _choose_row_tile(H, W, Wp, cin_p, cout_p) if row_tile is None else row_tile
    if TH <= 0 or H % TH != 0:
        TH = H                          # TODO(synk): remainder row tiles
    n_tiles = H // TH

    kernel = functools.partial(_double_conv_kernel, TH=TH, H=H, W=W, Wp=Wp,
                               cin_p=cin_p, cout_p=cout_p)

    out = pl.pallas_call(
        kernel,
        out_shape=jax.ShapeDtypeStruct((N, H, W, cout_p), out_dtype),
        grid=(N, n_tiles),
        in_specs=[
            pl.BlockSpec(memory_space=pl.ANY),                          # x in HBM
            pl.BlockSpec((3, 3 * cin_p, cout_p), lambda n, t: (0, 0, 0)),
            pl.BlockSpec((1, cout_p), lambda n, t: (0, 0)),
            pl.BlockSpec((3, 3 * cout_p, cout_p), lambda n, t: (0, 0, 0)),
            pl.BlockSpec((1, cout_p), lambda n, t: (0, 0)),
        ],
        out_specs=pl.BlockSpec((1, TH, W, cout_p), lambda n, t: (n, t, 0, 0)),
        scratch_shapes=[
            pltpu.VMEM((TH + 4, W, cin_p), jnp.bfloat16),       # x row window
            pltpu.VMEM((TH + 4, Wp, 3 * cin_p), jnp.bfloat16),  # conv1 slab
            pltpu.VMEM((TH + 2, Wp, 3 * cout_p), jnp.bfloat16), # conv2 slab
        ],
        compiler_params=pltpu.CompilerParams(
            dimension_semantics=("parallel", "parallel"),
            vmem_limit_bytes=56 * 1024 * 1024,   # safe on v7x (64 MiB) too
        ),
    )(x_p, w1, b1, w2, b2)

    out = out[..., :Cout]                        # strip channel padding
    return jnp.transpose(out, (0, 3, 1, 2))      # back to NCHW


# ----------------------------------------------------------------------------
# Pure-JAX references.
#   bf16=True  -> same numerics as the kernel (bf16 operands, scale folded
#                 into weights before the cast, bf16 intermediate, f32 accum).
#   bf16=False -> plain f32 conv + BN + ReLU (PyTorch-style ordering).
# ----------------------------------------------------------------------------
def _ref_double_conv(x_nchw, params, eps=1e-5, bf16=False):
    x = jnp.transpose(x_nchw, (0, 2, 3, 1)).astype(jnp.float32)

    def block(x, w, b, g, be, m, v):
        if bf16:
            scale = g / jnp.sqrt(v + eps)
            bias = be + (b - m) * scale
            wh = (jnp.transpose(w, (2, 3, 1, 0)) * scale[None, None, None, :]
                  ).astype(jnp.bfloat16)
            y = jax.lax.conv_general_dilated(
                x.astype(jnp.bfloat16), wh, (1, 1), ((1, 1), (1, 1)),
                dimension_numbers=("NHWC", "HWIO", "NHWC"),
                preferred_element_type=jnp.float32) + bias
        else:
            wh = jnp.transpose(w, (2, 3, 1, 0))
            y = jax.lax.conv_general_dilated(
                x, wh, (1, 1), ((1, 1), (1, 1)),
                dimension_numbers=("NHWC", "HWIO", "NHWC"),
                preferred_element_type=jnp.float32) + b
            y = (y - m) / jnp.sqrt(v + eps) * g + be
        return jnp.maximum(y, 0.0)

    h = block(x, params["c1_w"], params["c1_b"], params["bn1_g"],
              params["bn1_b"], params["bn1_m"], params["bn1_v"])
    h = block(h, params["c2_w"], params["c2_b"], params["bn2_g"],
              params["bn2_b"], params["bn2_m"], params["bn2_v"])
    return jnp.transpose(h, (0, 3, 1, 2))


# ----------------------------------------------------------------------------
# Deterministic synthetic parameters matching DoubleConv(in_ch, out_ch).
# ----------------------------------------------------------------------------
def make_params(key, in_ch, out_ch):
    ks = jax.random.split(key, 10)
    return {
        "c1_w": 0.2 * jax.random.normal(ks[0], (out_ch, in_ch, 3, 3), jnp.float32),
        "c1_b": 0.1 * jax.random.normal(ks[1], (out_ch,), jnp.float32),
        "bn1_g": 1.0 + 0.1 * jax.random.normal(ks[2], (out_ch,), jnp.float32),
        "bn1_b": 0.1 * jax.random.normal(ks[3], (out_ch,), jnp.float32),
        "bn1_m": 0.1 * jax.random.normal(ks[4], (out_ch,), jnp.float32),
        "bn1_v": 1.0 + 0.1 * jnp.abs(jax.random.normal(ks[5], (out_ch,), jnp.float32)),
        "c2_w": 0.2 * jax.random.normal(ks[6], (out_ch, out_ch, 3, 3), jnp.float32),
        "c2_b": 0.1 * jax.random.normal(ks[7], (out_ch,), jnp.float32),
        "bn2_g": 1.0 + 0.1 * jax.random.normal(ks[8], (out_ch,), jnp.float32),
        "bn2_b": 0.1 * jax.random.normal(ks[9], (out_ch,), jnp.float32),
        "bn2_m": jnp.zeros((out_ch,), jnp.float32),
        "bn2_v": jnp.ones((out_ch,), jnp.float32),
    }


if __name__ == "__main__":
    in_ch, out_ch = 4, 8
    N, H, W = 2, 16, 16

    key = jax.random.PRNGKey(0)
    k_p, k_x = jax.random.split(key)
    params = make_params(k_p, in_ch, out_ch)
    x = jax.random.normal(k_x, (N, in_ch, H, W), jnp.float32)

    ref_bf16 = jax.block_until_ready(_ref_double_conv(x, params, bf16=True))
    ref_f32 = jax.block_until_ready(_ref_double_conv(x, params, bf16=False))

    # Exercise interior tiles (row_tile=4), first/last-tile halo zeroing
    # (row_tile=8), and the auto-selected tile size.
    for rt in (4, 8, None):
        out = jax.block_until_ready(double_conv(x, params, row_tile=rt))
        assert out.shape == (N, out_ch, H, W), out.shape
        # Tight check vs. a reference with identical bf16 operands / folding,
        # loose check vs. the full-f32 reference (bf16 MXU operands).
        np.testing.assert_allclose(np.asarray(out), np.asarray(ref_bf16),
                                   atol=2e-2, rtol=2e-2)
        np.testing.assert_allclose(np.asarray(out), np.asarray(ref_f32),
                                   atol=1e-1, rtol=1e-1)

    print("KERNEL_OK")
</pallas_src>

<mosaic_0001>
module attributes {stable_mosaic.version = 11 : i64} {
  func.func @_double_conv_kernel(%arg0: i32, %arg1: i32, %arg2: memref<40x16x128xbf16, #tpu.memory_space<any>>, %arg3: memref<3x384x128xbf16, #tpu.memory_space<vmem>>, %arg4: memref<1x128xf32, #tpu.memory_space<vmem>>, %arg5: memref<3x384x128xbf16, #tpu.memory_space<vmem>>, %arg6: memref<1x128xf32, #tpu.memory_space<vmem>>, %arg7: memref<1x4x16x128xf32, #tpu.memory_space<vmem>>, %arg8: memref<8x16x128xbf16, #tpu.memory_space<vmem>>, %arg9: memref<8x32x384xbf16, #tpu.memory_space<vmem>>, %arg10: memref<6x32x384xbf16, #tpu.memory_space<vmem>>) attributes {dimension_semantics = [#tpu.dimension_semantics<parallel>, #tpu.dimension_semantics<parallel>], iteration_bounds = array<i64: 2, 4>, scalar_prefetch = 0 : i64, scratch_operands = 3 : i64, tpu.core_type = #tpu.core_type<tc>, window_params = [{}, {pipeline_mode = #tpu.pipeline_mode<synchronous>, transform_indices = @transform_1, window_bounds = array<i64: 3, 384, 128>}, {pipeline_mode = #tpu.pipeline_mode<synchronous>, transform_indices = @transform_2, window_bounds = array<i64: 1, 128>}, {pipeline_mode = #tpu.pipeline_mode<synchronous>, transform_indices = @transform_3, window_bounds = array<i64: 3, 384, 128>}, {pipeline_mode = #tpu.pipeline_mode<synchronous>, transform_indices = @transform_4, window_bounds = array<i64: 1, 128>}, {transform_indices = @transform_5, window_bounds = array<i64: 1, 4, 16, 128>}]} {
    %c20_i32 = arith.constant 20 : i32
    %0 = arith.muli %arg0, %c20_i32 : i32
    %c4_i32 = arith.constant 4 : i32
    %1 = arith.muli %arg1, %c4_i32 : i32
    %2 = arith.addi %0, %1 : i32
    "tpu.region"() ({
      %75 = tpu.sem_alloc : memref<!tpu.dma_semaphore, #tpu.memory_space<semaphore_mem>>
      %c0_i32_83 = arith.constant 0 : i32
      %c0_i32_84 = arith.constant 0 : i32
      %76 = tpu.memref_slice %arg2[%2, %c0_i32_83, %c0_i32_84] : memref<40x16x128xbf16, #tpu.memory_space<any>> -> memref<8x16x128xbf16, #tpu.memory_space<any>>
      tpu.enqueue_dma source(%76 : memref<8x16x128xbf16, #tpu.memory_space<any>>) target(%arg8 : memref<8x16x128xbf16, #tpu.memory_space<vmem>>) target_semaphore(%75 : memref<!tpu.dma_semaphore, #tpu.memory_space<semaphore_mem>>)
      %c0_i32_85 = arith.constant 0 : i32
      %c0_i32_86 = arith.constant 0 : i32
      %77 = tpu.memref_slice %arg2[%2, %c0_i32_85, %c0_i32_86] : memref<40x16x128xbf16, #tpu.memory_space<any>> -> memref<8x16x128xbf16, #tpu.memory_space<any>>
      tpu.wait_dma2 semaphore(%75 : memref<!tpu.dma_semaphore, #tpu.memory_space<semaphore_mem>>) src(%77 : memref<8x16x128xbf16, #tpu.memory_space<any>>) dst(%arg8 : memref<8x16x128xbf16, #tpu.memory_space<vmem>>)
      tpu.yield
    }) : () -> ()
    %cst = arith.constant 0.000000e+00 : bf16
    %3 = vector.broadcast %cst : bf16 to vector<8x1x128xbf16>
    %c0 = arith.constant 0 : index
    %c1 = arith.constant 1 : index
    %c0_0 = arith.constant 0 : index
    %4 = vector.load %arg9[%c0, %c1, %c0_0] : memref<8x32x384xbf16, #tpu.memory_space<vmem>>, vector<8x1x128xbf16>
    tpu.vector_store %arg9[%c0, %c1, %c0_0], %3 {strides = array<i32>} : memref<8x32x384xbf16, #tpu.memory_space<vmem>>, vector<8x1x128xbf16>,
    %c0_1 = arith.constant 0 : index
    %c16 = arith.constant 16 : index
    %c256 = arith.constant 256 : index
    %5 = vector.load %arg9[%c0_1, %c16, %c256] : memref<8x32x384xbf16, #tpu.memory_space<vmem>>, vector<8x1x128xbf16>
    tpu.vector_store %arg9[%c0_1, %c16, %c256], %3 {strides = array<i32>} : memref<8x32x384xbf16, #tpu.memory_space<vmem>>, vector<8x1x128xbf16>,
    %cst_2 = arith.constant 0.000000e+00 : bf16
    %6 = vector.broadcast %cst_2 : bf16 to vector<6x1x128xbf16>
    %c0_3 = arith.constant 0 : index
    %c1_4 = arith.constant 1 : index
    %c0_5 = arith.constant 0 : index
    %7 = vector.load %arg10[%c0_3, %c1_4, %c0_5] : memref<6x32x384xbf16, #tpu.memory_space<vmem>>, vector<6x1x128xbf16>
    tpu.vector_store %arg10[%c0_3, %c1_4, %c0_5], %6 {strides = array<i32>} : memref<6x32x384xbf16, #tpu.memory_space<vmem>>, vector<6x1x128xbf16>,
    %c0_6 = arith.constant 0 : index
    %c16_7 = arith.constant 16 : index
    %c256_8 = arith.constant 256 : index
    %8 = vector.load %arg10[%c0_6, %c16_7, %c256_8] : memref<6x32x384xbf16, #tpu.memory_space<vmem>>, vector<6x1x128xbf16>
    tpu.vector_store %arg10[%c0_6, %c16_7, %c256_8], %6 {strides = array<i32>} : memref<6x32x384xbf16, #tpu.memory_space<vmem>>, vector<6x1x128xbf16>,
    %c0_9 = arith.constant 0 : index
    %c0_10 = arith.constant 0 : index
    %c0_11 = arith.constant 0 : index
    %9 = vector.load %arg8[%c0_9, %c0_10, %c0_11] : memref<8x16x128xbf16, #tpu.memory_space<vmem>>, vector<8x16x128xbf16>
    %c0_12 = arith.constant 0 : index
    %c2 = arith.constant 2 : index
    %c0_13 = arith.constant 0 : index
    %10 = vector.load %arg9[%c0_12, %c2, %c0_13] : memref<8x32x384xbf16, #tpu.memory_space<vmem>>, vector<8x16x128xbf16>
    tpu.vector_store %arg9[%c0_12, %c2, %c0_13], %9 {strides = array<i32>} : memref<8x32x384xbf16, #tpu.memory_space<vmem>>, vector<8x16x128xbf16>,
    %c0_14 = arith.constant 0 : index
    %c1_15 = arith.constant 1 : index
    %c128 = arith.constant 128 : index
    %11 = vector.load %arg9[%c0_14, %c1_15, %c128] : memref<8x32x384xbf16, #tpu.memory_space<vmem>>, vector<8x16x128xbf16>
    tpu.vector_store %arg9[%c0_14, %c1_15, %c128], %9 {strides = array<i32>} : memref<8x32x384xbf16, #tpu.memory_space<vmem>>, vector<8x16x128xbf16>,
    %c0_16 = arith.constant 0 : index
    %c0_17 = arith.constant 0 : index
    %c256_18 = arith.constant 256 : index
    %12 = vector.load %arg9[%c0_16, %c0_17, %c256_18] : memref<8x32x384xbf16, #tpu.memory_space<vmem>>, vector<8x16x128xbf16>
    tpu.vector_store %arg9[%c0_16, %c0_17, %c256_18], %9 {strides = array<i32>} : memref<8x32x384xbf16, #tpu.memory_space<vmem>>, vector<8x16x128xbf16>,
    %c0_19 = arith.constant 0 : index
    %c0_20 = arith.constant 0 : index
    %c0_21 = arith.constant 0 : index
    %13 = vector.load %arg9[%c0_19, %c0_20, %c0_21] : memref<8x32x384xbf16, #tpu.memory_space<vmem>>, vector<6x32x384xbf16>
    %14 = vector.shape_cast %13 : vector<6x32x384xbf16> to vector<192x384xbf16>
    %c0_22 = arith.constant 0 : index
    %c0_23 = arith.constant 0 : index
    %c0_24 = arith.constant 0 : index
    %15 = vector.load %arg3[%c0_22, %c0_23, %c0_24] : memref<3x384x128xbf16, #tpu.memory_space<vmem>>, vector<1x384x128xbf16>
    %16 = vector.shape_cast %15 : vector<1x384x128xbf16> to vector<384x128xbf16>
    %cst_25 = arith.constant dense<0.000000e+00> : vector<192x128xf32>
    %17 = tpu.matmul %14, %16, %cst_25 {dimension_numbers = #tpu.dot_dimension_numbers<[1], [0], [0], [1], [0, 0, 1, 1], [], []>} : vector<192x384xbf16>, vector<384x128xbf16>, vector<192x128xf32> -> vector<192x128xf32>
    %c1_26 = arith.constant 1 : index
    %c0_27 = arith.constant 0 : index
    %c0_28 = arith.constant 0 : index
    %18 = vector.load %arg9[%c1_26, %c0_27, %c0_28] : memref<8x32x384xbf16, #tpu.memory_space<vmem>>, vector<6x32x384xbf16>
    %19 = vector.shape_cast %18 : vector<6x32x384xbf16> to vector<192x384xbf16>
    %c1_29 = arith.constant 1 : index
    %c0_30 = arith.constant 0 : index
    %c0_31 = arith.constant 0 : index
    %20 = vector.load %arg3[%c1_29, %c0_30, %c0_31] : memref<3x384x128xbf16, #tpu.memory_space<vmem>>, vector<1x384x128xbf16>
    %21 = vector.shape_cast %20 : vector<1x384x128xbf16> to vector<384x128xbf16>
    %cst_32 = arith.constant dense<0.000000e+00> : vector<192x128xf32>
    %22 = tpu.matmul %19, %21, %cst_32 {dimension_numbers = #tpu.dot_dimension_numbers<[1], [0], [0], [1], [0, 0, 1, 1], [], []>} : vector<192x384xbf16>, vector<384x128xbf16>, vector<192x128xf32> -> vector<192x128xf32>
    %23 = arith.addf %17, %22 : vector<192x128xf32>
    %c2_33 = arith.constant 2 : index
    %c0_34 = arith.constant 0 : index
    %c0_35 = arith.constant 0 : index
    %24 = vector.load %arg9[%c2_33, %c0_34, %c0_35] : memref<8x32x384xbf16, #tpu.memory_space<vmem>>, vector<6x32x384xbf16>
    %25 = vector.shape_cast %24 : vector<6x32x384xbf16> to vector<192x384xbf16>
    %c2_36 = arith.constant 2 : index
    %c0_37 = arith.constant 0 : index
    %c0_38 = arith.constant 0 : index
    %26 = vector.load %arg3[%c2_36, %c0_37, %c0_38] : memref<3x384x128xbf16, #tpu.memory_space<vmem>>, vector<1x384x128xbf16>
    %27 = vector.shape_cast %26 : vector<1x384x128xbf16> to vector<384x128xbf16>
    %cst_39 = arith.constant dense<0.000000e+00> : vector<192x128xf32>
    %28 = tpu.matmul %25, %27, %cst_39 {dimension_numbers = #tpu.dot_dimension_numbers<[1], [0], [0], [1], [0, 0, 1, 1], [], []>} : vector<192x384xbf16>, vector<384x128xbf16>, vector<192x128xf32> -> vector<192x128xf32>
    %29 = arith.addf %23, %28 : vector<192x128xf32>
    %c0_40 = arith.constant 0 : index
    %c0_41 = arith.constant 0 : index
    %30 = vector.load %arg4[%c0_40, %c0_41] : memref<1x128xf32, #tpu.memory_space<vmem>>, vector<1x128xf32>
    %31 = vector.broadcast %30 : vector<1x128xf32> to vector<192x128xf32>
    %32 = arith.addf %29, %31 : vector<192x128xf32>
    %cst_42 = arith.constant 0.000000e+00 : f32
    %33 = vector.broadcast %cst_42 : f32 to vector<192x128xf32>
    %34 = arith.maximumf %32, %33 : vector<192x128xf32>
    %35 = vector.shape_cast %34 : vector<192x128xf32> to vector<6x32x128xf32>
    %36 = vector.extract_strided_slice %35 {offsets = [0, 1, 0], sizes = [6, 16, 128], strides = [1, 1, 1]} : vector<6x32x128xf32> to vector<6x16x128xf32>
    %37 = arith.truncf %36 : vector<6x16x128xf32> to vector<6x16x128xbf16>
    %c0_43 = arith.constant 0 : index
    %c2_44 = arith.constant 2 : index
    %c0_45 = arith.constant 0 : index
    %38 = vector.load %arg10[%c0_43, %c2_44, %c0_45] : memref<6x32x384xbf16, #tpu.memory_space<vmem>>, vector<6x16x128xbf16>
    tpu.vector_store %arg10[%c0_43, %c2_44, %c0_45], %37 {strides = array<i32>} : memref<6x32x384xbf16, #tpu.memory_space<vmem>>, vector<6x16x128xbf16>,
    %c0_46 = arith.constant 0 : index
    %c1_47 = arith.constant 1 : index
    %c128_48 = arith.constant 128 : index
    %39 = vector.load %arg10[%c0_46, %c1_47, %c128_48] : memref<6x32x384xbf16, #tpu.memory_space<vmem>>, vector<6x16x128xbf16>
    tpu.vector_store %arg10[%c0_46, %c1_47, %c128_48], %37 {strides = array<i32>} : memref<6x32x384xbf16, #tpu.memory_space<vmem>>, vector<6x16x128xbf16>,
    %c0_49 = arith.constant 0 : index
    %c0_50 = arith.constant 0 : index
    %c256_51 = arith.constant 256 : index
    %40 = vector.load %arg10[%c0_49, %c0_50, %c256_51] : memref<6x32x384xbf16, #tpu.memory_space<vmem>>, vector<6x16x128xbf16>
    tpu.vector_store %arg10[%c0_49, %c0_50, %c256_51], %37 {strides = array<i32>} : memref<6x32x384xbf16, #tpu.memory_space<vmem>>, vector<6x16x128xbf16>,
    %cst_52 = arith.constant 0.000000e+00 : bf16
    %41 = vector.broadcast %cst_52 : bf16 to vector<1x32x384xbf16>
    %c0_i32 = arith.constant 0 : i32
    %42 = arith.cmpi eq, %arg1, %c0_i32 : i32
    %43 = arith.extui %42 : i1 to i32
    %c0_i32_53 = arith.constant 0 : i32
    %44 = arith.cmpi ne, %43, %c0_i32_53 : i32
    scf.if %44 {
      %c0_83 = arith.constant 0 : index
      %c0_84 = arith.constant 0 : index
      %c0_85 = arith.constant 0 : index
      %75 = vector.load %arg10[%c0_83, %c0_84, %c0_85] : memref<6x32x384xbf16, #tpu.memory_space<vmem>>, vector<1x32x384xbf16>
      tpu.vector_store %arg10[%c0_83, %c0_84, %c0_85], %41 {strides = array<i32>} : memref<6x32x384xbf16, #tpu.memory_space<vmem>>, vector<1x32x384xbf16>,
    } else {
    }
    %c3_i32 = arith.constant 3 : i32
    %45 = arith.cmpi eq, %arg1, %c3_i32 : i32
    %46 = arith.extui %45 : i1 to i32
    %c0_i32_54 = arith.constant 0 : i32
    %47 = arith.cmpi ne, %46, %c0_i32_54 : i32
    scf.if %47 {
      %c5 = arith.constant 5 : index
      %c0_83 = arith.constant 0 : index
      %c0_84 = arith.constant 0 : index
      %75 = vector.load %arg10[%c5, %c0_83, %c0_84] : memref<6x32x384xbf16, #tpu.memory_space<vmem>>, vector<1x32x384xbf16>
      tpu.vector_store %arg10[%c5, %c0_83, %c0_84], %41 {strides = array<i32>} : memref<6x32x384xbf16, #tpu.memory_space<vmem>>, vector<1x32x384xbf16>,
    } else {
    }
    %c0_55 = arith.constant 0 : index
    %c0_56 = arith.constant 0 : index
    %c0_57 = arith.constant 0 : index
    %48 = vector.load %arg10[%c0_55, %c0_56, %c0_57] : memref<6x32x384xbf16, #tpu.memory_space<vmem>>, vector<4x32x384xbf16>
    %49 = vector.shape_cast %48 : vector<4x32x384xbf16> to vector<128x384xbf16>
    %c0_58 = arith.constant 0 : index
    %c0_59 = arith.constant 0 : index
    %c0_60 = arith.constant 0 : index
    %50 = vector.load %arg5[%c0_58, %c0_59, %c0_60] : memref<3x384x128xbf16, #tpu.memory_space<vmem>>, vector<1x384x128xbf16>
    %51 = vector.shape_cast %50 : vector<1x384x128xbf16> to vector<384x128xbf16>
    %cst_61 = arith.constant dense<0.000000e+00> : vector<128x128xf32>
    %52 = tpu.matmul %49, %51, %cst_61 {dimension_numbers = #tpu.dot_dimension_numbers<[1], [0], [0], [1], [0, 0, 1, 1], [], []>} : vector<128x384xbf16>, vector<384x128xbf16>, vector<128x128xf32> -> vector<128x128xf32>
    %c1_62 = arith.constant 1 : index
    %c0_63 = arith.constant 0 : index
    %c0_64 = arith.constant 0 : index
    %53 = vector.load %arg10[%c1_62, %c0_63, %c0_64] : memref<6x32x384xbf16, #tpu.memory_space<vmem>>, vector<4x32x384xbf16>
    %54 = vector.shape_cast %53 : vector<4x32x384xbf16> to vector<128x384xbf16>
    %c1_65 = arith.constant 1 : index
    %c0_66 = arith.constant 0 : index
    %c0_67 = arith.constant 0 : index
    %55 = vector.load %arg5[%c1_65, %c0_66, %c0_67] : memref<3x384x128xbf16, #tpu.memory_space<vmem>>, vector<1x384x128xbf16>
    %56 = vector.shape_cast %55 : vector<1x384x128xbf16> to vector<384x128xbf16>
    %cst_68 = arith.constant dense<0.000000e+00> : vector<128x128xf32>
    %57 = tpu.matmul %54, %56, %cst_68 {dimension_numbers = #tpu.dot_dimension_numbers<[1], [0], [0], [1], [0, 0, 1, 1], [], []>} : vector<128x384xbf16>, vector<384x128xbf16>, vector<128x128xf32> -> vector<128x128xf32>
    %58 = arith.addf %52, %57 : vector<128x128xf32>
    %c2_69 = arith.constant 2 : index
    %c0_70 = arith.constant 0 : index
    %c0_71 = arith.constant 0 : index
    %59 = vector.load %arg10[%c2_69, %c0_70, %c0_71] : memref<6x32x384xbf16, #tpu.memory_space<vmem>>, vector<4x32x384xbf16>
    %60 = vector.shape_cast %59 : vector<4x32x384xbf16> to vector<128x384xbf16>
    %c2_72 = arith.constant 2 : index
    %c0_73 = arith.constant 0 : index
    %c0_74 = arith.constant 0 : index
    %61 = vector.load %arg5[%c2_72, %c0_73, %c0_74] : memref<3x384x128xbf16, #tpu.memory_space<vmem>>, vector<1x384x128xbf16>
    %62 = vector.shape_cast %61 : vector<1x384x128xbf16> to vector<384x128xbf16>
    %cst_75 = arith.constant dense<0.000000e+00> : vector<128x128xf32>
    %63 = tpu.matmul %60, %62, %cst_75 {dimension_numbers = #tpu.dot_dimension_numbers<[1], [0], [0], [1], [0, 0, 1, 1], [], []>} : vector<128x384xbf16>, vector<384x128xbf16>, vector<128x128xf32> -> vector<128x128xf32>
    %64 = arith.addf %58, %63 : vector<128x128xf32>
    %c0_76 = arith.constant 0 : index
    %c0_77 = arith.constant 0 : index
    %65 = vector.load %arg6[%c0_76, %c0_77] : memref<1x128xf32, #tpu.memory_space<vmem>>, vector<1x128xf32>
    %66 = vector.broadcast %65 : vector<1x128xf32> to vector<128x128xf32>
    %67 = arith.addf %64, %66 : vector<128x128xf32>
    %cst_78 = arith.constant 0.000000e+00 : f32
    %68 = vector.broadcast %cst_78 : f32 to vector<128x128xf32>
    %69 = arith.maximumf %67, %68 : vector<128x128xf32>
    %70 = vector.shape_cast %69 : vector<128x128xf32> to vector<4x32x128xf32>
    %71 = vector.extract_strided_slice %70 {offsets = [0, 1, 0], sizes = [4, 16, 128], strides = [1, 1, 1]} : vector<4x32x128xf32> to vector<4x16x128xf32>
    %c0_79 = arith.constant 0 : index
    %c0_80 = arith.constant 0 : index
    %c0_81 = arith.constant 0 : index
    %c0_82 = arith.constant 0 : index
    %72 = vector.load %arg7[%c0_79, %c0_80, %c0_81, %c0_82] : memref<1x4x16x128xf32, #tpu.memory_space<vmem>>, vector<1x4x16x128xf32>
    %73 = vector.shape_cast %72 : vector<1x4x16x128xf32> to vector<4x16x128xf32>
    %74 = vector.shape_cast %71 : vector<4x16x128xf32> to vector<1x4x16x128xf32>
    tpu.vector_store %arg7[%c0_79, %c0_80, %c0_81, %c0_82], %74 {strides = array<i32>} : memref<1x4x16x128xf32, #tpu.memory_space<vmem>>, vector<1x4x16x128xf32>,
    return
  }
  func.func @transform_1(%arg0: i32, %arg1: i32) -> (i32, i32, i32) {
    %c0_i32 = arith.constant 0 : i32
    %c0_i32_0 = arith.constant 0 : i32
    %c0_i32_1 = arith.constant 0 : i32
    %c0_i32_2 = arith.constant 0 : i32
    return %c0_i32, %c0_i32_0, %c0_i32_1 : i32, i32, i32
  }
  func.func @transform_2(%arg0: i32, %arg1: i32) -> (i32, i32) {
    %c0_i32 = arith.constant 0 : i32
    %c0_i32_0 = arith.constant 0 : i32
    %c0_i32_1 = arith.constant 0 : i32
    return %c0_i32, %c0_i32_0 : i32, i32
  }
  func.func @transform_3(%arg0: i32, %arg1: i32) -> (i32, i32, i32) {
    %c0_i32 = arith.constant 0 : i32
    %c0_i32_0 = arith.constant 0 : i32
    %c0_i32_1 = arith.constant 0 : i32
    %c0_i32_2 = arith.constant 0 : i32
    return %c0_i32, %c0_i32_0, %c0_i32_1 : i32, i32, i32
  }
  func.func @transform_4(%arg0: i32, %arg1: i32) -> (i32, i32) {
    %c0_i32 = arith.constant 0 : i32
    %c0_i32_0 = arith.constant 0 : i32
    %c0_i32_1 = arith.constant 0 : i32
    return %c0_i32, %c0_i32_0 : i32, i32
  }
  func.func @transform_5(%arg0: i32, %arg1: i32) -> (i32, i32, i32, i32) {
    %c0_i32 = arith.constant 0 : i32
    %c0_i32_0 = arith.constant 0 : i32
    %c0_i32_1 = arith.constant 0 : i32
    return %arg0, %arg1, %c0_i32, %c0_i32_0 : i32, i32, i32, i32
  }
}

</mosaic_0001>

<llo_original>
// kernel: tpu_custom_call.1
$region0: #{tpu_custom_call.1}
  #allocation0 [shape = 'u32[]', space=smem, size = 0x4, offset = 0x4, fixed_abs, tag = 'smem constant byte address 0x4 - core index']
  #allocation1 [shape = 'u32[144,128]{1,0:T(1,128)}', space=vmem, size = 0x12000, scoped, tag = 'internal scratch']
  #allocation2 [shape = 'bf16[8,16,128]{2,1,0:T(16,128)(2,1)}', space=vmem, size = 0x8000, scoped, tag = 'scratch operand']
  #allocation3 [shape = 'bf16[8,32,384]{2,1,0:T(16,128)(2,1)}', space=vmem, size = 0x30000, scoped, tag = 'scratch operand']
  #allocation4 [shape = 'bf16[6,32,384]{2,1,0:T(16,128)(2,1)}', space=vmem, size = 0x24000, scoped, tag = 'scratch operand']
  #allocation12 [shape = 's32[]', space=sflag, size = 0x4, offset = 0, fixed_abs, tag = 'sflag constant byte address 0x0 - dummy sync flag']
  #allocation13 [shape = 's32[]', space=sflag, size = 0x4, offset = 0, fixed_abs, tag = 'sflag constant byte address 0x0 - dummy sync flag']
  #allocation14 [shape = 'u32[]', space=smem, size = 0x4, offset = 0x44, fixed_abs, tag = 'smem constant byte address 0x44 - assertion arg 0']
  #allocation15 [shape = 'u32[]', space=smem, size = 0x4, offset = 0x48, fixed_abs, tag = 'smem constant byte address 0x48 - assertion arg 1']
  %s0 = inlined_call_operand.hbm [shape: bf16[40,16,128], index: 0, kind: input, shape index: {}]
  %s1 = inlined_call_operand.hbm [shape: bf16[3,384,128], index: 1, kind: input, shape index: {}]
  %s2 = inlined_call_operand.vmem [shape: f32[1,128], index: 2, kind: input, shape index: {}]
  %s3 = inlined_call_operand.hbm [shape: bf16[3,384,128], index: 3, kind: input, shape index: {}]
  %s4 = inlined_call_operand.vmem [shape: f32[1,128], index: 4, kind: input, shape index: {}]
  %s5 = inlined_call_operand.hbm [shape: f32[2,16,16,128], index: 5, kind: output, shape index: {}]
  %s6 = sld [smem:[#allocation0]]
  $region70: #{tpu_custom_call.1} parent=0
    _
  %s8 = ssub.s32 1, %s6
  %s9 = scalar_select 0, %s8, %s6
  $region1: #{tpu_custom_call.1} parent=0
    #allocation5 [shape = 'u8[294912]{0}', space=vmem, size = 0x48000, scoped, tag = 'input window, operand 1, single buffered']
    #allocation6 [shape = 's32[2]{0}', space=sflag, size = 0x8, scoped, tag = 'scoped memory for tpu_custom_call.1']
    #allocation7 [shape = 's32[2]{0}', space=sflag, size = 0x8, scoped, tag = 'scoped memory for tpu_custom_call.1']
    #allocation8 [shape = 'u8[294912]{0}', space=vmem, size = 0x48000, scoped, tag = 'input window, operand 3, single buffered']
    #allocation9 [shape = 's32[1]{0}', space=sflag, size = 0x4, scoped, tag = 'scoped memory for tpu_custom_call.1']
    #allocation10 [shape = 'u8[65536]{0}', space=vmem, size = 0x10000, scoped, tag = 'output window, operand 0']
    %10 = vsyncpa [#allocation6], 0
    %11 = vsyncpa [#allocation9], 0
    %12 = vsyncpa [#allocation7], 0
    %s13 = scalar_lea.sflag [#allocation7], 1
    %14 = vsyncpa %s13, 0
    loop: start=0, step=1, limit=10
    $region2: #{tpu_custom_call.1} parent=1 // loop_pre_header
      _
    $region3: #{tpu_custom_call.1} parent=1 // loop_header
      %s16 = sphi 0, %s20
      %p17 = scmp.ge.s32.totalorder %s16, 10
      %s23 = sphi 0, %s35
      %s24 = sphi 0, %s31
      %s25 = sphi 0, %s23
      %s26 = sphi 0, %s24
      %s27 = sphi 0, %s25
      %s28 = sphi 0, %s26
      %s36 = sphi 0, %s36
      %s38 = sphi 0, %s36
      %s39 = sphi 0, %s38
      %s53 = sphi 0, %s39
      %s57 = sphi 0, %s57
      %s59 = sphi 0, %s57
      %s60 = sphi 0, %s59
      %s74 = sphi 0, %s60
      %s78 = sphi 0, %s78
      %s80 = sphi 0, %s78
      %s81 = sphi 0, %s80
      %s95 = sphi 0, %s81
      %s99 = sphi 0, %s99
      %s101 = sphi 0, %s99
      %s102 = sphi 0, %s101
      %s116 = sphi 0, %s102
      %s124 = sphi 0, %s126
      %s127 = sphi 0, %s124
      %s128 = sphi 0, %s127
      %s144 = sphi 0, %s128
    $region4: #{tpu_custom_call.1} parent=1 // loop_header_branch
      %19 = sbr.rel (%p17) target = $region8
    $region5: #{tpu_custom_call.1} parent=1 // loop_body
      %s21 = ssub.s32 %s16, 1
      %s22 = ssub.s32 %s16, 2
      %s29 = sadd.s32 1, %s24
      %p30 = scmp.ge.s32.totalorder %s29, 4
      %s31 = scalar_select %p30, 0, %s29
      %s32 = sadd.s32 1, %s23
      %s33 = scalar_select %p30, %s32, %s23
      %p34 = scmp.ge.s32.totalorder %s33, 2
      %s35 = scalar_select %p34, 0, %s33
      %s37 = sadd.s32 %s36, 1
      %p40 = scmp.eq.s32.totalorder %s16, 7
      %p41 = scmp.ne.s32.totalorder %s36, %s38
      %p42 = scmp.eq.s32.totalorder %s16, 0
      %p43 = por %p41, %p42
      %p44 = scmp.ne.s32.totalorder %s36, %s38
      %p45 = scmp.eq.s32.totalorder %s21, 7
      %p46 = por %p44, %p45
      %p47 = scmp.ne.s32.totalorder %s38, %s39
      %p48 = scmp.eq.s32.totalorder %s21, 0
      %p49 = por %p47, %p48
      %p50 = scmp.ne.s32.totalorder %s38, %s39
      %p51 = scmp.eq.s32.totalorder %s22, 7
      %p52 = por %p50, %p51
      %p54 = scmp.ne.s32.totalorder %s39, %s53
      %p55 = scmp.eq.s32.totalorder %s22, 0
      %p56 = por %p54, %p55
      %s58 = sadd.s32 %s57, 1
      %p61 = scmp.eq.s32.totalorder %s16, 7
      %p62 = scmp.ne.s32.totalorder %s57, %s59
      %p63 = scmp.eq.s32.totalorder %s16, 0
      %p64 = por %p62, %p63
      %p65 = scmp.ne.s32.totalorder %s57, %s59
      %p66 = scmp.eq.s32.totalorder %s21, 7
      %p67 = por %p65, %p66
      %p68 = scmp.ne.s32.totalorder %s59, %s60
      %p69 = scmp.eq.s32.totalorder %s21, 0
      %p70 = por %p68, %p69
      %p71 = scmp.ne.s32.totalorder %s59, %s60
      %p72 = scmp.eq.s32.totalorder %s22, 7
      %p73 = por %p71, %p72
      %p75 = scmp.ne.s32.totalorder %s60, %s74
      %p76 = scmp.eq.s32.totalorder %s22, 0
      %p77 = por %p75, %p76
      %s79 = sadd.s32 %s78, 1
      %p82 = scmp.eq.s32.totalorder %s16, 7
      %p83 = scmp.ne.s32.totalorder %s78, %s80
      %p84 = scmp.eq.s32.totalorder %s16, 0
      %p85 = por %p83, %p84
      %p86 = scmp.ne.s32.totalorder %s78, %s80
      %p87 = scmp.eq.s32.totalorder %s21, 7
      %p88 = por %p86, %p87
      %p89 = scmp.ne.s32.totalorder %s80, %s81
      %p90 = scmp.eq.s32.totalorder %s21, 0
      %p91 = por %p89, %p90
      %p92 = scmp.ne.s32.totalorder %s80, %s81
      %p93 = scmp.eq.s32.totalorder %s22, 7
      %p94 = por %p92, %p93
      %p96 = scmp.ne.s32.totalorder %s81, %s95
      %p97 = scmp.eq.s32.totalorder %s22, 0
      %p98 = por %p96, %p97
      %s100 = sadd.s32 %s99, 1
      %p103 = scmp.eq.s32.totalorder %s16, 7
      %p104 = scmp.ne.s32.totalorder %s99, %s101
      %p105 = scmp.eq.s32.totalorder %s16, 0
      %p106 = por %p104, %p105
      %p107 = scmp.ne.s32.totalorder %s99, %s101
      %p108 = scmp.eq.s32.totalorder %s21, 7
      %p109 = por %p107, %p108
      %p110 = scmp.ne.s32.totalorder %s101, %s102
      %p111 = scmp.eq.s32.totalorder %s21, 0
      %p112 = por %p110, %p111
      %p113 = scmp.ne.s32.totalorder %s101, %s102
      %p114 = scmp.eq.s32.totalorder %s22, 7
      %p115 = por %p113, %p114
      %p117 = scmp.ne.s32.totalorder %s102, %s116
      %p118 = scmp.eq.s32.totalorder %s22, 0
      %p119 = por %p117, %p118
      %s120 = ssub.s32 %s23, %s35
      %s121 = ssub.s32 %s24, %s31
      %s122 = sor.u32 %s120, %s121
      %p123 = scmp.eq.s32.totalorder %s122, 0
      %s125 = sadd.s32 %s124, 1
      %s126 = scalar_select %p123, %s124, %s125
      %p129 = pneg %p123
      %p130 = scmp.eq.s32.totalorder %s16, 7
      %p131 = por %p129, %p130
      %p132 = scmp.ne.s32.totalorder %s124, %s127
      %p133 = scmp.eq.s32.totalorder %s16, 0
      %p134 = por %p132, %p133
      %p135 = scmp.ne.s32.totalorder %s124, %s127
      %p136 = scmp.eq.s32.totalorder %s21, 7
      %p137 = por %p135, %p136
      %p138 = scmp.ne.s32.totalorder %s127, %s128
      %p139 = scmp.eq.s32.totalorder %s21, 0
      %p140 = por %p138, %p139
      %p141 = scmp.ne.s32.totalorder %s127, %s128
      %p142 = scmp.eq.s32.totalorder %s22, 7
      %p143 = por %p141, %p142
      %p145 = scmp.ne.s32.totalorder %s128, %s144
      %p146 = scmp.eq.s32.totalorder %s22, 0
      %p147 = por %p145, %p146
      %p148 = scmp.le.s32.totalorder 1, %s16
      %p149 = scmp.lt.s32.totalorder %s16, 9
      %p150 = pnand %p148, %p149
      %p151 = pneg %p150
      // Predicated region
      $region9: #{tpu_custom_call.1} parent=5 // pred_check
        _
      $region10: #{tpu_custom_call.1} parent=5 // pred_check_branch
        %153 = sbr.rel (%p150) target = $region12
      $region11: #{tpu_custom_call.1} parent=5 // pred_region
        %s154 = ssub.s32 %s16, 1
        // Predicated region
        $region13: #{tpu_custom_call.1} parent=11 // pred_check
          %p155 = pneg %p49
        $region14: #{tpu_custom_call.1} parent=11 // pred_check_branch
          %157 = sbr.rel (%p155) target = $region16
        $region15: #{tpu_custom_call.1} parent=11 // pred_region
          %s159 = ssub.s32 9216, 9216
          %160 = vsyncadd [#allocation6], %s159
          %s161 = sshll.u32 [#allocation5], 4
          %s162 = int_to_ptr.vmem [resolvable:$true] %s161
          %167 = dma.hbm_to_vmem [thread:$0]  %s1, 9216, %s162, [#allocation6], 64, 64, 4
        $region16: #{tpu_custom_call.1} parent=11 // pred_fallthru
          _
        // Predicated region
        $region17: #{tpu_custom_call.1} parent=11 // pred_check
          %p168 = pneg %p70
        $region18: #{tpu_custom_call.1} parent=11 // pred_check_branch
          %170 = sbr.rel (%p168) target = $region20
        $region19: #{tpu_custom_call.1} parent=11 // pred_region
          _
        $region20: #{tpu_custom_call.1} parent=11 // pred_fallthru
          _
        // Predicated region
        $region21: #{tpu_custom_call.1} parent=11 // pred_check
          %p171 = pneg %p91
        $region22: #{tpu_custom_call.1} parent=11 // pred_check_branch
          %173 = sbr.rel (%p171) target = $region24
        $region23: #{tpu_custom_call.1} parent=11 // pred_region
          %s175 = ssub.s32 9216, 9216
          %176 = vsyncadd [#allocation9], %s175
          %s177 = sshll.u32 [#allocation8], 4
          %s178 = int_to_ptr.vmem [resolvable:$true] %s177
          %183 = dma.hbm_to_vmem [thread:$0]  %s3, 9216, %s178, [#allocation9], 64, 64, 4
        $region24: #{tpu_custom_call.1} parent=11 // pred_fallthru
          _
        // Predicated region
        $region25: #{tpu_custom_call.1} parent=11 // pred_check
          %p184 = pneg %p112
        $region26: #{tpu_custom_call.1} parent=11 // pred_check_branch
          %186 = sbr.rel (%p184) target = $region28
        $region27: #{tpu_custom_call.1} parent=11 // pred_region
          _
        $region28: #{tpu_custom_call.1} parent=11 // pred_fallthru
          _
      $region12: #{tpu_custom_call.1} parent=5 // pred_fallthru
        _
      %p187 = scmp.lt.s32.totalorder %s16, 8
      // Predicated region
      $region29: #{tpu_custom_call.1} parent=5 // pred_check
        %p188 = pneg %p187
      $region30: #{tpu_custom_call.1} parent=5 // pred_check_branch
        %190 = sbr.rel (%p188) target = $region32
      $region31: #{tpu_custom_call.1} parent=5 // pred_region
        _
      $region32: #{tpu_custom_call.1} parent=5 // pred_fallthru
        _
      %p191 = scmp.le.s32.totalorder 1, %s16
      %p192 = scmp.lt.s32.totalorder %s16, 9
      %p193 = pnand %p191, %p192
      %p194 = pneg %p193
      // Predicated region
      $region33: #{tpu_custom_call.1} parent=5 // pred_check
        _
      $region34: #{tpu_custom_call.1} parent=5 // pred_check_branch
        %196 = sbr.rel (%p193) target = $region36
      $region35: #{tpu_custom_call.1} parent=5 // pred_region
        %s197 = ssub.s32 %s16, 1
        // Predicated region
        $region37: #{tpu_custom_call.1} parent=35 // pred_check
          %p198 = pneg %p49
        $region38: #{tpu_custom_call.1} parent=35 // pred_check_branch
          %200 = sbr.rel (%p198) target = $region40
        $region39: #{tpu_custom_call.1} parent=35 // pred_region
          %201 = dma.done [#allocation6], 9216
        $region40: #{tpu_custom_call.1} parent=35 // pred_fallthru
          _
        // Predicated region
        $region41: #{tpu_custom_call.1} parent=35 // pred_check
          %p202 = pneg %p91
        $region42: #{tpu_custom_call.1} parent=35 // pred_check_branch
          %204 = sbr.rel (%p202) target = $region44
        $region43: #{tpu_custom_call.1} parent=35 // pred_region
          %205 = dma.done [#allocation9], 9216
        $region44: #{tpu_custom_call.1} parent=35 // pred_fallthru
          _
        %p206 = pneg %p49
        %p207 = pneg %p46
        %p208 = pneg %p70
        %p209 = pneg %p67
        %p210 = pneg %p91
        %p211 = pneg %p88
        %p212 = pneg %p112
        %p213 = pneg %p109
        %p214 = pneg %p140
        %p215 = pneg %p137
        %s216 = sand.u32 %s127, 1
        %s217 = scalar_lea.sflag [#allocation7], %s216
        %s218 = sand.u32 %s127, 1
        %s219 = smul.addr %s218, 64
        %s220 = scalar_lea.vmem [#allocation10], %s219
        %s221 = smul.u32 4, %s26
        %s223 = smul.u32 %s25, 20
        %s224 = smul.u32 %s26, 4
        %s225 = sadd.s32 %s223, %s224
        $region45: #{tpu_custom_call.1} parent=35
          #allocation11 [shape = 's32[1]{0}', space=sflag, size = 0x4, scoped, tag = 'scoped memory for tpu_custom_call.1']
          %s226 = smul.u32 %s225, 2
          %s227 = smul.addr %s226, 64
          %s228 = scalar_lea.hbm %s0, %s227
          // Predicated region
          $region46: #{tpu_custom_call.1} parent=45 // pred_check
            _
          $region47: #{tpu_custom_call.1} parent=45 // pred_check_branch
            %230 = sbr.rel target = $region49
          $region48: #{tpu_custom_call.1} parent=45 // pred_region
            %231 = sst [smem:[#allocation14]] [#allocation13]
            %232 = sst [smem:[#allocation15]] [#allocation12]
          $region49: #{tpu_custom_call.1} parent=45 // pred_fallthru
            _
          %234 = shalt.err (0)
          %s236 = sshll.u32 [#allocation2], 4
          %s237 = int_to_ptr.vmem [resolvable:$true] %s236
          %239 = dma.hbm_to_vmem [thread:$0]  %s228, 1024, %s237, [#allocation11]
          %s240 = smul.u32 4, 8
          %s241 = smul.u32 %s240, 2
          %s242 = smul.u32 %s241, 1
          %s243 = sshll.u32 %s242, 4
          %244 = dma.done [#allocation11], %s243
        %vm245 = vcmask 1040384
        %vm246 = vsmask.f32 7938
        %vm247 = vmand %vm245, %vm246
        %v248 = vld [vmem:[#allocation3] sm:$0x1]
        %v249 = vsel %vm247, 0, %v248
        %250 = vst [vmem:[#allocation3] sm:$0x1] %v249
        %v251 = vld [vmem:[#allocation3 + $0x30] sm:$0x1]
        %v252 = vsel %vm247, 0, %v251
        %253 = vst [vmem:[#allocation3 + $0x30] sm:$0x1] %v252
        %v254 = vld [vmem:[#allocation3 + $0x60] sm:$0x1]
        %v255 = vsel %vm247, 0, %v254
        %256 = vst [vmem:[#allocation3 + $0x60] sm:$0x1] %v255
        %v257 = vld [vmem:[#allocation3 + $0x90] sm:$0x1]
        %v258 = vsel %vm247, 0, %v257
        %259 = vst [vmem:[#allocation3 + $0x90] sm:$0x1] %v258
        %v260 = vld [vmem:[#allocation3 + $0xc0] sm:$0x1]
        %v261 = vsel %vm247, 0, %v260
        %262 = vst [vmem:[#allocation3 + $0xc0] sm:$0x1] %v261
        %v263 = vld [vmem:[#allocation3 + $0xf0] sm:$0x1]
        %v264 = vsel %vm247, 0, %v263
        %265 = vst [vmem:[#allocation3 + $0xf0] sm:$0x1] %v264
        %v266 = vld [vmem:[#allocation3 + $0x120] sm:$0x1]
        %v267 = vsel %vm247, 0, %v266
        %268 = vst [vmem:[#allocation3 + $0x120] sm:$0x1] %v267
        %v269 = vld [vmem:[#allocation3 + $0x150] sm:$0x1]
        %v270 = vsel %vm247, 0, %v269
        %271 = vst [vmem:[#allocation3 + $0x150] sm:$0x1] %v270
        %vm272 = vsmask.f32 256
        %vm273 = vmand %vm245, %vm272
        %v274 = vld [vmem:[#allocation3 + $0x28] sm:$0x1]
        %v275 = vsel %vm273, 0, %v274
        %276 = vst [vmem:[#allocation3 + $0x28] sm:$0x1] %v275
        %v277 = vld [vmem:[#allocation3 + $0x58] sm:$0x1]
        %v278 = vsel %vm273, 0, %v277
        %279 = vst [vmem:[#allocation3 + $0x58] sm:$0x1] %v278
        %v280 = vld [vmem:[#allocation3 + $0x88] sm:$0x1]
        %v281 = vsel %vm273, 0, %v280
        %282 = vst [vmem:[#allocation3 + $0x88] sm:$0x1] %v281
        %v283 = vld [vmem:[#allocation3 + $0xb8] sm:$0x1]
        %v284 = vsel %vm273, 0, %v283
        %285 = vst [vmem:[#allocation3 + $0xb8] sm:$0x1] %v284
        %v286 = vld [vmem:[#allocation3 + $0xe8] sm:$0x1]
        %v287 = vsel %vm273, 0, %v286
        %288 = vst [vmem:[#allocation3 + $0xe8] sm:$0x1] %v287
        %v289 = vld [vmem:[#allocation3 + $0x118] sm:$0x1]
        %v290 = vsel %vm273, 0, %v289
        %291 = vst [vmem:[#allocation3 + $0x118] sm:$0x1] %v290
        %v292 = vld [vmem:[#allocation3 + $0x148] sm:$0x1]
        %v293 = vsel %vm273, 0, %v292
        %294 = vst [vmem:[#allocation3 + $0x148] sm:$0x1] %v293
        %v295 = vld [vmem:[#allocation3 + $0x178] sm:$0x1]
        %v296 = vsel %vm273, 0, %v295
        %297 = vst [vmem:[#allocation3 + $0x178] sm:$0x1] %v296
        %v298 = vld [vmem:[#allocation4] sm:$0x1]
        %v299 = vsel %vm247, 0, %v298
        %300 = vst [vmem:[#allocation4] sm:$0x1] %v299
        %v301 = vld [vmem:[#allocation4 + $0x30] sm:$0x1]
        %v302 = vsel %vm247, 0, %v301
        %303 = vst [vmem:[#allocation4 + $0x30] sm:$0x1] %v302
        %v304 = vld [vmem:[#allocation4 + $0x60] sm:$0x1]
        %v305 = vsel %vm247, 0, %v304
        %306 = vst [vmem:[#allocation4 + $0x60] sm:$0x1] %v305
        %v307 = vld [vmem:[#allocation4 + $0x90] sm:$0x1]
        %v308 = vsel %vm247, 0, %v307
        %309 = vst [vmem:[#allocation4 + $0x90] sm:$0x1] %v308
        %v310 = vld [vmem:[#allocation4 + $0xc0] sm:$0x1]
        %v311 = vsel %vm247, 0, %v310
        %312 = vst [vmem:[#allocation4 + $0xc0] sm:$0x1] %v311
        %v313 = vld [vmem:[#allocation4 + $0xf0] sm:$0x1]
        %v314 = vsel %vm247, 0, %v313
        %315 = vst [vmem:[#allocation4 + $0xf0] sm:$0x1] %v314
        %v316 = vld [vmem:[#allocation4 + $0x28] sm:$0x1]
        %v317 = vsel %vm273, 0, %v316
        %318 = vst [vmem:[#allocation4 + $0x28] sm:$0x1] %v317
        %v319 = vld [vmem:[#allocation4 + $0x58] sm:$0x1]
        %v320 = vsel %vm273, 0, %v319
        %321 = vst [vmem:[#allocation4 + $0x58] sm:$0x1] %v320
        %v322 = vld [vmem:[#allocation4 + $0x88] sm:$0x1]
        %v323 = vsel %vm273, 0, %v322
        %324 = vst [vmem:[#allocation4 + $0x88] sm:$0x1] %v323
        %v325 = vld [vmem:[#allocation4 + $0xb8] sm:$0x1]
        %v326 = vsel %vm273, 0, %v325
        %327 = vst [vmem:[#allocation4 + $0xb8] sm:$0x1] %v326
        %v328 = vld [vmem:[#allocation4 + $0xe8] sm:$0x1]
        %v329 = vsel %vm273, 0, %v328
        %330 = vst [vmem:[#allocation4 + $0xe8] sm:$0x1] %v329
        %v331 = vld [vmem:[#allocation4 + $0x118] sm:$0x1]
        %v332 = vsel %vm273, 0, %v331
        %333 = vst [vmem:[#allocation4 + $0x118] sm:$0x1] %v332
        %v334 = vld [vmem:[#allocation2] sm:$0xff]
        %v335 = vld [vmem:[#allocation2 + $0x8] sm:$0xff]
        %v336 = vld [vmem:[#allocation2 + $0x10] sm:$0xff]
        %v337 = vld [vmem:[#allocation2 + $0x18] sm:$0xff]
        %v338 = vld [vmem:[#allocation2 + $0x20] sm:$0xff]
        %v339 = vld [vmem:[#allocation2 + $0x28] sm:$0xff]
        %v340 = vld [vmem:[#allocation2 + $0x30] sm:$0xff]
        %v341 = vld [vmem:[#allocation2 + $0x38] sm:$0xff]
        %v350 = vrot.slane %v334, 7
        %v351 = vrot.slane %v335, 7
        %v352 = vrot.slane %v336, 7
        %v353 = vrot.slane %v337, 7
        %v354 = vrot.slane %v338, 7
        %v355 = vrot.slane %v339, 7
        %v356 = vrot.slane %v340, 7
        %v357 = vrot.slane %v341, 7
        %366 = vst [vmem:[#allocation3] sm:$0xfe] %v350
        %367 = vst [vmem:[#allocation3 + $0x18] sm:$0x1] %v350
        %368 = vst [vmem:[#allocation3 + $0x30] sm:$0xfe] %v351
        %369 = vst [vmem:[#allocation3 + $0x48] sm:$0x1] %v351
        %370 = vst [vmem:[#allocation3 + $0x60] sm:$0xfe] %v352
        %371 = vst [vmem:[#allocation3 + $0x78] sm:$0x1] %v352
        %372 = vst [vmem:[#allocation3 + $0x90] sm:$0xfe] %v353
        %373 = vst [vmem:[#allocation3 + $0xa8] sm:$0x1] %v353
        %374 = vst [vmem:[#allocation3 + $0xc0] sm:$0xfe] %v354
        %375 = vst [vmem:[#allocation3 + $0xd8] sm:$0x1] %v354
        %376 = vst [vmem:[#allocation3 + $0xf0] sm:$0xfe] %v355
        %377 = vst [vmem:[#allocation3 + $0x108] sm:$0x1] %v355
        %378 = vst [vmem:[#allocation3 + $0x120] sm:$0xfe] %v356
        %379 = vst [vmem:[#allocation3 + $0x138] sm:$0x1] %v356
        %380 = vst [vmem:[#allocation3 + $0x150] sm:$0xfe] %v357
        %381 = vst [vmem:[#allocation3 + $0x168] sm:$0x1] %v357
        %v383 = vshrl.u32 %v334, 16
        %v385 = vrot.slane %v383, 7
        %v386 = vshll.u32 %v334, 16
        %v388 = vor.u32 %v385, %v386
        %v390 = vshrl.u32 %v335, 16
        %v392 = vrot.slane %v390, 7
        %v393 = vshll.u32 %v335, 16
        %v395 = vor.u32 %v392, %v393
        %v397 = vshrl.u32 %v336, 16
        %v399 = vrot.slane %v397, 7
        %v400 = vshll.u32 %v336, 16
        %v402 = vor.u32 %v399, %v400
        %v404 = vshrl.u32 %v337, 16
        %v406 = vrot.slane %v404, 7
        %v407 = vshll.u32 %v337, 16
        %v409 = vor.u32 %v406, %v407
        %v411 = vshrl.u32 %v338, 16
        %v413 = vrot.slane %v411, 7
        %v414 = vshll.u32 %v338, 16
        %v416 = vor.u32 %v413, %v414
        %v418 = vshrl.u32 %v339, 16
        %v420 = vrot.slane %v418, 7
        %v421 = vshll.u32 %v339, 16
        %v423 = vor.u32 %v420, %v421
        %v425 = vshrl.u32 %v340, 16
        %v427 = vrot.slane %v425, 7
        %v428 = vshll.u32 %v340, 16
        %v430 = vor.u32 %v427, %v428
        %v432 = vshrl.u32 %v341, 16
        %v434 = vrot.slane %v432, 7
        %v435 = vshll.u32 %v341, 16
        %v437 = vor.u32 %v434, %v435
        %vm454 = vcmask 1047552
        %vm455 = vmand %vm454, %vm246
        %v456 = vld [vmem:[#allocation3 + $0x8] sm:$0xff]
        %v457 = vsel %vm455, %v388, %v456
        %458 = vst [vmem:[#allocation3 + $0x8] sm:$0xff] %v457
        %v459 = vld [vmem:[#allocation3 + $0x20] sm:$0x1]
        %v460 = vsel %vm273, %v385, %v459
        %461 = vst [vmem:[#allocation3 + $0x20] sm:$0x1] %v460
        %v462 = vld [vmem:[#allocation3 + $0x38] sm:$0xff]
        %v463 = vsel %vm455, %v395, %v462
        %464 = vst [vmem:[#allocation3 + $0x38] sm:$0xff] %v463
        %v465 = vld [vmem:[#allocation3 + $0x50] sm:$0x1]
        %v466 = vsel %vm273, %v392, %v465
        %467 = vst [vmem:[#allocation3 + $0x50] sm:$0x1] %v466
        %v468 = vld [vmem:[#allocation3 + $0x68] sm:$0xff]
        %v469 = vsel %vm455, %v402, %v468
        %470 = vst [vmem:[#allocation3 + $0x68] sm:$0xff] %v469
        %v471 = vld [vmem:[#allocation3 + $0x80] sm:$0x1]
        %v472 = vsel %vm273, %v399, %v471
        %473 = vst [vmem:[#allocation3 + $0x80] sm:$0x1] %v472
        %v474 = vld [vmem:[#allocation3 + $0x98] sm:$0xff]
        %v475 = vsel %vm455, %v409, %v474
        %476 = vst [vmem:[#allocation3 + $0x98] sm:$0xff] %v475
        %v477 = vld [vmem:[#allocation3 + $0xb0] sm:$0x1]
        %v478 = vsel %vm273, %v406, %v477
        %479 = vst [vmem:[#allocation3 + $0xb0] sm:$0x1] %v478
        %v480 = vld [vmem:[#allocation3 + $0xc8] sm:$0xff]
        %v481 = vsel %vm455, %v416, %v480
        %482 = vst [vmem:[#allocation3 + $0xc8] sm:$0xff] %v481
        %v483 = vld [vmem:[#allocation3 + $0xe0] sm:$0x1]
        %v484 = vsel %vm273, %v413, %v483
        %485 = vst [vmem:[#allocation3 + $0xe0] sm:$0x1] %v484
        %v486 = vld [vmem:[#allocation3 + $0xf8] sm:$0xff]
        %v487 = vsel %vm455, %v423, %v486
        %488 = vst [vmem:[#allocation3 + $0xf8] sm:$0xff] %v487
        %v489 = vld [vmem:[#allocation3 + $0x110] sm:$0x1]
        %v490 = vsel %vm273, %v420, %v489
        %491 = vst [vmem:[#allocation3 + $0x110] sm:$0x1] %v490
        %v492 = vld [vmem:[#allocation3 + $0x128] sm:$0xff]
        %v493 = vsel %vm455, %v430, %v492
        %494 = vst [vmem:[#allocation3 + $0x128] sm:$0xff] %v493
        %v495 = vld [vmem:[#allocation3 + $0x140] sm:$0x1]
        %v496 = vsel %vm273, %v427, %v495
        %497 = vst [vmem:[#allocation3 + $0x140] sm:$0x1] %v496
        %v498 = vld [vmem:[#allocation3 + $0x158] sm:$0xff]
        %v499 = vsel %vm455, %v437, %v498
        %500 = vst [vmem:[#allocation3 + $0x158] sm:$0xff] %v499
        %v501 = vld [vmem:[#allocation3 + $0x170] sm:$0x1]
        %v502 = vsel %vm273, %v434, %v501
        %503 = vst [vmem:[#allocation3 + $0x170] sm:$0x1] %v502
        %504 = vst [vmem:[#allocation3 + $0x10] sm:$0xff] %v334
        %505 = vst [vmem:[#allocation3 + $0x40] sm:$0xff] %v335
        %506 = vst [vmem:[#allocation3 + $0x70] sm:$0xff] %v336
        %507 = vst [vmem:[#allocation3 + $0xa0] sm:$0xff] %v337
        %508 = vst [vmem:[#allocation3 + $0xd0] sm:$0xff] %v338
        %509 = vst [vmem:[#allocation3 + $0x100] sm:$0xff] %v339
        %510 = vst [vmem:[#allocation3 + $0x130] sm:$0xff] %v340
        %511 = vst [vmem:[#allocation3 + $0x160] sm:$0xff] %v341
        %v512 = vld [vmem:[#allocation3] sm:$0xff]
        %v513 = vld [vmem:[#allocation3 + $0x8] sm:$0xff]
        %v514 = vld [vmem:[#allocation3 + $0x10] sm:$0xff]
        %v515 = vld [vmem:[#allocation3 + $0x18] sm:$0xff]
        %v516 = vld [vmem:[#allocation3 + $0x20] sm:$0xff]
        %v517 = vld [vmem:[#allocation3 + $0x28] sm:$0xff]
        %v518 = vld [vmem:[#allocation3 + $0x30] sm:$0xff]
        %v519 = vld [vmem:[#allocation3 + $0x38] sm:$0xff]
        %v520 = vld [vmem:[#allocation3 + $0x40] sm:$0xff]
        %v521 = vld [vmem:[#allocation3 + $0x48] sm:$0xff]
        %v522 = vld [vmem:[#allocation3 + $0x50] sm:$0xff]
        %v523 = vld [vmem:[#allocation3 + $0x58] sm:$0xff]
        %v524 = vld [vmem:[#allocation3 + $0x60] sm:$0xff]
        %v525 = vld [vmem:[#allocation3 + $0x68] sm:$0xff]
        %v526 = vld [vmem:[#allocation3 + $0x70] sm:$0xff]
        %v527 = vld [vmem:[#allocation3 + $0x78] sm:$0xff]
        %v528 = vld [vmem:[#allocation3 + $0x80] sm:$0xff]
        %v529 = vld [vmem:[#allocation3 + $0x88] sm:$0xff]
        %v530 = vld [vmem:[#allocation3 + $0x90] sm:$0xff]
        %v531 = vld [vmem:[#allocation3 + $0x98] sm:$0xff]
        %v532 = vld [vmem:[#allocation3 + $0xa0] sm:$0xff]
        %v533 = vld [vmem:[#allocation3 + $0xa8] sm:$0xff]
        %v534 = vld [vmem:[#allocation3 + $0xb0] sm:$0xff]
        %v535 = vld [vmem:[#allocation3 + $0xb8] sm:$0xff]
        %v536 = vld [vmem:[#allocation3 + $0xc0] sm:$0xff]
        %v537 = vld [vmem:[#allocation3 + $0xc8] sm:$0xff]
        %v538 = vld [vmem:[#allocation3 + $0xd0] sm:$0xff]
        %v539 = vld [vmem:[#allocation3 + $0xd8] sm:$0xff]
        %v540 = vld [vmem:[#allocation3 + $0xe0] sm:$0xff]
        %v541 = vld [vmem:[#allocation3 + $0xe8] sm:$0xff]
        %v542 = vld [vmem:[#allocation3 + $0xf0] sm:$0xff]
        %v543 = vld [vmem:[#allocation3 + $0xf8] sm:$0xff]
        %v544 = vld [vmem:[#allocation3 + $0x100] sm:$0xff]
        %v545 = vld [vmem:[#allocation3 + $0x108] sm:$0xff]
        %v546 = vld [vmem:[#allocation3 + $0x110] sm:$0xff]
        %v547 = vld [vmem:[#allocation3 + $0x118] sm:$0xff]
        %v548 = vld [vmem:[#allocation5] sm:$0xf]
        %v549 = vld [vmem:[#allocation5 + $0x4] sm:$0xf]
        %v550 = vld [vmem:[#allocation5 + $0x8] sm:$0xf]
        %v551 = vld [vmem:[#allocation5 + $0xc] sm:$0xf]
        %v552 = vld [vmem:[#allocation5 + $0x10] sm:$0xf]
        %v553 = vld [vmem:[#allocation5 + $0x14] sm:$0xf]
        %v554 = vld [vmem:[#allocation5 + $0x18] sm:$0xf]
        %v555 = vld [vmem:[#allocation5 + $0x1c] sm:$0xf]
        %v556 = vld [vmem:[#allocation5 + $0x20] sm:$0xf]
        %v557 = vld [vmem:[#allocation5 + $0x24] sm:$0xf]
        %v558 = vld [vmem:[#allocation5 + $0x28] sm:$0xf]
        %v559 = vld [vmem:[#allocation5 + $0x2c] sm:$0xf]
        %v560 = vld [vmem:[#allocation5 + $0x30] sm:$0xf]
        %v561 = vld [vmem:[#allocation5 + $0x34] sm:$0xf]
        %v562 = vld [vmem:[#allocation5 + $0x38] sm:$0xf]
        %v563 = vld [vmem:[#allocation5 + $0x3c] sm:$0xf]
        %v564 = vld [vmem:[#allocation5 + $0x40] sm:$0xf]
        %v565 = vld [vmem:[#allocation5 + $0x44] sm:$0xf]
        %v566 = vld [vmem:[#allocation5 + $0x48] sm:$0xf]
        %v567 = vld [vmem:[#allocation5 + $0x4c] sm:$0xf]
        %v568 = vld [vmem:[#allocation5 + $0x50] sm:$0xf]
        %v569 = vld [vmem:[#allocation5 + $0x54] sm:$0xf]
        %v570 = vld [vmem:[#allocation5 + $0x58] sm:$0xf]
        %v571 = vld [vmem:[#allocation5 + $0x5c] sm:$0xf]
        %v572 = vld [vmem:[#allocation5 + $0x60] sm:$0xf]
        %v573 = vld [vmem:[#allocation5 + $0x64] sm:$0xf]
        %v574 = vld [vmem:[#allocation5 + $0x68] sm:$0xf]
        %v575 = vld [vmem:[#allocation5 + $0x6c] sm:$0xf]
        %v576 = vld [vmem:[#allocation5 + $0x70] sm:$0xf]
        %v577 = vld [vmem:[#allocation5 + $0x74] sm:$0xf]
        %v578 = vld [vmem:[#allocation5 + $0x78] sm:$0xf]
        %v579 = vld [vmem:[#allocation5 + $0x7c] sm:$0xf]
        %v580 = vld [vmem:[#allocation5 + $0x80] sm:$0xf]
        %v581 = vld [vmem:[#allocation5 + $0x84] sm:$0xf]
        %v582 = vld [vmem:[#allocation5 + $0x88] sm:$0xf]
        %v583 = vld [vmem:[#allocation5 + $0x8c] sm:$0xf]
        %v584 = vld [vmem:[#allocation5 + $0x90] sm:$0xf]
        %v585 = vld [vmem:[#allocation5 + $0x94] sm:$0xf]
        %v586 = vld [vmem:[#allocation5 + $0x98] sm:$0xf]
        %v587 = vld [vmem:[#allocation5 + $0x9c] sm:$0xf]
        %v588 = vld [vmem:[#allocation5 + $0xa0] sm:$0xf]
        %v589 = vld [vmem:[#allocation5 + $0xa4] sm:$0xf]
        %v590 = vld [vmem:[#allocation5 + $0xa8] sm:$0xf]
        %v591 = vld [vmem:[#allocation5 + $0xac] sm:$0xf]
        %v592 = vld [vmem:[#allocation5 + $0xb0] sm:$0xf]
        %v593 = vld [vmem:[#allocation5 + $0xb4] sm:$0xf]
        %v594 = vld [vmem:[#allocation5 + $0xb8] sm:$0xf]
        %v595 = vld [vmem:[#allocation5 + $0xbc] sm:$0xf]
        %s596 = scalar_lea.vmem [#allocation3], 48
        %v597 = vld [vmem:[%s596] sm:$0xff]
        %v598 = vld [vmem:[%s596 + $0x8] sm:$0xff]
        %v599 = vld [vmem:[%s596 + $0x10] sm:$0xff]
        %v600 = vld [vmem:[%s596 + $0x18] sm:$0xff]
        %v601 = vld [vmem:[%s596 + $0x20] sm:$0xff]
        %v602 = vld [vmem:[%s596 + $0x28] sm:$0xff]
        %v603 = vld [vmem:[%s596 + $0x30] sm:$0xff]
        %v604 = vld [vmem:[%s596 + $0x38] sm:$0xff]
        %v605 = vld [vmem:[%s596 + $0x40] sm:$0xff]
        %v606 = vld [vmem:[%s596 + $0x48] sm:$0xff]
        %v607 = vld [vmem:[%s596 + $0x50] sm:$0xff]
        %v608 = vld [vmem:[%s596 + $0x58] sm:$0xff]
        %v609 = vld [vmem:[%s596 + $0x60] sm:$0xff]
        %v610 = vld [vmem:[%s596 + $0x68] sm:$0xff]
        %v611 = vld [vmem:[%s596 + $0x70] sm:$0xff]
        %v612 = vld [vmem:[%s596 + $0x78] sm:$0xff]
        %v613 = vld [vmem:[%s596 + $0x80] sm:$0xff]
        %v614 = vld [vmem:[%s596 + $0x88] sm:$0xff]
        %v615 = vld [vmem:[%s596 + $0x90] sm:$0xff]
        %v616 = vld [vmem:[%s596 + $0x98] sm:$0xff]
        %v617 = vld [vmem:[%s596 + $0xa0] sm:$0xff]
        %v618 = vld [vmem:[%s596 + $0xa8] sm:$0xff]
        %v619 = vld [vmem:[%s596 + $0xb0] sm:$0xff]
        %v620 = vld [vmem:[%s596 + $0xb8] sm:$0xff]
        %v621 = vld [vmem:[%s596 + $0xc0] sm:$0xff]
        %v622 = vld [vmem:[%s596 + $0xc8] sm:$0xff]
        %v623 = vld [vmem:[%s596 + $0xd0] sm:$0xff]
        %v624 = vld [vmem:[%s596 + $0xd8] sm:$0xff]
        %v625 = vld [vmem:[%s596 + $0xe0] sm:$0xff]
        %v626 = vld [vmem:[%s596 + $0xe8] sm:$0xff]
        %v627 = vld [vmem:[%s596 + $0xf0] sm:$0xff]
        %v628 = vld [vmem:[%s596 + $0xf8] sm:$0xff]
        %v629 = vld [vmem:[%s596 + $0x100] sm:$0xff]
        %v630 = vld [vmem:[%s596 + $0x108] sm:$0xff]
        %v631 = vld [vmem:[%s596 + $0x110] sm:$0xff]
        %v632 = vld [vmem:[%s596 + $0x118] sm:$0xff]
        %s633 = scalar_lea.vmem [#allocation5], 192
        %v634 = vld [vmem:[%s633] sm:$0xf]
        %v635 = vld [vmem:[%s633 + $0x4] sm:$0xf]
        %v636 = vld [vmem:[%s633 + $0x8] sm:$0xf]
        %v637 = vld [vmem:[%s633 + $0xc] sm:$0xf]
        %v638 = vld [vmem:[%s633 + $0x10] sm:$0xf]
        %v639 = vld [vmem:[%s633 + $0x14] sm:$0xf]
        %v640 = vld [vmem:[%s633 + $0x18] sm:$0xf]
        %v641 = vld [vmem:[%s633 + $0x1c] sm:$0xf]
        %v642 = vld [vmem:[%s633 + $0x20] sm:$0xf]
        %v643 = vld [vmem:[%s633 + $0x24] sm:$0xf]
        %v644 = vld [vmem:[%s633 + $0x28] sm:$0xf]
        %v645 = vld [vmem:[%s633 + $0x2c] sm:$0xf]
        %v646 = vld [vmem:[%s633 + $0x30] sm:$0xf]
        %v647 = vld [vmem:[%s633 + $0x34] sm:$0xf]
        %v648 = vld [vmem:[%s633 + $0x38] sm:$0xf]
        %v649 = vld [vmem:[%s633 + $0x3c] sm:$0xf]
        %v650 = vld [vmem:[%s633 + $0x40] sm:$0xf]
        %v651 = vld [vmem:[%s633 + $0x44] sm:$0xf]
        %v652 = vld [vmem:[%s633 + $0x48] sm:$0xf]
        %v653 = vld [vmem:[%s633 + $0x4c] sm:$0xf]
        %v654 = vld [vmem:[%s633 + $0x50] sm:$0xf]
        %v655 = vld [vmem:[%s633 + $0x54] sm:$0xf]
        %v656 = vld [vmem:[%s633 + $0x58] sm:$0xf]
        %v657 = vld [vmem:[%s633 + $0x5c] sm:$0xf]
        %v658 = vld [vmem:[%s633 + $0x60] sm:$0xf]
        %v659 = vld [vmem:[%s633 + $0x64] sm:$0xf]
        %v660 = vld [vmem:[%s633 + $0x68] sm:$0xf]
        %v661 = vld [vmem:[%s633 + $0x6c] sm:$0xf]
        %v662 = vld [vmem:[%s633 + $0x70] sm:$0xf]
        %v663 = vld [vmem:[%s633 + $0x74] sm:$0xf]
        %v664 = vld [vmem:[%s633 + $0x78] sm:$0xf]
        %v665 = vld [vmem:[%s633 + $0x7c] sm:$0xf]
        %v666 = vld [vmem:[%s633 + $0x80] sm:$0xf]
        %v667 = vld [vmem:[%s633 + $0x84] sm:$0xf]
        %v668 = vld [vmem:[%s633 + $0x88] sm:$0xf]
        %v669 = vld [vmem:[%s633 + $0x8c] sm:$0xf]
        %v670 = vld [vmem:[%s633 + $0x90] sm:$0xf]
        %v671 = vld [vmem:[%s633 + $0x94] sm:$0xf]
        %v672 = vld [vmem:[%s633 + $0x98] sm:$0xf]
        %v673 = vld [vmem:[%s633 + $0x9c] sm:$0xf]
        %v674 = vld [vmem:[%s633 + $0xa0] sm:$0xf]
        %v675 = vld [vmem:[%s633 + $0xa4] sm:$0xf]
        %v676 = vld [vmem:[%s633 + $0xa8] sm:$0xf]
        %v677 = vld [vmem:[%s633 + $0xac] sm:$0xf]
        %v678 = vld [vmem:[%s633 + $0xb0] sm:$0xf]
        %v679 = vld [vmem:[%s633 + $0xb4] sm:$0xf]
        %v680 = vld [vmem:[%s633 + $0xb8] sm:$0xf]
        %v681 = vld [vmem:[%s633 + $0xbc] sm:$0xf]
        %v730 = vunpack.c.l.b16 %v634
        %v731 = vunpack.c.l.b16 %v635
        %v732 = vunpack.c.l.b16 %v636
        %v733 = vunpack.c.l.b16 %v637
        %v734 = vunpack.c.l.b16 %v638
        %v735 = vunpack.c.l.b16 %v639
        %v736 = vunpack.c.l.b16 %v640
        %v737 = vunpack.c.l.b16 %v641
        %v738 = vunpack.c.l.b16 %v642
        %v739 = vunpack.c.l.b16 %v643
        %v740 = vunpack.c.l.b16 %v644
        %v741 = vunpack.c.l.b16 %v645
        %v742 = vunpack.c.l.b16 %v646
        %v743 = vunpack.c.l.b16 %v647
        %v744 = vunpack.c.l.b16 %v648
        %v745 = vunpack.c.l.b16 %v649
        %v746 = vunpack.c.l.b16 %v650
        %v747 = vunpack.c.l.b16 %v651
        %v748 = vunpack.c.l.b16 %v652
        %v749 = vunpack.c.l.b16 %v653
        %v750 = vunpack.c.l.b16 %v654
        %v751 = vunpack.c.l.b16 %v655
        %v752 = vunpack.c.l.b16 %v656
        %v753 = vunpack.c.l.b16 %v657
        %v754 = vunpack.c.l.b16 %v658
        %v755 = vunpack.c.l.b16 %v659
        %v756 = vunpack.c.l.b16 %v660
        %v757 = vunpack.c.l.b16 %v661
        %v758 = vunpack.c.l.b16 %v662
        %v759 = vunpack.c.l.b16 %v663
        %v760 = vunpack.c.l.b16 %v664
        %v761 = vunpack.c.l.b16 %v665
        %v762 = vunpack.c.l.b16 %v666
        %v763 = vunpack.c.l.b16 %v667
        %v764 = vunpack.c.l.b16 %v668
        %v765 = vunpack.c.l.b16 %v669
        %v766 = vunpack.c.l.b16 %v670
        %v767 = vunpack.c.l.b16 %v671
        %v768 = vunpack.c.l.b16 %v672
        %v769 = vunpack.c.l.b16 %v673
        %v770 = vunpack.c.l.b16 %v674
        %v771 = vunpack.c.l.b16 %v675
        %v772 = vunpack.c.l.b16 %v676
        %v773 = vunpack.c.l.b16 %v677
        %v774 = vunpack.c.l.b16 %v678
        %v775 = vunpack.c.l.b16 %v679
        %v776 = vunpack.c.l.b16 %v680
        %v777 = vunpack.c.l.b16 %v681
        %v778 = vpack.c.b16 %v731, %v730
        %v779 = vpack.c.b16 %v733, %v732
        %v780 = vpack.c.b16 %v735, %v734
        %v781 = vpack.c.b16 %v737, %v736
        %v782 = vpack.c.b16 %v739, %v738
        %v783 = vpack.c.b16 %v741, %v740
        %v784 = vpack.c.b16 %v743, %v742
        %v785 = vpack.c.b16 %v745, %v744
        %v786 = vpack.c.b16 %v747, %v746
        %v787 = vpack.c.b16 %v749, %v748
        %v788 = vpack.c.b16 %v751, %v750
        %v789 = vpack.c.b16 %v753, %v752
        %v790 = vpack.c.b16 %v755, %v754
        %v791 = vpack.c.b16 %v757, %v756
        %v792 = vpack.c.b16 %v759, %v758
        %v793 = vpack.c.b16 %v761, %v760
        %v794 = vpack.c.b16 %v763, %v762
        %v795 = vpack.c.b16 %v765, %v764
        %v796 = vpack.c.b16 %v767, %v766
        %v797 = vpack.c.b16 %v769, %v768
        %v798 = vpack.c.b16 %v771, %v770
        %v799 = vpack.c.b16 %v773, %v772
        %v800 = vpack.c.b16 %v775, %v774
        %v801 = vpack.c.b16 %v777, %v776
        %826 = vmatprep.subr.bf16.mxu0 0
        %827 = vmatpush1.bf16.msra.mxu0 %v778
        %828 = vmatprep.subr.bf16.mxu0 0
        %829 = vmatpush1.bf16.msra.mxu0 %v779
        %830 = vmatprep.subr.bf16.mxu0 0
        %831 = vmatpush1.bf16.msra.mxu0 %v780
        %832 = vmatprep.subr.bf16.mxu0 0
        %833 = vmatpush1.bf16.msra.mxu0 %v781
        %834 = vmatprep.subr.bf16.mxu0 0
        %835 = vmatpush1.bf16.msra.mxu0 %v782
        %836 = vmatprep.subr.bf16.mxu0 0
        %837 = vmatpush1.bf16.msra.mxu0 %v783
        %838 = vmatprep.subr.bf16.mxu0 0
        %839 = vmatpush1.bf16.msra.mxu0 %v784
        %840 = vmatprep.subr.bf16.mxu0 0
        %841 = vmatpush1.bf16.msra.mxu0 %v785
        %842 = vmatprep.subr.bf16.mxu0 0
        %843 = vmatpush1.bf16.msra.mxu0 %v786
        %844 = vmatprep.subr.bf16.mxu0 0
        %845 = vmatpush1.bf16.msra.mxu0 %v787
        %846 = vmatprep.subr.bf16.mxu0 0
        %847 = vmatpush1.bf16.msra.mxu0 %v788
        %848 = vmatprep.subr.bf16.mxu0 0
        %849 = vmatpush1.bf16.msra.mxu0 %v789
        %850 = vmatprep.subr.bf16.mxu0 0
        %851 = vmatpush1.bf16.msra.mxu0 %v790
        %852 = vmatprep.subr.bf16.mxu0 0
        %853 = vmatpush1.bf16.msra.mxu0 %v791
        %854 = vmatprep.subr.bf16.mxu0 0
        %855 = vmatpush1.bf16.msra.mxu0 %v792
        %856 = vmatprep.subr.bf16.mxu0 0
        %857 = vmatpush1.bf16.msra.mxu0 %v793
        %858 = vmatprep.mubr.bf16.mxu0 %v598
        %859 = vmatmul.mubr.bf16.gmra.mrb[0].mxu0 %v597
        %v860 = vpop.f32.mrb[0].mxu0
        %v861 = vadd.f32 0.0, %v860
        %v862 = vpop.f32.mrb[0].mxu0
        %v863 = vpop.f32.mrb[0].mxu0
        %v864 = vadd.f32 0.0, %v863
        %v865 = vpop.f32.mrb[0].mxu0
        %866 = vmatprep.mubr.bf16.mxu0 %v601
        %867 = vmatmul.mubr.bf16.gmra.mrb[0].mxu0 %v600
        %v868 = vpop.f32.mrb[0].mxu0
        %v869 = vadd.f32 0.0, %v868
        %v870 = vpop.f32.mrb[0].mxu0
        %v871 = vpop.f32.mrb[0].mxu0
        %v872 = vpop.f32.mrb[0].mxu0
        %873 = vmatprep.mubr.bf16.mxu0 %v604
        %874 = vmatmul.mubr.bf16.gmra.mrb[0].mxu0 %v603
        %v875 = vpop.f32.mrb[0].mxu0
        %v876 = vadd.f32 0.0, %v875
        %v877 = vpop.f32.mrb[0].mxu0
        %v878 = vpop.f32.mrb[0].mxu0
        %v879 = vadd.f32 0.0, %v878
        %v880 = vpop.f32.mrb[0].mxu0
        %881 = vmatprep.mubr.bf16.mxu0 %v607
        %882 = vmatmul.mubr.bf16.gmra.mrb[0].mxu0 %v606
        %v883 = vpop.f32.mrb[0].mxu0
        %v884 = vadd.f32 0.0, %v883
        %v885 = vpop.f32.mrb[0].mxu0
        %v886 = vpop.f32.mrb[0].mxu0
        %v887 = vpop.f32.mrb[0].mxu0
        %888 = vmatprep.mubr.bf16.mxu0 %v610
        %889 = vmatmul.mubr.bf16.gmra.mrb[0].mxu0 %v609
        %v890 = vpop.f32.mrb[0].mxu0
        %v891 = vadd.f32 0.0, %v890
        %v892 = vpop.f32.mrb[0].mxu0
        %v893 = vpop.f32.mrb[0].mxu0
        %v894 = vadd.f32 0.0, %v893
        %v895 = vpop.f32.mrb[0].mxu0
        %896 = vmatprep.mubr.bf16.mxu0 %v613
        %897 = vmatmul.mubr.bf16.gmra.mrb[0].mxu0 %v612
        %v898 = vpop.f32.mrb[0].mxu0
        %v899 = vadd.f32 0.0, %v898
        %v900 = vpop.f32.mrb[0].mxu0
        %v901 = vpop.f32.mrb[0].mxu0
        %v902 = vpop.f32.mrb[0].mxu0
        %903 = vmatprep.mubr.bf16.mxu0 %v616
        %904 = vmatmul.mubr.bf16.gmra.mrb[0].mxu0 %v615
        %v905 = vpop.f32.mrb[0].mxu0
        %v906 = vadd.f32 0.0, %v905
        %v907 = vpop.f32.mrb[0].mxu0
        %v908 = vpop.f32.mrb[0].mxu0
        %v909 = vadd.f32 0.0, %v908
        %v910 = vpop.f32.mrb[0].mxu0
        %911 = vmatprep.mubr.bf16.mxu0 %v619
        %912 = vmatmul.mubr.bf16.gmra.mrb[0].mxu0 %v618
        %v913 = vpop.f32.mrb[0].mxu0
        %v914 = vadd.f32 0.0, %v913
        %v915 = vpop.f32.mrb[0].mxu0
        %v916 = vpop.f32.mrb[0].mxu0
        %v917 = vpop.f32.mrb[0].mxu0
        %918 = vmatprep.mubr.bf16.mxu0 %v622
        %919 = vmatmul.mubr.bf16.gmra.mrb[0].mxu0 %v621
        %v920 = vpop.f32.mrb[0].mxu0
        %v921 = vadd.f32 0.0, %v920
        %v922 = vpop.f32.mrb[0].mxu0
        %v923 = vpop.f32.mrb[0].mxu0
        %v924 = vadd.f32 0.0, %v923
        %v925 = vpop.f32.mrb[0].mxu0
        %926 = vmatprep.mubr.bf16.mxu0 %v625
        %927 = vmatmul.mubr.bf16.gmra.mrb[0].mxu0 %v624
        %v928 = vpop.f32.mrb[0].mxu0
        %v929 = vadd.f32 0.0, %v928
        %v930 = vpop.f32.mrb[0].mxu0
        %v931 = vpop.f32.mrb[0].mxu0
        %v932 = vpop.f32.mrb[0].mxu0
        %933 = vmatprep.mubr.bf16.mxu0 %v628
        %934 = vmatmul.mubr.bf16.gmra.mrb[0].mxu0 %v627
        %v935 = vpop.f32.mrb[0].mxu0
        %v936 = vadd.f32 0.0, %v935
        %v937 = vpop.f32.mrb[0].mxu0
        %v938 = vpop.f32.mrb[0].mxu0
        %v939 = vadd.f32 0.0, %v938
        %v940 = vpop.f32.mrb[0].mxu0
        %941 = vmatprep.mubr.bf16.mxu0 %v631
        %942 = vmatmul.mubr.bf16.gmra.mrb[0].mxu0 %v630
        %v943 = vpop.f32.mrb[0].mxu0
        %v944 = vadd.f32 0.0, %v943
        %v945 = vpop.f32.mrb[0].mxu0
        %v946 = vpop.f32.mrb[0].mxu0
        %v947 = vpop.f32.mrb[0].mxu0
        %948 = vdwg.mxu0
        %949 = vmatprep.subr.bf16.mxu0 0
        %950 = vmatpush1.bf16.msra.mxu0 %v794
        %951 = vmatprep.subr.bf16.mxu0 0
        %952 = vmatpush1.bf16.msra.mxu0 %v795
        %953 = vmatprep.subr.bf16.mxu0 0
        %954 = vmatpush1.bf16.msra.mxu0 %v796
        %955 = vmatprep.subr.bf16.mxu0 0
        %956 = vmatpush1.bf16.msra.mxu0 %v797
        %957 = vmatprep.subr.bf16.mxu0 0
        %958 = vmatpush1.bf16.msra.mxu0 %v798
        %959 = vmatprep.subr.bf16.mxu0 0
        %960 = vmatpush1.bf16.msra.mxu0 %v799
        %961 = vmatprep.subr.bf16.mxu0 0
        %962 = vmatpush1.bf16.msra.mxu0 %v800
        %963 = vmatprep.subr.bf16.mxu0 0
        %964 = vmatpush1.bf16.msra.mxu0 %v801
        %965 = vmatprep.subr.bf16.mxu0 0
        %966 = vmatpush1.bf16.msra.mxu0 0
        %967 = vmatprep.subr.bf16.mxu0 0
        %968 = vmatpush1.bf16.msra.mxu0 0
        %969 = vmatprep.subr.bf16.mxu0 0
        %970 = vmatpush1.bf16.msra.mxu0 0
        %971 = vmatprep.subr.bf16.mxu0 0
        %972 = vmatpush1.bf16.msra.mxu0 0
        %973 = vmatprep.subr.bf16.mxu0 0
        %974 = vmatpush1.bf16.msra.mxu0 0
        %975 = vmatprep.subr.bf16.mxu0 0
        %976 = vmatpush1.bf16.msra.mxu0 0
        %977 = vmatprep.subr.bf16.mxu0 0
        %978 = vmatpush1.bf16.msra.mxu0 0
        %979 = vmatprep.subr.bf16.mxu0 0
        %980 = vmatpush1.bf16.msra.mxu0 0
        %981 = vmatprep.mubr.bf16.mxu0 0
        %982 = vmatmul.mubr.bf16.gmra.mrb[0].mxu0 %v599
        %v983 = vpop.f32.mrb[0].mxu0
        %v984 = vadd.f32 %v861, %v983
        %v985 = vpop.f32.mrb[0].mxu0
        %v986 = vpop.f32.mrb[0].mxu0
        %v987 = vadd.f32 %v864, %v986
        %v988 = vpop.f32.mrb[0].mxu0
        %989 = vmatprep.mubr.bf16.mxu0 0
        %990 = vmatmul.mubr.bf16.gmra.mrb[0].mxu0 %v602
        %v991 = vpop.f32.mrb[0].mxu0
        %v992 = vadd.f32 %v869, %v991
        %v993 = vpop.f32.mrb[0].mxu0
        %v994 = vpop.f32.mrb[0].mxu0
        %v995 = vpop.f32.mrb[0].mxu0
        %996 = vmatprep.mubr.bf16.mxu0 0
        %997 = vmatmul.mubr.bf16.gmra.mrb[0].mxu0 %v605
        %v998 = vpop.f32.mrb[0].mxu0
        %v999 = vadd.f32 %v876, %v998
        %v1000 = vpop.f32.mrb[0].mxu0
        %v1001 = vpop.f32.mrb[0].mxu0
        %v1002 = vadd.f32 %v879, %v1001
        %v1003 = vpop.f32.mrb[0].mxu0
        %1004 = vmatprep.mubr.bf16.mxu0 0
        %1005 = vmatmul.mubr.bf16.gmra.mrb[0].mxu0 %v608
        %v1006 = vpop.f32.mrb[0].mxu0
        %v1007 = vadd.f32 %v884, %v1006
        %v1008 = vpop.f32.mrb[0].mxu0
        %v1009 = vpop.f32.mrb[0].mxu0
        %v1010 = vpop.f32.mrb[0].mxu0
        %1011 = vmatprep.mubr.bf16.mxu0 0
        %1012 = vmatmul.mubr.bf16.gmra.mrb[0].mxu0 %v611
        %v1013 = vpop.f32.mrb[0].mxu0
        %v1014 = vadd.f32 %v891, %v1013
        %v1015 = vpop.f32.mrb[0].mxu0
        %v1016 = vpop.f32.mrb[0].mxu0
        %v1017 = vadd.f32 %v894, %v1016
        %v1018 = vpop.f32.mrb[0].mxu0
        %1019 = vmatprep.mubr.bf16.mxu0 0
        %1020 = vmatmul.mubr.bf16.gmra.mrb[0].mxu0 %v614
        %v1021 = vpop.f32.mrb[0].mxu0
        %v1022 = vadd.f32 %v899, %v1021
        %v1023 = vpop.f32.mrb[0].mxu0
        %v1024 = vpop.f32.mrb[0].mxu0
        %v1025 = vpop.f32.mrb[0].mxu0
        %1026 = vmatprep.mubr.bf16.mxu0 0
        %1027 = vmatmul.mubr.bf16.gmra.mrb[0].mxu0 %v617
        %v1028 = vpop.f32.mrb[0].mxu0
        %v1029 = vadd.f32 %v906, %v1028
        %v1030 = vpop.f32.mrb[0].mxu0
        %v1031 = vpop.f32.mrb[0].mxu0
        %v1032 = vadd.f32 %v909, %v1031
        %v1033 = vpop.f32.mrb[0].mxu0
        %1034 = vmatprep.mubr.bf16.mxu0 0
        %1035 = vmatmul.mubr.bf16.gmra.mrb[0].mxu0 %v620
        %v1036 = vpop.f32.mrb[0].mxu0
        %v1037 = vadd.f32 %v914, %v1036
        %v1038 = vpop.f32.mrb[0].mxu0
        %v1039 = vpop.f32.mrb[0].mxu0
        %v1040 = vpop.f32.mrb[0].mxu0
        %1041 = vmatprep.mubr.bf16.mxu0 0
        %1042 = vmatmul.mubr.bf16.gmra.mrb[0].mxu0 %v623
        %v1043 = vpop.f32.mrb[0].mxu0
        %v1044 = vadd.f32 %v921, %v1043
        %v1045 = vpop.f32.mrb[0].mxu0
        %v1046 = vpop.f32.mrb[0].mxu0
        %v1047 = vadd.f32 %v924, %v1046
        %v1048 = vpop.f32.mrb[0].mxu0
        %1049 = vmatprep.mubr.bf16.mxu0 0
        %1050 = vmatmul.mubr.bf16.gmra.mrb[0].mxu0 %v626
        %v1051 = vpop.f32.mrb[0].mxu0
        %v1052 = vadd.f32 %v929, %v1051
        %v1053 = vpop.f32.mrb[0].mxu0
        %v1054 = vpop.f32.mrb[0].mxu0
        %v1055 = vpop.f32.mrb[0].mxu0
        %1056 = vmatprep.mubr.bf16.mxu0 0
        %1057 = vmatmul.mubr.bf16.gmra.mrb[0].mxu0 %v629
        %v1058 = vpop.f32.mrb[0].mxu0
        %v1059 = vadd.f32 %v936, %v1058
        %v1060 = vpop.f32.mrb[0].mxu0
        %v1061 = vpop.f32.mrb[0].mxu0
        %v1062 = vadd.f32 %v939, %v1061
        %v1063 = vpop.f32.mrb[0].mxu0
        %1064 = vmatprep.mubr.bf16.mxu0 0
        %1065 = vmatmul.mubr.bf16.gmra.mrb[0].mxu0 %v632
        %v1066 = vpop.f32.mrb[0].mxu0
        %v1067 = vadd.f32 %v944, %v1066
        %v1068 = vpop.f32.mrb[0].mxu0
        %v1069 = vpop.f32.mrb[0].mxu0
        %v1070 = vpop.f32.mrb[0].mxu0
        %1071 = vdwg.mxu0
        %v1120 = vunpack.c.l.b16 %v548
        %v1121 = vunpack.c.l.b16 %v549
        %v1122 = vunpack.c.l.b16 %v550
        %v1123 = vunpack.c.l.b16 %v551
        %v1124 = vunpack.c.l.b16 %v552
        %v1125 = vunpack.c.l.b16 %v553
        %v1126 = vunpack.c.l.b16 %v554
        %v1127 = vunpack.c.l.b16 %v555
        %v1128 = vunpack.c.l.b16 %v556
        %v1129 = vunpack.c.l.b16 %v557
        %v1130 = vunpack.c.l.b16 %v558
        %v1131 = vunpack.c.l.b16 %v559
        %v1132 = vunpack.c.l.b16 %v560
        %v1133 = vunpack.c.l.b16 %v561
        %v1134 = vunpack.c.l.b16 %v562
        %v1135 = vunpack.c.l.b16 %v563
        %v1136 = vunpack.c.l.b16 %v564
        %v1137 = vunpack.c.l.b16 %v565
        %v1138 = vunpack.c.l.b16 %v566
        %v1139 = vunpack.c.l.b16 %v567
        %v1140 = vunpack.c.l.b16 %v568
        %v1141 = vunpack.c.l.b16 %v569
        %v1142 = vunpack.c.l.b16 %v570
        %v1143 = vunpack.c.l.b16 %v571
        %v1144 = vunpack.c.l.b16 %v572
        %v1145 = vunpack.c.l.b16 %v573
        %v1146 = vunpack.c.l.b16 %v574
        %v1147 = vunpack.c.l.b16 %v575
        %v1148 = vunpack.c.l.b16 %v576
        %v1149 = vunpack.c.l.b16 %v577
        %v1150 = vunpack.c.l.b16 %v578
        %v1151 = vunpack.c.l.b16 %v579
        %v1152 = vunpack.c.l.b16 %v580
        %v1153 = vunpack.c.l.b16 %v581
        %v1154 = vunpack.c.l.b16 %v582
        %v1155 = vunpack.c.l.b16 %v583
        %v1156 = vunpack.c.l.b16 %v584
        %v1157 = vunpack.c.l.b16 %v585
        %v1158 = vunpack.c.l.b16 %v586
        %v1159 = vunpack.c.l.b16 %v587
        %v1160 = vunpack.c.l.b16 %v588
        %v1161 = vunpack.c.l.b16 %v589
        %v1162 = vunpack.c.l.b16 %v590
        %v1163 = vunpack.c.l.b16 %v591
        %v1164 = vunpack.c.l.b16 %v592
        %v1165 = vunpack.c.l.b16 %v593
        %v1166 = vunpack.c.l.b16 %v594
        %v1167 = vunpack.c.l.b16 %v595
        %v1168 = vpack.c.b16 %v1121, %v1120
        %v1169 = vpack.c.b16 %v1123, %v1122
        %v1170 = vpack.c.b16 %v1125, %v1124
        %v1171 = vpack.c.b16 %v1127, %v1126
        %v1172 = vpack.c.b16 %v1129, %v1128
        %v1173 = vpack.c.b16 %v1131, %v1130
        %v1174 = vpack.c.b16 %v1133, %v1132
        %v1175 = vpack.c.b16 %v1135, %v1134
        %v1176 = vpack.c.b16 %v1137, %v1136
        %v1177 = vpack.c.b16 %v1139, %v1138
        %v1178 = vpack.c.b16 %v1141, %v1140
        %v1179 = vpack.c.b16 %v1143, %v1142
        %v1180 = vpack.c.b16 %v1145, %v1144
        %v1181 = vpack.c.b16 %v1147, %v1146
        %v1182 = vpack.c.b16 %v1149, %v1148
        %v1183 = vpack.c.b16 %v1151, %v1150
        %v1184 = vpack.c.b16 %v1153, %v1152
        %v1185 = vpack.c.b16 %v1155, %v1154
        %v1186 = vpack.c.b16 %v1157, %v1156
        %v1187 = vpack.c.b16 %v1159, %v1158
        %v1188 = vpack.c.b16 %v1161, %v1160
        %v1189 = vpack.c.b16 %v1163, %v1162
        %v1190 = vpack.c.b16 %v1165, %v1164
        %v1191 = vpack.c.b16 %v1167, %v1166
        %1216 = vmatprep.subr.bf16.mxu0 0
        %1217 = vmatpush1.bf16.msra.mxu0 %v1168
        %1218 = vmatprep.subr.bf16.mxu0 0
        %1219 = vmatpush1.bf16.msra.mxu0 %v1169
        %1220 = vmatprep.subr.bf16.mxu0 0
        %1221 = vmatpush1.bf16.msra.mxu0 %v1170
        %1222 = vmatprep.subr.bf16.mxu0 0
        %1223 = vmatpush1.bf16.msra.mxu0 %v1171
        %1224 = vmatprep.subr.bf16.mxu0 0
        %1225 = vmatpush1.bf16.msra.mxu0 %v1172
        %1226 = vmatprep.subr.bf16.mxu0 0
        %1227 = vmatpush1.bf16.msra.mxu0 %v1173
        %1228 = vmatprep.subr.bf16.mxu0 0
        %1229 = vmatpush1.bf16.msra.mxu0 %v1174
        %1230 = vmatprep.subr.bf16.mxu0 0
        %1231 = vmatpush1.bf16.msra.mxu0 %v1175
        %1232 = vmatprep.subr.bf16.mxu0 0
        %1233 = vmatpush1.bf16.msra.mxu0 %v1176
        %1234 = vmatprep.subr.bf16.mxu0 0
        %1235 = vmatpush1.bf16.msra.mxu0 %v1177
        %1236 = vmatprep.subr.bf16.mxu0 0
        %1237 = vmatpush1.bf16.msra.mxu0 %v1178
        %1238 = vmatprep.subr.bf16.mxu0 0
        %1239 = vmatpush1.bf16.msra.mxu0 %v1179
        %1240 = vmatprep.subr.bf16.mxu0 0
        %1241 = vmatpush1.bf16.msra.mxu0 %v1180
        %1242 = vmatprep.subr.bf16.mxu0 0
        %1243 = vmatpush1.bf16.msra.mxu0 %v1181
        %1244 = vmatprep.subr.bf16.mxu0 0
        %1245 = vmatpush1.bf16.msra.mxu0 %v1182
        %1246 = vmatprep.subr.bf16.mxu0 0
        %1247 = vmatpush1.bf16.msra.mxu0 %v1183
        %1248 = vmatprep.mubr.bf16.mxu0 %v513
        %1249 = vmatmul.mubr.bf16.gmra.mrb[0].mxu0 %v512
        %v1250 = vpop.f32.mrb[0].mxu0
        %v1251 = vadd.f32 %v984, %v1250
        %v1252 = vpop.f32.mrb[0].mxu0
        %v1253 = vpop.f32.mrb[0].mxu0
        %v1254 = vadd.f32 %v987, %v1253
        %v1255 = vpop.f32.mrb[0].mxu0
        %1256 = vmatprep.mubr.bf16.mxu0 %v516
        %1257 = vmatmul.mubr.bf16.gmra.mrb[0].mxu0 %v515
        %v1258 = vpop.f32.mrb[0].mxu0
        %v1259 = vadd.f32 %v992, %v1258
        %v1260 = vpop.f32.mrb[0].mxu0
        %v1261 = vpop.f32.mrb[0].mxu0
        %v1262 = vpop.f32.mrb[0].mxu0
        %1263 = vmatprep.mubr.bf16.mxu0 %v519
        %1264 = vmatmul.mubr.bf16.gmra.mrb[0].mxu0 %v518
        %v1265 = vpop.f32.mrb[0].mxu0
        %v1266 = vadd.f32 %v999, %v1265
        %v1267 = vpop.f32.mrb[0].mxu0
        %v1268 = vpop.f32.mrb[0].mxu0
        %v1269 = vadd.f32 %v1002, %v1268
        %v1270 = vpop.f32.mrb[0].mxu0
        %1271 = vmatprep.mubr.bf16.mxu0 %v522
        %1272 = vmatmul.mubr.bf16.gmra.mrb[0].mxu0 %v521
        %v1273 = vpop.f32.mrb[0].mxu0
        %v1274 = vadd.f32 %v1007, %v1273
        %v1275 = vpop.f32.mrb[0].mxu0
        %v1276 = vpop.f32.mrb[0].mxu0
        %v1277 = vpop.f32.mrb[0].mxu0
        %1278 = vmatprep.mubr.bf16.mxu0 %v525
        %1279 = vmatmul.mubr.bf16.gmra.mrb[0].mxu0 %v524
        %v1280 = vpop.f32.mrb[0].mxu0
        %v1281 = vadd.f32 %v1014, %v1280
        %v1282 = vpop.f32.mrb[0].mxu0
        %v1283 = vpop.f32.mrb[0].mxu0
        %v1284 = vadd.f32 %v1017, %v1283
        %v1285 = vpop.f32.mrb[0].mxu0
        %1286 = vmatprep.mubr.bf16.mxu0 %v528
        %1287 = vmatmul.mubr.bf16.gmra.mrb[0].mxu0 %v527
        %v1288 = vpop.f32.mrb[0].mxu0
        %v1289 = vadd.f32 %v1022, %v1288
        %v1290 = vpop.f32.mrb[0].mxu0
        %v1291 = vpop.f32.mrb[0].mxu0
        %v1292 = vpop.f32.mrb[0].mxu0
        %1293 = vmatprep.mubr.bf16.mxu0 %v531
        %1294 = vmatmul.mubr.bf16.gmra.mrb[0].mxu0 %v530
        %v1295 = vpop.f32.mrb[0].mxu0
        %v1296 = vadd.f32 %v1029, %v1295
        %v1297 = vpop.f32.mrb[0].mxu0
        %v1298 = vpop.f32.mrb[0].mxu0
        %v1299 = vadd.f32 %v1032, %v1298
        %v1300 = vpop.f32.mrb[0].mxu0
        %1301 = vmatprep.mubr.bf16.mxu0 %v534
        %1302 = vmatmul.mubr.bf16.gmra.mrb[0].mxu0 %v533
        %v1303 = vpop.f32.mrb[0].mxu0
        %v1304 = vadd.f32 %v1037, %v1303
        %v1305 = vpop.f32.mrb[0].mxu0
        %v1306 = vpop.f32.mrb[0].mxu0
        %v1307 = vpop.f32.mrb[0].mxu0
        %1308 = vmatprep.mubr.bf16.mxu0 %v537
        %1309 = vmatmul.mubr.bf16.gmra.mrb[0].mxu0 %v536
        %v1310 = vpop.f32.mrb[0].mxu0
        %v1311 = vadd.f32 %v1044, %v1310
        %v1312 = vpop.f32.mrb[0].mxu0
        %v1313 = vpop.f32.mrb[0].mxu0
        %v1314 = vadd.f32 %v1047, %v1313
        %v1315 = vpop.f32.mrb[0].mxu0
        %1316 = vmatprep.mubr.bf16.mxu0 %v540
        %1317 = vmatmul.mubr.bf16.gmra.mrb[0].mxu0 %v539
        %v1318 = vpop.f32.mrb[0].mxu0
        %v1319 = vadd.f32 %v1052, %v1318
        %v1320 = vpop.f32.mrb[0].mxu0
        %v1321 = vpop.f32.mrb[0].mxu0
        %v1322 = vpop.f32.mrb[0].mxu0
        %1323 = vmatprep.mubr.bf16.mxu0 %v543
        %1324 = vmatmul.mubr.bf16.gmra.mrb[0].mxu0 %v542
        %v1325 = vpop.f32.mrb[0].mxu0
        %v1326 = vadd.f32 %v1059, %v1325
        %v1327 = vpop.f32.mrb[0].mxu0
        %v1328 = vpop.f32.mrb[0].mxu0
        %v1329 = vadd.f32 %v1062, %v1328
        %v1330 = vpop.f32.mrb[0].mxu0
        %1331 = vmatprep.mubr.bf16.mxu0 %v546
        %1332 = vmatmul.mubr.bf16.gmra.mrb[0].mxu0 %v545
        %v1333 = vpop.f32.mrb[0].mxu0
        %v1334 = vadd.f32 %v1067, %v1333
        %v1335 = vpop.f32.mrb[0].mxu0
        %v1336 = vpop.f32.mrb[0].mxu0
        %v1337 = vpop.f32.mrb[0].mxu0
        %1338 = vdwg.mxu0
        %1339 = vmatprep.subr.bf16.mxu0 0
        %1340 = vmatpush1.bf16.msra.mxu0 %v1184
        %1341 = vmatprep.subr.bf16.mxu0 0
        %1342 = vmatpush1.bf16.msra.mxu0 %v1185
        %1343 = vmatprep.subr.bf16.mxu0 0
        %1344 = vmatpush1.bf16.msra.mxu0 %v1186
        %1345 = vmatprep.subr.bf16.mxu0 0
        %1346 = vmatpush1.bf16.msra.mxu0 %v1187
        %1347 = vmatprep.subr.bf16.mxu0 0
        %1348 = vmatpush1.bf16.msra.mxu0 %v1188
        %1349 = vmatprep.subr.bf16.mxu0 0
        %1350 = vmatpush1.bf16.msra.mxu0 %v1189
        %1351 = vmatprep.subr.bf16.mxu0 0
        %1352 = vmatpush1.bf16.msra.mxu0 %v1190
        %1353 = vmatprep.subr.bf16.mxu0 0
        %1354 = vmatpush1.bf16.msra.mxu0 %v1191
        %1355 = vmatprep.subr.bf16.mxu0 0
        %1356 = vmatpush1.bf16.msra.mxu0 0
        %1357 = vmatprep.subr.bf16.mxu0 0
        %1358 = vmatpush1.bf16.msra.mxu0 0
        %1359 = vmatprep.subr.bf16.mxu0 0
        %1360 = vmatpush1.bf16.msra.mxu0 0
        %1361 = vmatprep.subr.bf16.mxu0 0
        %1362 = vmatpush1.bf16.msra.mxu0 0
        %1363 = vmatprep.subr.bf16.mxu0 0
        %1364 = vmatpush1.bf16.msra.mxu0 0
        %1365 = vmatprep.subr.bf16.mxu0 0
        %1366 = vmatpush1.bf16.msra.mxu0 0
        %1367 = vmatprep.subr.bf16.mxu0 0
        %1368 = vmatpush1.bf16.msra.mxu0 0
        %1369 = vmatprep.subr.bf16.mxu0 0
        %1370 = vmatpush1.bf16.msra.mxu0 0
        %1371 = vmatprep.mubr.bf16.mxu0 0
        %1372 = vmatmul.mubr.bf16.gmra.mrb[0].mxu0 %v514
        %v1373 = vpop.f32.mrb[0].mxu0
        %v1374 = vadd.f32 %v1251, %v1373
        %v1375 = vpop.f32.mrb[0].mxu0
        %v1376 = vpop.f32.mrb[0].mxu0
        %v1377 = vadd.f32 %v1254, %v1376
        %v1378 = vpop.f32.mrb[0].mxu0
        %1379 = vmatprep.mubr.bf16.mxu0 0
        %1380 = vmatmul.mubr.bf16.gmra.mrb[0].mxu0 %v517
        %v1381 = vpop.f32.mrb[0].mxu0
        %v1382 = vadd.f32 %v1259, %v1381
        %v1383 = vpop.f32.mrb[0].mxu0
        %v1384 = vpop.f32.mrb[0].mxu0
        %v1385 = vpop.f32.mrb[0].mxu0
        %1386 = vmatprep.mubr.bf16.mxu0 0
        %1387 = vmatmul.mubr.bf16.gmra.mrb[0].mxu0 %v520
        %v1388 = vpop.f32.mrb[0].mxu0
        %v1389 = vadd.f32 %v1266, %v1388
        %v1390 = vpop.f32.mrb[0].mxu0
        %v1391 = vpop.f32.mrb[0].mxu0
        %v1392 = vadd.f32 %v1269, %v1391
        %v1393 = vpop.f32.mrb[0].mxu0
        %1394 = vmatprep.mubr.bf16.mxu0 0
        %1395 = vmatmul.mubr.bf16.gmra.mrb[0].mxu0 %v523
        %v1396 = vpop.f32.mrb[0].mxu0
        %v1397 = vadd.f32 %v1274, %v1396
        %v1398 = vpop.f32.mrb[0].mxu0
        %v1399 = vpop.f32.mrb[0].mxu0
        %v1400 = vpop.f32.mrb[0].mxu0
        %1401 = vmatprep.mubr.bf16.mxu0 0
        %1402 = vmatmul.mubr.bf16.gmra.mrb[0].mxu0 %v526
        %v1403 = vpop.f32.mrb[0].mxu0
        %v1404 = vadd.f32 %v1281, %v1403
        %v1405 = vpop.f32.mrb[0].mxu0
        %v1406 = vpop.f32.mrb[0].mxu0
        %v1407 = vadd.f32 %v1284, %v1406
        %v1408 = vpop.f32.mrb[0].mxu0
        %1409 = vmatprep.mubr.bf16.mxu0 0
        %1410 = vmatmul.mubr.bf16.gmra.mrb[0].mxu0 %v529
        %v1411 = vpop.f32.mrb[0].mxu0
        %v1412 = vadd.f32 %v1289, %v1411
        %v1413 = vpop.f32.mrb[0].mxu0
        %v1414 = vpop.f32.mrb[0].mxu0
        %v1415 = vpop.f32.mrb[0].mxu0
        %1416 = vmatprep.mubr.bf16.mxu0 0
        %1417 = vmatmul.mubr.bf16.gmra.mrb[0].mxu0 %v532
        %v1418 = vpop.f32.mrb[0].mxu0
        %v1419 = vadd.f32 %v1296, %v1418
        %v1420 = vpop.f32.mrb[0].mxu0
        %v1421 = vpop.f32.mrb[0].mxu0
        %v1422 = vadd.f32 %v1299, %v1421
        %v1423 = vpop.f32.mrb[0].mxu0
        %1424 = vmatprep.mubr.bf16.mxu0 0
        %1425 = vmatmul.mubr.bf16.gmra.mrb[0].mxu0 %v535
        %v1426 = vpop.f32.mrb[0].mxu0
        %v1427 = vadd.f32 %v1304, %v1426
        %v1428 = vpop.f32.mrb[0].mxu0
        %v1429 = vpop.f32.mrb[0].mxu0
        %v1430 = vpop.f32.mrb[0].mxu0
        %1431 = vmatprep.mubr.bf16.mxu0 0
        %1432 = vmatmul.mubr.bf16.gmra.mrb[0].mxu0 %v538
        %v1433 = vpop.f32.mrb[0].mxu0
        %v1434 = vadd.f32 %v1311, %v1433
        %v1435 = vpop.f32.mrb[0].mxu0
        %v1436 = vpop.f32.mrb[0].mxu0
        %v1437 = vadd.f32 %v1314, %v1436
        %v1438 = vpop.f32.mrb[0].mxu0
        %1439 = vmatprep.mubr.bf16.mxu0 0
        %1440 = vmatmul.mubr.bf16.gmra.mrb[0].mxu0 %v541
        %v1441 = vpop.f32.mrb[0].mxu0
        %v1442 = vadd.f32 %v1319, %v1441
        %v1443 = vpop.f32.mrb[0].mxu0
        %v1444 = vpop.f32.mrb[0].mxu0
        %v1445 = vpop.f32.mrb[0].mxu0
        %1446 = vmatprep.mubr.bf16.mxu0 0
        %1447 = vmatmul.mubr.bf16.gmra.mrb[0].mxu0 %v544
        %v1448 = vpop.f32.mrb[0].mxu0
        %v1449 = vadd.f32 %v1326, %v1448
        %v1450 = vpop.f32.mrb[0].mxu0
        %v1451 = vpop.f32.mrb[0].mxu0
        %v1452 = vadd.f32 %v1329, %v1451
        %v1453 = vpop.f32.mrb[0].mxu0
        %1454 = vmatprep.mubr.bf16.mxu0 0
        %1455 = vmatmul.mubr.bf16.gmra.mrb[0].mxu0 %v547
        %v1456 = vpop.f32.mrb[0].mxu0
        %v1457 = vadd.f32 %v1334, %v1456
        %v1458 = vpop.f32.mrb[0].mxu0
        %v1459 = vpop.f32.mrb[0].mxu0
        %v1460 = vpop.f32.mrb[0].mxu0
        %1461 = vdwg.mxu0
        %s1462 = scalar_lea.vmem [#allocation3], 96
        %v1463 = vld [vmem:[%s1462] sm:$0xff]
        %v1464 = vld [vmem:[%s1462 + $0x8] sm:$0xff]
        %v1465 = vld [vmem:[%s1462 + $0x10] sm:$0xff]
        %v1466 = vld [vmem:[%s1462 + $0x18] sm:$0xff]
        %v1467 = vld [vmem:[%s1462 + $0x20] sm:$0xff]
        %v1468 = vld [vmem:[%s1462 + $0x28] sm:$0xff]
        %v1469 = vld [vmem:[%s1462 + $0x30] sm:$0xff]
        %v1470 = vld [vmem:[%s1462 + $0x38] sm:$0xff]
        %v1471 = vld [vmem:[%s1462 + $0x40] sm:$0xff]
        %v1472 = vld [vmem:[%s1462 + $0x48] sm:$0xff]
        %v1473 = vld [vmem:[%s1462 + $0x50] sm:$0xff]
        %v1474 = vld [vmem:[%s1462 + $0x58] sm:$0xff]
        %v1475 = vld [vmem:[%s1462 + $0x60] sm:$0xff]
        %v1476 = vld [vmem:[%s1462 + $0x68] sm:$0xff]
        %v1477 = vld [vmem:[%s1462 + $0x70] sm:$0xff]
        %v1478 = vld [vmem:[%s1462 + $0x78] sm:$0xff]
        %v1479 = vld [vmem:[%s1462 + $0x80] sm:$0xff]
        %v1480 = vld [vmem:[%s1462 + $0x88] sm:$0xff]
        %v1481 = vld [vmem:[%s1462 + $0x90] sm:$0xff]
        %v1482 = vld [vmem:[%s1462 + $0x98] sm:$0xff]
        %v1483 = vld [vmem:[%s1462 + $0xa0] sm:$0xff]
        %v1484 = vld [vmem:[%s1462 + $0xa8] sm:$0xff]
        %v1485 = vld [vmem:[%s1462 + $0xb0] sm:$0xff]
        %v1486 = vld [vmem:[%s1462 + $0xb8] sm:$0xff]
        %v1487 = vld [vmem:[%s1462 + $0xc0] sm:$0xff]
        %v1488 = vld [vmem:[%s1462 + $0xc8] sm:$0xff]
        %v1489 = vld [vmem:[%s1462 + $0xd0] sm:$0xff]
        %v1490 = vld [vmem:[%s1462 + $0xd8] sm:$0xff]
        %v1491 = vld [vmem:[%s1462 + $0xe0] sm:$0xff]
        %v1492 = vld [vmem:[%s1462 + $0xe8] sm:$0xff]
        %v1493 = vld [vmem:[%s1462 + $0xf0] sm:$0xff]
        %v1494 = vld [vmem:[%s1462 + $0xf8] sm:$0xff]
        %v1495 = vld [vmem:[%s1462 + $0x100] sm:$0xff]
        %v1496 = vld [vmem:[%s1462 + $0x108] sm:$0xff]
        %v1497 = vld [vmem:[%s1462 + $0x110] sm:$0xff]
        %v1498 = vld [vmem:[%s1462 + $0x118] sm:$0xff]
        %s1499 = scalar_lea.vmem [#allocation5], 384
        %v1500 = vld [vmem:[%s1499] sm:$0xf]
        %v1501 = vld [vmem:[%s1499 + $0x4] sm:$0xf]
        %v1502 = vld [vmem:[%s1499 + $0x8] sm:$0xf]
        %v1503 = vld [vmem:[%s1499 + $0xc] sm:$0xf]
        %v1504 = vld [vmem:[%s1499 + $0x10] sm:$0xf]
        %v1505 = vld [vmem:[%s1499 + $0x14] sm:$0xf]
        %v1506 = vld [vmem:[%s1499 + $0x18] sm:$0xf]
        %v1507 = vld [vmem:[%s1499 + $0x1c] sm:$0xf]
        %v1508 = vld [vmem:[%s1499 + $0x20] sm:$0xf]
        %v1509 = vld [vmem:[%s1499 + $0x24] sm:$0xf]
        %v1510 = vld [vmem:[%s1499 + $0x28] sm:$0xf]
        %v1511 = vld [vmem:[%s1499 + $0x2c] sm:$0xf]
        %v1512 = vld [vmem:[%s1499 + $0x30] sm:$0xf]
        %v1513 = vld [vmem:[%s1499 + $0x34] sm:$0xf]
        %v1514 = vld [vmem:[%s1499 + $0x38] sm:$0xf]
        %v1515 = vld [vmem:[%s1499 + $0x3c] sm:$0xf]
        %v1516 = vld [vmem:[%s1499 + $0x40] sm:$0xf]
        %v1517 = vld [vmem:[%s1499 + $0x44] sm:$0xf]
        %v1518 = vld [vmem:[%s1499 + $0x48] sm:$0xf]
        %v1519 = vld [vmem:[%s1499 + $0x4c] sm:$0xf]
        %v1520 = vld [vmem:[%s1499 + $0x50] sm:$0xf]
        %v1521 = vld [vmem:[%s1499 + $0x54] sm:$0xf]
        %v1522 = vld [vmem:[%s1499 + $0x58] sm:$0xf]
        %v1523 = vld [vmem:[%s1499 + $0x5c] sm:$0xf]
        %v1524 = vld [vmem:[%s1499 + $0x60] sm:$0xf]
        %v1525 = vld [vmem:[%s1499 + $0x64] sm:$0xf]
        %v1526 = vld [vmem:[%s1499 + $0x68] sm:$0xf]
        %v1527 = vld [vmem:[%s1499 + $0x6c] sm:$0xf]
        %v1528 = vld [vmem:[%s1499 + $0x70] sm:$0xf]
        %v1529 = vld [vmem:[%s1499 + $0x74] sm:$0xf]
        %v1530 = vld [vmem:[%s1499 + $0x78] sm:$0xf]
        %v1531 = vld [vmem:[%s1499 + $0x7c] sm:$0xf]
        %v1532 = vld [vmem:[%s1499 + $0x80] sm:$0xf]
        %v1533 = vld [vmem:[%s1499 + $0x84] sm:$0xf]
        %v1534 = vld [vmem:[%s1499 + $0x88] sm:$0xf]
        %v1535 = vld [vmem:[%s1499 + $0x8c] sm:$0xf]
        %v1536 = vld [vmem:[%s1499 + $0x90] sm:$0xf]
        %v1537 = vld [vmem:[%s1499 + $0x94] sm:$0xf]
        %v1538 = vld [vmem:[%s1499 + $0x98] sm:$0xf]
        %v1539 = vld [vmem:[%s1499 + $0x9c] sm:$0xf]
        %v1540 = vld [vmem:[%s1499 + $0xa0] sm:$0xf]
        %v1541 = vld [vmem:[%s1499 + $0xa4] sm:$0xf]
        %v1542 = vld [vmem:[%s1499 + $0xa8] sm:$0xf]
        %v1543 = vld [vmem:[%s1499 + $0xac] sm:$0xf]
        %v1544 = vld [vmem:[%s1499 + $0xb0] sm:$0xf]
        %v1545 = vld [vmem:[%s1499 + $0xb4] sm:$0xf]
        %v1546 = vld [vmem:[%s1499 + $0xb8] sm:$0xf]
        %v1547 = vld [vmem:[%s1499 + $0xbc] sm:$0xf]
        %v1596 = vunpack.c.l.b16 %v1500
        %v1597 = vunpack.c.l.b16 %v1501
        %v1598 = vunpack.c.l.b16 %v1502
        %v1599 = vunpack.c.l.b16 %v1503
        %v1600 = vunpack.c.l.b16 %v1504
        %v1601 = vunpack.c.l.b16 %v1505
        %v1602 = vunpack.c.l.b16 %v1506
        %v1603 = vunpack.c.l.b16 %v1507
        %v1604 = vunpack.c.l.b16 %v1508
        %v1605 = vunpack.c.l.b16 %v1509
        %v1606 = vunpack.c.l.b16 %v1510
        %v1607 = vunpack.c.l.b16 %v1511
        %v1608 = vunpack.c.l.b16 %v1512
        %v1609 = vunpack.c.l.b16 %v1513
        %v1610 = vunpack.c.l.b16 %v1514
        %v1611 = vunpack.c.l.b16 %v1515
        %v1612 = vunpack.c.l.b16 %v1516
        %v1613 = vunpack.c.l.b16 %v1517
        %v1614 = vunpack.c.l.b16 %v1518
        %v1615 = vunpack.c.l.b16 %v1519
        %v1616 = vunpack.c.l.b16 %v1520
        %v1617 = vunpack.c.l.b16 %v1521
        %v1618 = vunpack.c.l.b16 %v1522
        %v1619 = vunpack.c.l.b16 %v1523
        %v1620 = vunpack.c.l.b16 %v1524
        %v1621 = vunpack.c.l.b16 %v1525
        %v1622 = vunpack.c.l.b16 %v1526
        %v1623 = vunpack.c.l.b16 %v1527
        %v1624 = vunpack.c.l.b16 %v1528
        %v1625 = vunpack.c.l.b16 %v1529
        %v1626 = vunpack.c.l.b16 %v1530
        %v1627 = vunpack.c.l.b16 %v1531
        %v1628 = vunpack.c.l.b16 %v1532
        %v1629 = vunpack.c.l.b16 %v1533
        %v1630 = vunpack.c.l.b16 %v1534
        %v1631 = vunpack.c.l.b16 %v1535
        %v1632 = vunpack.c.l.b16 %v1536
        %v1633 = vunpack.c.l.b16 %v1537
        %v1634 = vunpack.c.l.b16 %v1538
        %v1635 = vunpack.c.l.b16 %v1539
        %v1636 = vunpack.c.l.b16 %v1540
        %v1637 = vunpack.c.l.b16 %v1541
        %v1638 = vunpack.c.l.b16 %v1542
        %v1639 = vunpack.c.l.b16 %v1543
        %v1640 = vunpack.c.l.b16 %v1544
        %v1641 = vunpack.c.l.b16 %v1545
        %v1642 = vunpack.c.l.b16 %v1546
        %v1643 = vunpack.c.l.b16 %v1547
        %v1644 = vpack.c.b16 %v1597, %v1596
        %v1645 = vpack.c.b16 %v1599, %v1598
        %v1646 = vpack.c.b16 %v1601, %v1600
        %v1647 = vpack.c.b16 %v1603, %v1602
        %v1648 = vpack.c.b16 %v1605, %v1604
        %v1649 = vpack.c.b16 %v1607, %v1606
        %v1650 = vpack.c.b16 %v1609, %v1608
        %v1651 = vpack.c.b16 %v1611, %v1610
        %v1652 = vpack.c.b16 %v1613, %v1612
        %v1653 = vpack.c.b16 %v1615, %v1614
        %v1654 = vpack.c.b16 %v1617, %v1616
        %v1655 = vpack.c.b16 %v1619, %v1618
        %v1656 = vpack.c.b16 %v1621, %v1620
        %v1657 = vpack.c.b16 %v1623, %v1622
        %v1658 = vpack.c.b16 %v1625, %v1624
        %v1659 = vpack.c.b16 %v1627, %v1626
        %v1660 = vpack.c.b16 %v1629, %v1628
        %v1661 = vpack.c.b16 %v1631, %v1630
        %v1662 = vpack.c.b16 %v1633, %v1632
        %v1663 = vpack.c.b16 %v1635, %v1634
        %v1664 = vpack.c.b16 %v1637, %v1636
        %v1665 = vpack.c.b16 %v1639, %v1638
        %v1666 = vpack.c.b16 %v1641, %v1640
        %v1667 = vpack.c.b16 %v1643, %v1642
        %1692 = vmatprep.subr.bf16.mxu0 0
        %1693 = vmatpush1.bf16.msra.mxu0 %v1644
        %1694 = vmatprep.subr.bf16.mxu0 0
        %1695 = vmatpush1.bf16.msra.mxu0 %v1645
        %1696 = vmatprep.subr.bf16.mxu0 0
        %1697 = vmatpush1.bf16.msra.mxu0 %v1646
        %1698 = vmatprep.subr.bf16.mxu0 0
        %1699 = vmatpush1.bf16.msra.mxu0 %v1647
        %1700 = vmatprep.subr.bf16.mxu0 0
        %1701 = vmatpush1.bf16.msra.mxu0 %v1648
        %1702 = vmatprep.subr.bf16.mxu0 0
        %1703 = vmatpush1.bf16.msra.mxu0 %v1649
        %1704 = vmatprep.subr.bf16.mxu0 0
        %1705 = vmatpush1.bf16.msra.mxu0 %v1650
        %1706 = vmatprep.subr.bf16.mxu0 0
        %1707 = vmatpush1.bf16.msra.mxu0 %v1651
        %1708 = vmatprep.subr.bf16.mxu0 0
        %1709 = vmatpush1.bf16.msra.mxu0 %v1652
        %1710 = vmatprep.subr.bf16.mxu0 0
        %1711 = vmatpush1.bf16.msra.mxu0 %v1653
        %1712 = vmatprep.subr.bf16.mxu0 0
        %1713 = vmatpush1.bf16.msra.mxu0 %v1654
        %1714 = vmatprep.subr.bf16.mxu0 0
        %1715 = vmatpush1.bf16.msra.mxu0 %v1655
        %1716 = vmatprep.subr.bf16.mxu0 0
        %1717 = vmatpush1.bf16.msra.mxu0 %v1656
        %1718 = vmatprep.subr.bf16.mxu0 0
        %1719 = vmatpush1.bf16.msra.mxu0 %v1657
        %1720 = vmatprep.subr.bf16.mxu0 0
        %1721 = vmatpush1.bf16.msra.mxu0 %v1658
        %1722 = vmatprep.subr.bf16.mxu0 0
        %1723 = vmatpush1.bf16.msra.mxu0 %v1659
        %1724 = vmatprep.mubr.bf16.mxu0 %v1464
        %1725 = vmatmul.mubr.bf16.gmra.mrb[0].mxu0 %v1463
        %v1726 = vpop.f32.mrb[0].mxu0
        %v1727 = vadd.f32 0.0, %v1726
        %v1728 = vpop.f32.mrb[0].mxu0
        %v1729 = vpop.f32.mrb[0].mxu0
        %v1730 = vadd.f32 0.0, %v1729
        %v1731 = vpop.f32.mrb[0].mxu0
        %1732 = vmatprep.mubr.bf16.mxu0 %v1467
        %1733 = vmatmul.mubr.bf16.gmra.mrb[0].mxu0 %v1466
        %v1734 = vpop.f32.mrb[0].mxu0
        %v1735 = vadd.f32 0.0, %v1734
        %v1736 = vpop.f32.mrb[0].mxu0
        %v1737 = vpop.f32.mrb[0].mxu0
        %v1738 = vpop.f32.mrb[0].mxu0
        %1739 = vmatprep.mubr.bf16.mxu0 %v1470
        %1740 = vmatmul.mubr.bf16.gmra.mrb[0].mxu0 %v1469
        %v1741 = vpop.f32.mrb[0].mxu0
        %v1742 = vadd.f32 0.0, %v1741
        %v1743 = vpop.f32.mrb[0].mxu0
        %v1744 = vpop.f32.mrb[0].mxu0
        %v1745 = vadd.f32 0.0, %v1744
        %v1746 = vpop.f32.mrb[0].mxu0
        %1747 = vmatprep.mubr.bf16.mxu0 %v1473
        %1748 = vmatmul.mubr.bf16.gmra.mrb[0].mxu0 %v1472
        %v1749 = vpop.f32.mrb[0].mxu0
        %v1750 = vadd.f32 0.0, %v1749
        %v1751 = vpop.f32.mrb[0].mxu0
        %v1752 = vpop.f32.mrb[0].mxu0
        %v1753 = vpop.f32.mrb[0].mxu0
        %1754 = vmatprep.mubr.bf16.mxu0 %v1476
        %1755 = vmatmul.mubr.bf16.gmra.mrb[0].mxu0 %v1475
        %v1756 = vpop.f32.mrb[0].mxu0
        %v1757 = vadd.f32 0.0, %v1756
        %v1758 = vpop.f32.mrb[0].mxu0
        %v1759 = vpop.f32.mrb[0].mxu0
        %v1760 = vadd.f32 0.0, %v1759
        %v1761 = vpop.f32.mrb[0].mxu0
        %1762 = vmatprep.mubr.bf16.mxu0 %v1479
        %1763 = vmatmul.mubr.bf16.gmra.mrb[0].mxu0 %v1478
        %v1764 = vpop.f32.mrb[0].mxu0
        %v1765 = vadd.f32 0.0, %v1764
        %v1766 = vpop.f32.mrb[0].mxu0
        %v1767 = vpop.f32.mrb[0].mxu0
        %v1768 = vpop.f32.mrb[0].mxu0
        %1769 = vmatprep.mubr.bf16.mxu0 %v1482
        %1770 = vmatmul.mubr.bf16.gmra.mrb[0].mxu0 %v1481
        %v1771 = vpop.f32.mrb[0].mxu0
        %v1772 = vadd.f32 0.0, %v1771
        %v1773 = vpop.f32.mrb[0].mxu0
        %v1774 = vpop.f32.mrb[0].mxu0
        %v1775 = vadd.f32 0.0, %v1774
        %v1776 = vpop.f32.mrb[0].mxu0
        %1777 = vmatprep.mubr.bf16.mxu0 %v1485
        %1778 = vmatmul.mubr.bf16.gmra.mrb[0].mxu0 %v1484
        %v1779 = vpop.f32.mrb[0].mxu0
        %v1780 = vadd.f32 0.0, %v1779
        %v1781 = vpop.f32.mrb[0].mxu0
        %v1782 = vpop.f32.mrb[0].mxu0
        %v1783 = vpop.f32.mrb[0].mxu0
        %1784 = vmatprep.mubr.bf16.mxu0 %v1488
        %1785 = vmatmul.mubr.bf16.gmra.mrb[0].mxu0 %v1487
        %v1786 = vpop.f32.mrb[0].mxu0
        %v1787 = vadd.f32 0.0, %v1786
        %v1788 = vpop.f32.mrb[0].mxu0
        %v1789 = vpop.f32.mrb[0].mxu0
        %v1790 = vadd.f32 0.0, %v1789
        %v1791 = vpop.f32.mrb[0].mxu0
        %1792 = vmatprep.mubr.bf16.mxu0 %v1491
        %1793 = vmatmul.mubr.bf16.gmra.mrb[0].mxu0 %v1490
        %v1794 = vpop.f32.mrb[0].mxu0
        %v1795 = vadd.f32 0.0, %v1794
        %v1796 = vpop.f32.mrb[0].mxu0
        %v1797 = vpop.f32.mrb[0].mxu0
        %v1798 = vpop.f32.mrb[0].mxu0
        %1799 = vmatprep.mubr.bf16.mxu0 %v1494
        %1800 = vmatmul.mubr.bf16.gmra.mrb[0].mxu0 %v1493
        %v1801 = vpop.f32.mrb[0].mxu0
        %v1802 = vadd.f32 0.0, %v1801
        %v1803 = vpop.f32.mrb[0].mxu0
        %v1804 = vpop.f32.mrb[0].mxu0
        %v1805 = vadd.f32 0.0, %v1804
        %v1806 = vpop.f32.mrb[0].mxu0
        %1807 = vmatprep.mubr.bf16.mxu0 %v1497
        %1808 = vmatmul.mubr.bf16.gmra.mrb[0].mxu0 %v1496
        %v1809 = vpop.f32.mrb[0].mxu0
        %v1810 = vadd.f32 0.0, %v1809
        %v1811 = vpop.f32.mrb[0].mxu0
        %v1812 = vpop.f32.mrb[0].mxu0
        %v1813 = vpop.f32.mrb[0].mxu0
        %1814 = vdwg.mxu0
        %1815 = vmatprep.subr.bf16.mxu0 0
        %1816 = vmatpush1.bf16.msra.mxu0 %v1660
        %1817 = vmatprep.subr.bf16.mxu0 0
        %1818 = vmatpush1.bf16.msra.mxu0 %v1661
        %1819 = vmatprep.subr.bf16.mxu0 0
        %1820 = vmatpush1.bf16.msra.mxu0 %v1662
        %1821 = vmatprep.subr.bf16.mxu0 0
        %1822 = vmatpush1.bf16.msra.mxu0 %v1663
        %1823 = vmatprep.subr.bf16.mxu0 0
        %1824 = vmatpush1.bf16.msra.mxu0 %v1664
        %1825 = vmatprep.subr.bf16.mxu0 0
        %1826 = vmatpush1.bf16.msra.mxu0 %v1665
        %1827 = vmatprep.subr.bf16.mxu0 0
        %1828 = vmatpush1.bf16.msra.mxu0 %v1666
        %1829 = vmatprep.subr.bf16.mxu0 0
        %1830 = vmatpush1.bf16.msra.mxu0 %v1667
        %1831 = vmatprep.subr.bf16.mxu0 0
        %1832 = vmatpush1.bf16.msra.mxu0 0
        %1833 = vmatprep.subr.bf16.mxu0 0
        %1834 = vmatpush1.bf16.msra.mxu0 0
        %1835 = vmatprep.subr.bf16.mxu0 0
        %1836 = vmatpush1.bf16.msra.mxu0 0
        %1837 = vmatprep.subr.bf16.mxu0 0
        %1838 = vmatpush1.bf16.msra.mxu0 0
        %1839 = vmatprep.subr.bf16.mxu0 0
        %1840 = vmatpush1.bf16.msra.mxu0 0
        %1841 = vmatprep.subr.bf16.mxu0 0
        %1842 = vmatpush1.bf16.msra.mxu0 0
        %1843 = vmatprep.subr.bf16.mxu0 0
        %1844 = vmatpush1.bf16.msra.mxu0 0
        %1845 = vmatprep.subr.bf16.mxu0 0
        %1846 = vmatpush1.bf16.msra.mxu0 0
        %1847 = vmatprep.mubr.bf16.mxu0 0
        %1848 = vmatmul.mubr.bf16.gmra.mrb[0].mxu0 %v1465
        %v1849 = vpop.f32.mrb[0].mxu0
        %v1850 = vadd.f32 %v1727, %v1849
        %v1851 = vpop.f32.mrb[0].mxu0
        %v1852 = vpop.f32.mrb[0].mxu0
        %v1853 = vadd.f32 %v1730, %v1852
        %v1854 = vpop.f32.mrb[0].mxu0
        %1855 = vmatprep.mubr.bf16.mxu0 0
        %1856 = vmatmul.mubr.bf16.gmra.mrb[0].mxu0 %v1468
        %v1857 = vpop.f32.mrb[0].mxu0
        %v1858 = vadd.f32 %v1735, %v1857
        %v1859 = vpop.f32.mrb[0].mxu0
        %v1860 = vpop.f32.mrb[0].mxu0
        %v1861 = vpop.f32.mrb[0].mxu0
        %1862 = vmatprep.mubr.bf16.mxu0 0
        %1863 = vmatmul.mubr.bf16.gmra.mrb[0].mxu0 %v1471
        %v1864 = vpop.f32.mrb[0].mxu0
        %v1865 = vadd.f32 %v1742, %v1864
        %v1866 = vpop.f32.mrb[0].mxu0
        %v1867 = vpop.f32.mrb[0].mxu0
        %v1868 = vadd.f32 %v1745, %v1867
        %v1869 = vpop.f32.mrb[0].mxu0
        %1870 = vmatprep.mubr.bf16.mxu0 0
        %1871 = vmatmul.mubr.bf16.gmra.mrb[0].mxu0 %v1474
        %v1872 = vpop.f32.mrb[0].mxu0
        %v1873 = vadd.f32 %v1750, %v1872
        %v1874 = vpop.f32.mrb[0].mxu0
        %v1875 = vpop.f32.mrb[0].mxu0
        %v1876 = vpop.f32.mrb[0].mxu0
        %1877 = vmatprep.mubr.bf16.mxu0 0
        %1878 = vmatmul.mubr.bf16.gmra.mrb[0].mxu0 %v1477
        %v1879 = vpop.f32.mrb[0].mxu0
        %v1880 = vadd.f32 %v1757, %v1879
        %v1881 = vpop.f32.mrb[0].mxu0
        %v1882 = vpop.f32.mrb[0].mxu0
        %v1883 = vadd.f32 %v1760, %v1882
        %v1884 = vpop.f32.mrb[0].mxu0
        %1885 = vmatprep.mubr.bf16.mxu0 0
        %1886 = vmatmul.mubr.bf16.gmra.mrb[0].mxu0 %v1480
        %v1887 = vpop.f32.mrb[0].mxu0
        %v1888 = vadd.f32 %v1765, %v1887
        %v1889 = vpop.f32.mrb[0].mxu0
        %v1890 = vpop.f32.mrb[0].mxu0
        %v1891 = vpop.f32.mrb[0].mxu0
        %1892 = vmatprep.mubr.bf16.mxu0 0
        %1893 = vmatmul.mubr.bf16.gmra.mrb[0].mxu0 %v1483
        %v1894 = vpop.f32.mrb[0].mxu0
        %v1895 = vadd.f32 %v1772, %v1894
        %v1896 = vpop.f32.mrb[0].mxu0
        %v1897 = vpop.f32.mrb[0].mxu0
        %v1898 = vadd.f32 %v1775, %v1897
        %v1899 = vpop.f32.mrb[0].mxu0
        %1900 = vmatprep.mubr.bf16.mxu0 0
        %1901 = vmatmul.mubr.bf16.gmra.mrb[0].mxu0 %v1486
        %v1902 = vpop.f32.mrb[0].mxu0
        %v1903 = vadd.f32 %v1780, %v1902
        %v1904 = vpop.f32.mrb[0].mxu0
        %v1905 = vpop.f32.mrb[0].mxu0
        %v1906 = vpop.f32.mrb[0].mxu0
        %1907 = vmatprep.mubr.bf16.mxu0 0
        %1908 = vmatmul.mubr.bf16.gmra.mrb[0].mxu0 %v1489
        %v1909 = vpop.f32.mrb[0].mxu0
        %v1910 = vadd.f32 %v1787, %v1909
        %v1911 = vpop.f32.mrb[0].mxu0
        %v1912 = vpop.f32.mrb[0].mxu0
        %v1913 = vadd.f32 %v1790, %v1912
        %v1914 = vpop.f32.mrb[0].mxu0
        %1915 = vmatprep.mubr.bf16.mxu0 0
        %1916 = vmatmul.mubr.bf16.gmra.mrb[0].mxu0 %v1492
        %v1917 = vpop.f32.mrb[0].mxu0
        %v1918 = vadd.f32 %v1795, %v1917
        %v1919 = vpop.f32.mrb[0].mxu0
        %v1920 = vpop.f32.mrb[0].mxu0
        %v1921 = vpop.f32.mrb[0].mxu0
        %1922 = vmatprep.mubr.bf16.mxu0 0
        %1923 = vmatmul.mubr.bf16.gmra.mrb[0].mxu0 %v1495
        %v1924 = vpop.f32.mrb[0].mxu0
        %v1925 = vadd.f32 %v1802, %v1924
        %v1926 = vpop.f32.mrb[0].mxu0
        %v1927 = vpop.f32.mrb[0].mxu0
        %v1928 = vadd.f32 %v1805, %v1927
        %v1929 = vpop.f32.mrb[0].mxu0
        %1930 = vmatprep.mubr.bf16.mxu0 0
        %1931 = vmatmul.mubr.bf16.gmra.mrb[0].mxu0 %v1498
        %v1932 = vpop.f32.mrb[0].mxu0
        %v1933 = vadd.f32 %v1810, %v1932
        %v1934 = vpop.f32.mrb[0].mxu0
        %v1935 = vpop.f32.mrb[0].mxu0
        %v1936 = vpop.f32.mrb[0].mxu0
        %1937 = vdwg.mxu0
        %v1938 = vadd.f32 %v1374, %v1850
        %v1939 = vadd.f32 %v1377, %v1853
        %v1940 = vadd.f32 %v1382, %v1858
        %v1941 = vadd.f32 %v1389, %v1865
        %v1942 = vadd.f32 %v1392, %v1868
        %v1943 = vadd.f32 %v1397, %v1873
        %v1944 = vadd.f32 %v1404, %v1880
        %v1945 = vadd.f32 %v1407, %v1883
        %v1946 = vadd.f32 %v1412, %v1888
        %v1947 = vadd.f32 %v1419, %v1895
        %v1948 = vadd.f32 %v1422, %v1898
        %v1949 = vadd.f32 %v1427, %v1903
        %v1950 = vadd.f32 %v1434, %v1910
        %v1951 = vadd.f32 %v1437, %v1913
        %v1952 = vadd.f32 %v1442, %v1918
        %v1953 = vadd.f32 %v1449, %v1925
        %v1954 = vadd.f32 %v1452, %v1928
        %v1955 = vadd.f32 %v1457, %v1933
        %v1956 = vld [vmem:[%s2] sm:$0x1]
        %v1958 = vlaneseq
        %v1959 = vshrl.u32 %v1958, 7
        %v1960 = vsub.s32 0, %v1959
        %v1961 = vrot.slane %v1956, %v1960
        %v1963 = vadd.f32 %v1938, %v1961
        %v1964 = vadd.f32 %v1939, %v1961
        %v1965 = vadd.f32 %v1940, %v1961
        %v1966 = vadd.f32 %v1941, %v1961
        %v1967 = vadd.f32 %v1942, %v1961
        %v1968 = vadd.f32 %v1943, %v1961
        %v1969 = vadd.f32 %v1944, %v1961
        %v1970 = vadd.f32 %v1945, %v1961
        %v1971 = vadd.f32 %v1946, %v1961
        %v1972 = vadd.f32 %v1947, %v1961
        %v1973 = vadd.f32 %v1948, %v1961
        %v1974 = vadd.f32 %v1949, %v1961
        %v1975 = vadd.f32 %v1950, %v1961
        %v1976 = vadd.f32 %v1951, %v1961
        %v1977 = vadd.f32 %v1952, %v1961
        %v1978 = vadd.f32 %v1953, %v1961
        %v1979 = vadd.f32 %v1954, %v1961
        %v1980 = vadd.f32 %v1955, %v1961
        %v1981 = vmax.f32 %v1963, 0.0
        %v1982 = vmax.f32 %v1964, 0.0
        %v1983 = vmax.f32 %v1965, 0.0
        %v1984 = vmax.f32 %v1966, 0.0
        %v1985 = vmax.f32 %v1967, 0.0
        %v1986 = vmax.f32 %v1968, 0.0
        %v1987 = vmax.f32 %v1969, 0.0
        %v1988 = vmax.f32 %v1970, 0.0
        %v1989 = vmax.f32 %v1971, 0.0
        %v1990 = vmax.f32 %v1972, 0.0
        %v1991 = vmax.f32 %v1973, 0.0
        %v1992 = vmax.f32 %v1974, 0.0
        %v1993 = vmax.f32 %v1975, 0.0
        %v1994 = vmax.f32 %v1976, 0.0
        %v1995 = vmax.f32 %v1977, 0.0
        %v1996 = vmax.f32 %v1978, 0.0
        %v1997 = vmax.f32 %v1979, 0.0
        %v1998 = vmax.f32 %v1980, 0.0
        %v1999 = vpack.c.bf16 %v1982, %v1981
        %v2000 = vpack.c.bf16 %v1983, %v1983
        %v2001 = vpack.c.bf16 %v1985, %v1984
        %v2002 = vpack.c.bf16 %v1986, %v1986
        %v2003 = vpack.c.bf16 %v1988, %v1987
        %v2004 = vpack.c.bf16 %v1989, %v1989
        %v2005 = vpack.c.bf16 %v1991, %v1990
        %v2006 = vpack.c.bf16 %v1992, %v1992
        %v2007 = vpack.c.bf16 %v1994, %v1993
        %v2008 = vpack.c.bf16 %v1995, %v1995
        %v2009 = vpack.c.bf16 %v1997, %v1996
        %v2010 = vpack.c.bf16 %v1998, %v1998
        %v2012 = vshrl.u32 %v1999, 16
        %v2014 = vrot.slane %v2012, 7
        %v2015 = vshll.u32 %v1999, 16
        %v2017 = vor.u32 %v2014, %v2015
        %v2019 = vshll.u32 %v2000, 16
        %v2021 = vsel %vm272, %v2014, %v2019
        %v2023 = vshrl.u32 %v2001, 16
        %v2025 = vrot.slane %v2023, 7
        %v2026 = vshll.u32 %v2001, 16
        %v2028 = vor.u32 %v2025, %v2026
        %v2030 = vshll.u32 %v2002, 16
        %v2032 = vsel %vm272, %v2025, %v2030
        %v2034 = vshrl.u32 %v2003, 16
        %v2036 = vrot.slane %v2034, 7
        %v2037 = vshll.u32 %v2003, 16
        %v2039 = vor.u32 %v2036, %v2037
        %v2041 = vshll.u32 %v2004, 16
        %v2043 = vsel %vm272, %v2036, %v2041
        %v2045 = vshrl.u32 %v2005, 16
        %v2047 = vrot.slane %v2045, 7
        %v2048 = vshll.u32 %v2005, 16
        %v2050 = vor.u32 %v2047, %v2048
        %v2052 = vshll.u32 %v2006, 16
        %v2054 = vsel %vm272, %v2047, %v2052
        %v2056 = vshrl.u32 %v2007, 16
        %v2058 = vrot.slane %v2056, 7
        %v2059 = vshll.u32 %v2007, 16
        %v2061 = vor.u32 %v2058, %v2059
        %v2063 = vshll.u32 %v2008, 16
        %v2065 = vsel %vm272, %v2058, %v2063
        %v2067 = vshrl.u32 %v2009, 16
        %v2069 = vrot.slane %v2067, 7
        %v2070 = vshll.u32 %v2009, 16
        %v2072 = vor.u32 %v2069, %v2070
        %v2074 = vshll.u32 %v2010, 16
        %v2076 = vsel %vm272, %v2069, %v2074
        %2089 = vst [vmem:[#allocation4] sm:$0xfe] %v2017
        %2090 = vst [vmem:[#allocation4 + $0x18] sm:$0x1] %v2021
        %2091 = vst [vmem:[#allocation4 + $0x30] sm:$0xfe] %v2028
        %2092 = vst [vmem:[#allocation4 + $0x48] sm:$0x1] %v2032
        %2093 = vst [vmem:[#allocation4 + $0x60] sm:$0xfe] %v2039
        %2094 = vst [vmem:[#allocation4 + $0x78] sm:$0x1] %v2043
        %2095 = vst [vmem:[#allocation4 + $0x90] sm:$0xfe] %v2050
        %2096 = vst [vmem:[#allocation4 + $0xa8] sm:$0x1] %v2054
        %2097 = vst [vmem:[#allocation4 + $0xc0] sm:$0xfe] %v2061
        %2098 = vst [vmem:[#allocation4 + $0xd8] sm:$0x1] %v2065
        %2099 = vst [vmem:[#allocation4 + $0xf0] sm:$0xfe] %v2072
        %2100 = vst [vmem:[#allocation4 + $0x108] sm:$0x1] %v2076
        %v2101 = vld [vmem:[#allocation4 + $0x8] sm:$0xff]
        %v2102 = vsel %vm455, %v1999, %v2101
        %2103 = vst [vmem:[#allocation4 + $0x8] sm:$0xff] %v2102
        %v2104 = vld [vmem:[#allocation4 + $0x20] sm:$0x1]
        %v2105 = vsel %vm273, %v2000, %v2104
        %2106 = vst [vmem:[#allocation4 + $0x20] sm:$0x1] %v2105
        %v2107 = vld [vmem:[#allocation4 + $0x38] sm:$0xff]
        %v2108 = vsel %vm455, %v2001, %v2107
        %2109 = vst [vmem:[#allocation4 + $0x38] sm:$0xff] %v2108
        %v2110 = vld [vmem:[#allocation4 + $0x50] sm:$0x1]
        %v2111 = vsel %vm273, %v2002, %v2110
        %2112 = vst [vmem:[#allocation4 + $0x50] sm:$0x1] %v2111
        %v2113 = vld [vmem:[#allocation4 + $0x68] sm:$0xff]
        %v2114 = vsel %vm455, %v2003, %v2113
        %2115 = vst [vmem:[#allocation4 + $0x68] sm:$0xff] %v2114
        %v2116 = vld [vmem:[#allocation4 + $0x80] sm:$0x1]
        %v2117 = vsel %vm273, %v2004, %v2116
        %2118 = vst [vmem:[#allocation4 + $0x80] sm:$0x1] %v2117
        %v2119 = vld [vmem:[#allocation4 + $0x98] sm:$0xff]
        %v2120 = vsel %vm455, %v2005, %v2119
        %2121 = vst [vmem:[#allocation4 + $0x98] sm:$0xff] %v2120
        %v2122 = vld [vmem:[#allocation4 + $0xb0] sm:$0x1]
        %v2123 = vsel %vm273, %v2006, %v2122
        %2124 = vst [vmem:[#allocation4 + $0xb0] sm:$0x1] %v2123
        %v2125 = vld [vmem:[#allocation4 + $0xc8] sm:$0xff]
        %v2126 = vsel %vm455, %v2007, %v2125
        %2127 = vst [vmem:[#allocation4 + $0xc8] sm:$0xff] %v2126
        %v2128 = vld [vmem:[#allocation4 + $0xe0] sm:$0x1]
        %v2129 = vsel %vm273, %v2008, %v2128
        %2130 = vst [vmem:[#allocation4 + $0xe0] sm:$0x1] %v2129
        %v2131 = vld [vmem:[#allocation4 + $0xf8] sm:$0xff]
        %v2132 = vsel %vm455, %v2009, %v2131
        %2133 = vst [vmem:[#allocation4 + $0xf8] sm:$0xff] %v2132
        %v2134 = vld [vmem:[#allocation4 + $0x110] sm:$0x1]
        %v2135 = vsel %vm273, %v2010, %v2134
        %2136 = vst [vmem:[#allocation4 + $0x110] sm:$0x1] %v2135
        %vm2137 = vsmask.f32 7424
        %v2138 = vrot.slane %v2015, 1
        %v2139 = vor.u32 %v2012, %v2138
        %v2140 = vrot.slane %v2019, 1
        %v2141 = vsel %vm2137, %v2139, %v2140
        %v2142 = vrot.slane %v2026, 1
        %v2143 = vor.u32 %v2023, %v2142
        %v2144 = vrot.slane %v2030, 1
        %v2145 = vsel %vm2137, %v2143, %v2144
        %v2146 = vrot.slane %v2037, 1
        %v2147 = vor.u32 %v2034, %v2146
        %v2148 = vrot.slane %v2041, 1
        %v2149 = vsel %vm2137, %v2147, %v2148
        %v2150 = vrot.slane %v2048, 1
        %v2151 = vor.u32 %v2045, %v2150
        %v2152 = vrot.slane %v2052, 1
        %v2153 = vsel %vm2137, %v2151, %v2152
        %v2154 = vrot.slane %v2059, 1
        %v2155 = vor.u32 %v2056, %v2154
        %v2156 = vrot.slane %v2063, 1
        %v2157 = vsel %vm2137, %v2155, %v2156
        %v2158 = vrot.slane %v2070, 1
        %v2159 = vor.u32 %v2067, %v2158
        %v2160 = vrot.slane %v2074, 1
        %v2161 = vsel %vm2137, %v2159, %v2160
        %2168 = vst [vmem:[#allocation4 + $0x10] sm:$0xff] %v2141
        %2169 = vst [vmem:[#allocation4 + $0x40] sm:$0xff] %v2145
        %2170 = vst [vmem:[#allocation4 + $0x70] sm:$0xff] %v2149
        %2171 = vst [vmem:[#allocation4 + $0xa0] sm:$0xff] %v2153
        %2172 = vst [vmem:[#allocation4 + $0xd0] sm:$0xff] %v2157
        %2173 = vst [vmem:[#allocation4 + $0x100] sm:$0xff] %v2161
        %p2174 = scmp.eq.s32.totalorder %s26, 0
        // Predicated region
        $region50: #{tpu_custom_call.1} parent=35 // pred_check
          %p2175 = pneg %p2174
        $region51: #{tpu_custom_call.1} parent=35 // pred_check_branch
          %2177 = sbr.rel (%p2175) target = $region53
        $region52: #{tpu_custom_call.1} parent=35 // pred_region
          %2178 = vst [vmem:[#allocation4] sm:$0xff] 0
          %2179 = vst [vmem:[#allocation4 + $0x8] sm:$0xff] 0
          %2180 = vst [vmem:[#allocation4 + $0x10] sm:$0xff] 0
          %2181 = vst [vmem:[#allocation4 + $0x18] sm:$0xff] 0
          %2182 = vst [vmem:[#allocation4 + $0x20] sm:$0xff] 0
          %2183 = vst [vmem:[#allocation4 + $0x28] sm:$0xff] 0
        $region53: #{tpu_custom_call.1} parent=35 // pred_fallthru
          _
        %p2184 = scmp.eq.s32.totalorder %s26, 3
        // Predicated region
        $region54: #{tpu_custom_call.1} parent=35 // pred_check
          %p2185 = pneg %p2184
        $region55: #{tpu_custom_call.1} parent=35 // pred_check_branch
          %2187 = sbr.rel (%p2185) target = $region57
        $region56: #{tpu_custom_call.1} parent=35 // pred_region
          %s2188 = scalar_lea.vmem [#allocation4], 240
          %2189 = vst [vmem:[%s2188] sm:$0xff] 0
          %2190 = vst [vmem:[%s2188 + $0x8] sm:$0xff] 0
          %2191 = vst [vmem:[%s2188 + $0x10] sm:$0xff] 0
          %2192 = vst [vmem:[%s2188 + $0x18] sm:$0xff] 0
          %2193 = vst [vmem:[%s2188 + $0x20] sm:$0xff] 0
          %2194 = vst [vmem:[%s2188 + $0x28] sm:$0xff] 0
        $region57: #{tpu_custom_call.1} parent=35 // pred_fallthru
          _
        %v2195 = vld [vmem:[#allocation4] sm:$0xff]
        %v2196 = vld [vmem:[#allocation4 + $0x8] sm:$0xff]
        %v2197 = vld [vmem:[#allocation4 + $0x10] sm:$0xff]
        %v2198 = vld [vmem:[#allocation4 + $0x18] sm:$0xff]
        %v2199 = vld [vmem:[#allocation4 + $0x20] sm:$0xff]
        %v2200 = vld [vmem:[#allocation4 + $0x28] sm:$0xff]
        %v2201 = vld [vmem:[#allocation4 + $0x30] sm:$0xff]
        %v2202 = vld [vmem:[#allocation4 + $0x38] sm:$0xff]
        %v2203 = vld [vmem:[#allocation4 + $0x40] sm:$0xff]
        %v2204 = vld [vmem:[#allocation4 + $0x48] sm:$0xff]
        %v2205 = vld [vmem:[#allocation4 + $0x50] sm:$0xff]
        %v2206 = vld [vmem:[#allocation4 + $0x58] sm:$0xff]
        %v2207 = vld [vmem:[#allocation4 + $0x60] sm:$0xff]
        %v2208 = vld [vmem:[#allocation4 + $0x68] sm:$0xff]
        %v2209 = vld [vmem:[#allocation4 + $0x70] sm:$0xff]
        %v2210 = vld [vmem:[#allocation4 + $0x78] sm:$0xff]
        %v2211 = vld [vmem:[#allocation4 + $0x80] sm:$0xff]
        %v2212 = vld [vmem:[#allocation4 + $0x88] sm:$0xff]
        %v2213 = vld [vmem:[#allocation4 + $0x90] sm:$0xff]
        %v2214 = vld [vmem:[#allocation4 + $0x98] sm:$0xff]
        %v2215 = vld [vmem:[#allocation4 + $0xa0] sm:$0xff]
        %v2216 = vld [vmem:[#allocation4 + $0xa8] sm:$0xff]
        %v2217 = vld [vmem:[#allocation4 + $0xb0] sm:$0xff]
        %v2218 = vld [vmem:[#allocation4 + $0xb8] sm:$0xff]
        %v2219 = vld [vmem:[#allocation8] sm:$0xf]
        %v2220 = vld [vmem:[#allocation8 + $0x4] sm:$0xf]
        %v2221 = vld [vmem:[#allocation8 + $0x8] sm:$0xf]
        %v2222 = vld [vmem:[#allocation8 + $0xc] sm:$0xf]
        %v2223 = vld [vmem:[#allocation8 + $0x10] sm:$0xf]
        %v2224 = vld [vmem:[#allocation8 + $0x14] sm:$0xf]
        %v2225 = vld [vmem:[#allocation8 + $0x18] sm:$0xf]
        %v2226 = vld [vmem:[#allocation8 + $0x1c] sm:$0xf]
        %v2227 = vld [vmem:[#allocation8 + $0x20] sm:$0xf]
        %v2228 = vld [vmem:[#allocation8 + $0x24] sm:$0xf]
        %v2229 = vld [vmem:[#allocation8 + $0x28] sm:$0xf]
        %v2230 = vld [vmem:[#allocation8 + $0x2c] sm:$0xf]
        %v2231 = vld [vmem:[#allocation8 + $0x30] sm:$0xf]
        %v2232 = vld [vmem:[#allocation8 + $0x34] sm:$0xf]
        %v2233 = vld [vmem:[#allocation8 + $0x38] sm:$0xf]
        %v2234 = vld [vmem:[#allocation8 + $0x3c] sm:$0xf]
        %v2235 = vld [vmem:[#allocation8 + $0x40] sm:$0xf]
        %v2236 = vld [vmem:[#allocation8 + $0x44] sm:$0xf]
        %v2237 = vld [vmem:[#allocation8 + $0x48] sm:$0xf]
        %v2238 = vld [vmem:[#allocation8 + $0x4c] sm:$0xf]
        %v2239 = vld [vmem:[#allocation8 + $0x50] sm:$0xf]
        %v2240 = vld [vmem:[#allocation8 + $0x54] sm:$0xf]
        %v2241 = vld [vmem:[#allocation8 + $0x58] sm:$0xf]
        %v2242 = vld [vmem:[#allocation8 + $0x5c] sm:$0xf]
        %v2243 = vld [vmem:[#allocation8 + $0x60] sm:$0xf]
        %v2244 = vld [vmem:[#allocation8 + $0x64] sm:$0xf]
        %v2245 = vld [vmem:[#allocation8 + $0x68] sm:$0xf]
        %v2246 = vld [vmem:[#allocation8 + $0x6c] sm:$0xf]
        %v2247 = vld [vmem:[#allocation8 + $0x70] sm:$0xf]
        %v2248 = vld [vmem:[#allocation8 + $0x74] sm:$0xf]
        %v2249 = vld [vmem:[#allocation8 + $0x78] sm:$0xf]
        %v2250 = vld [vmem:[#allocation8 + $0x7c] sm:$0xf]
        %v2251 = vld [vmem:[#allocation8 + $0x80] sm:$0xf]
        %v2252 = vld [vmem:[#allocation8 + $0x84] sm:$0xf]
        %v2253 = vld [vmem:[#allocation8 + $0x88] sm:$0xf]
        %v2254 = vld [vmem:[#allocation8 + $0x8c] sm:$0xf]
        %v2255 = vld [vmem:[#allocation8 + $0x90] sm:$0xf]
        %v2256 = vld [vmem:[#allocation8 + $0x94] sm:$0xf]
        %v2257 = vld [vmem:[#allocation8 + $0x98] sm:$0xf]
        %v2258 = vld [vmem:[#allocation8 + $0x9c] sm:$0xf]
        %v2259 = vld [vmem:[#allocation8 + $0xa0] sm:$0xf]
        %v2260 = vld [vmem:[#allocation8 + $0xa4] sm:$0xf]
        %v2261 = vld [vmem:[#allocation8 + $0xa8] sm:$0xf]
        %v2262 = vld [vmem:[#allocation8 + $0xac] sm:$0xf]
        %v2263 = vld [vmem:[#allocation8 + $0xb0] sm:$0xf]
        %v2264 = vld [vmem:[#allocation8 + $0xb4] sm:$0xf]
        %v2265 = vld [vmem:[#allocation8 + $0xb8] sm:$0xf]
        %v2266 = vld [vmem:[#allocation8 + $0xbc] sm:$0xf]
        %s2267 = scalar_lea.vmem [#allocation4], 48
        %v2268 = vld [vmem:[%s2267] sm:$0xff]
        %v2269 = vld [vmem:[%s2267 + $0x8] sm:$0xff]
        %v2270 = vld [vmem:[%s2267 + $0x10] sm:$0xff]
        %v2271 = vld [vmem:[%s2267 + $0x18] sm:$0xff]
        %v2272 = vld [vmem:[%s2267 + $0x20] sm:$0xff]
        %v2273 = vld [vmem:[%s2267 + $0x28] sm:$0xff]
        %v2274 = vld [vmem:[%s2267 + $0x30] sm:$0xff]
        %v2275 = vld [vmem:[%s2267 + $0x38] sm:$0xff]
        %v2276 = vld [vmem:[%s2267 + $0x40] sm:$0xff]
        %v2277 = vld [vmem:[%s2267 + $0x48] sm:$0xff]
        %v2278 = vld [vmem:[%s2267 + $0x50] sm:$0xff]
        %v2279 = vld [vmem:[%s2267 + $0x58] sm:$0xff]
        %v2280 = vld [vmem:[%s2267 + $0x60] sm:$0xff]
        %v2281 = vld [vmem:[%s2267 + $0x68] sm:$0xff]
        %v2282 = vld [vmem:[%s2267 + $0x70] sm:$0xff]
        %v2283 = vld [vmem:[%s2267 + $0x78] sm:$0xff]
        %v2284 = vld [vmem:[%s2267 + $0x80] sm:$0xff]
        %v2285 = vld [vmem:[%s2267 + $0x88] sm:$0xff]
        %v2286 = vld [vmem:[%s2267 + $0x90] sm:$0xff]
        %v2287 = vld [vmem:[%s2267 + $0x98] sm:$0xff]
        %v2288 = vld [vmem:[%s2267 + $0xa0] sm:$0xff]
        %v2289 = vld [vmem:[%s2267 + $0xa8] sm:$0xff]
        %v2290 = vld [vmem:[%s2267 + $0xb0] sm:$0xff]
        %v2291 = vld [vmem:[%s2267 + $0xb8] sm:$0xff]
        %s2292 = scalar_lea.vmem [#allocation8], 192
        %v2293 = vld [vmem:[%s2292] sm:$0xf]
        %v2294 = vld [vmem:[%s2292 + $0x4] sm:$0xf]
        %v2295 = vld [vmem:[%s2292 + $0x8] sm:$0xf]
        %v2296 = vld [vmem:[%s2292 + $0xc] sm:$0xf]
        %v2297 = vld [vmem:[%s2292 + $0x10] sm:$0xf]
        %v2298 = vld [vmem:[%s2292 + $0x14] sm:$0xf]
        %v2299 = vld [vmem:[%s2292 + $0x18] sm:$0xf]
        %v2300 = vld [vmem:[%s2292 + $0x1c] sm:$0xf]
        %v2301 = vld [vmem:[%s2292 + $0x20] sm:$0xf]
        %v2302 = vld [vmem:[%s2292 + $0x24] sm:$0xf]
        %v2303 = vld [vmem:[%s2292 + $0x28] sm:$0xf]
        %v2304 = vld [vmem:[%s2292 + $0x2c] sm:$0xf]
        %v2305 = vld [vmem:[%s2292 + $0x30] sm:$0xf]
        %v2306 = vld [vmem:[%s2292 + $0x34] sm:$0xf]
        %v2307 = vld [vmem:[%s2292 + $0x38] sm:$0xf]
        %v2308 = vld [vmem:[%s2292 + $0x3c] sm:$0xf]
        %v2309 = vld [vmem:[%s2292 + $0x40] sm:$0xf]
        %v2310 = vld [vmem:[%s2292 + $0x44] sm:$0xf]
        %v2311 = vld [vmem:[%s2292 + $0x48] sm:$0xf]
        %v2312 = vld [vmem:[%s2292 + $0x4c] sm:$0xf]
        %v2313 = vld [vmem:[%s2292 + $0x50] sm:$0xf]
        %v2314 = vld [vmem:[%s2292 + $0x54] sm:$0xf]
        %v2315 = vld [vmem:[%s2292 + $0x58] sm:$0xf]
        %v2316 = vld [vmem:[%s2292 + $0x5c] sm:$0xf]
        %v2317 = vld [vmem:[%s2292 + $0x60] sm:$0xf]
        %v2318 = vld [vmem:[%s2292 + $0x64] sm:$0xf]
        %v2319 = vld [vmem:[%s2292 + $0x68] sm:$0xf]
        %v2320 = vld [vmem:[%s2292 + $0x6c] sm:$0xf]
        %v2321 = vld [vmem:[%s2292 + $0x70] sm:$0xf]
        %v2322 = vld [vmem:[%s2292 + $0x74] sm:$0xf]
        %v2323 = vld [vmem:[%s2292 + $0x78] sm:$0xf]
        %v2324 = vld [vmem:[%s2292 + $0x7c] sm:$0xf]
        %v2325 = vld [vmem:[%s2292 + $0x80] sm:$0xf]
        %v2326 = vld [vmem:[%s2292 + $0x84] sm:$0xf]
        %v2327 = vld [vmem:[%s2292 + $0x88] sm:$0xf]
        %v2328 = vld [vmem:[%s2292 + $0x8c] sm:$0xf]
        %v2329 = vld [vmem:[%s2292 + $0x90] sm:$0xf]
        %v2330 = vld [vmem:[%s2292 + $0x94] sm:$0xf]
        %v2331 = vld [vmem:[%s2292 + $0x98] sm:$0xf]
        %v2332 = vld [vmem:[%s2292 + $0x9c] sm:$0xf]
        %v2333 = vld [vmem:[%s2292 + $0xa0] sm:$0xf]
        %v2334 = vld [vmem:[%s2292 + $0xa4] sm:$0xf]
        %v2335 = vld [vmem:[%s2292 + $0xa8] sm:$0xf]
        %v2336 = vld [vmem:[%s2292 + $0xac] sm:$0xf]
        %v2337 = vld [vmem:[%s2292 + $0xb0] sm:$0xf]
        %v2338 = vld [vmem:[%s2292 + $0xb4] sm:$0xf]
        %v2339 = vld [vmem:[%s2292 + $0xb8] sm:$0xf]
        %v2340 = vld [vmem:[%s2292 + $0xbc] sm:$0xf]
        %v2389 = vunpack.c.l.b16 %v2293
        %v2390 = vunpack.c.l.b16 %v2294
        %v2391 = vunpack.c.l.b16 %v2295
        %v2392 = vunpack.c.l.b16 %v2296
        %v2393 = vunpack.c.l.b16 %v2297
        %v2394 = vunpack.c.l.b16 %v2298
        %v2395 = vunpack.c.l.b16 %v2299
        %v2396 = vunpack.c.l.b16 %v2300
        %v2397 = vunpack.c.l.b16 %v2301
        %v2398 = vunpack.c.l.b16 %v2302
        %v2399 = vunpack.c.l.b16 %v2303
        %v2400 = vunpack.c.l.b16 %v2304
        %v2401 = vunpack.c.l.b16 %v2305
        %v2402 = vunpack.c.l.b16 %v2306
        %v2403 = vunpack.c.l.b16 %v2307
        %v2404 = vunpack.c.l.b16 %v2308
        %v2405 = vunpack.c.l.b16 %v2309
        %v2406 = vunpack.c.l.b16 %v2310
        %v2407 = vunpack.c.l.b16 %v2311
        %v2408 = vunpack.c.l.b16 %v2312
        %v2409 = vunpack.c.l.b16 %v2313
        %v2410 = vunpack.c.l.b16 %v2314
        %v2411 = vunpack.c.l.b16 %v2315
        %v2412 = vunpack.c.l.b16 %v2316
        %v2413 = vunpack.c.l.b16 %v2317
        %v2414 = vunpack.c.l.b16 %v2318
        %v2415 = vunpack.c.l.b16 %v2319
        %v2416 = vunpack.c.l.b16 %v2320
        %v2417 = vunpack.c.l.b16 %v2321
        %v2418 = vunpack.c.l.b16 %v2322
        %v2419 = vunpack.c.l.b16 %v2323
        %v2420 = vunpack.c.l.b16 %v2324
        %v2421 = vunpack.c.l.b16 %v2325
        %v2422 = vunpack.c.l.b16 %v2326
        %v2423 = vunpack.c.l.b16 %v2327
        %v2424 = vunpack.c.l.b16 %v2328
        %v2425 = vunpack.c.l.b16 %v2329
        %v2426 = vunpack.c.l.b16 %v2330
        %v2427 = vunpack.c.l.b16 %v2331
        %v2428 = vunpack.c.l.b16 %v2332
        %v2429 = vunpack.c.l.b16 %v2333
        %v2430 = vunpack.c.l.b16 %v2334
        %v2431 = vunpack.c.l.b16 %v2335
        %v2432 = vunpack.c.l.b16 %v2336
        %v2433 = vunpack.c.l.b16 %v2337
        %v2434 = vunpack.c.l.b16 %v2338
        %v2435 = vunpack.c.l.b16 %v2339
        %v2436 = vunpack.c.l.b16 %v2340
        %v2437 = vpack.c.b16 %v2390, %v2389
        %v2438 = vpack.c.b16 %v2392, %v2391
        %v2439 = vpack.c.b16 %v2394, %v2393
        %v2440 = vpack.c.b16 %v2396, %v2395
        %v2441 = vpack.c.b16 %v2398, %v2397
        %v2442 = vpack.c.b16 %v2400, %v2399
        %v2443 = vpack.c.b16 %v2402, %v2401
        %v2444 = vpack.c.b16 %v2404, %v2403
        %v2445 = vpack.c.b16 %v2406, %v2405
        %v2446 = vpack.c.b16 %v2408, %v2407
        %v2447 = vpack.c.b16 %v2410, %v2409
        %v2448 = vpack.c.b16 %v2412, %v2411
        %v2449 = vpack.c.b16 %v2414, %v2413
        %v2450 = vpack.c.b16 %v2416, %v2415
        %v2451 = vpack.c.b16 %v2418, %v2417
        %v2452 = vpack.c.b16 %v2420, %v2419
        %v2453 = vpack.c.b16 %v2422, %v2421
        %v2454 = vpack.c.b16 %v2424, %v2423
        %v2455 = vpack.c.b16 %v2426, %v2425
        %v2456 = vpack.c.b16 %v2428, %v2427
        %v2457 = vpack.c.b16 %v2430, %v2429
        %v2458 = vpack.c.b16 %v2432, %v2431
        %v2459 = vpack.c.b16 %v2434, %v2433
        %v2460 = vpack.c.b16 %v2436, %v2435
        %2485 = vmatprep.subr.bf16.mxu0 0
        %2486 = vmatpush1.bf16.msra.mxu0 %v2437
        %2487 = vmatprep.subr.bf16.mxu0 0
        %2488 = vmatpush1.bf16.msra.mxu0 %v2438
        %2489 = vmatprep.subr.bf16.mxu0 0
        %2490 = vmatpush1.bf16.msra.mxu0 %v2439
        %2491 = vmatprep.subr.bf16.mxu0 0
        %2492 = vmatpush1.bf16.msra.mxu0 %v2440
        %2493 = vmatprep.subr.bf16.mxu0 0
        %2494 = vmatpush1.bf16.msra.mxu0 %v2441
        %2495 = vmatprep.subr.bf16.mxu0 0
        %2496 = vmatpush1.bf16.msra.mxu0 %v2442
        %2497 = vmatprep.subr.bf16.mxu0 0
        %2498 = vmatpush1.bf16.msra.mxu0 %v2443
        %2499 = vmatprep.subr.bf16.mxu0 0
        %2500 = vmatpush1.bf16.msra.mxu0 %v2444
        %2501 = vmatprep.subr.bf16.mxu0 0
        %2502 = vmatpush1.bf16.msra.mxu0 %v2445
        %2503 = vmatprep.subr.bf16.mxu0 0
        %2504 = vmatpush1.bf16.msra.mxu0 %v2446
        %2505 = vmatprep.subr.bf16.mxu0 0
        %2506 = vmatpush1.bf16.msra.mxu0 %v2447
        %2507 = vmatprep.subr.bf16.mxu0 0
        %2508 = vmatpush1.bf16.msra.mxu0 %v2448
        %2509 = vmatprep.subr.bf16.mxu0 0
        %2510 = vmatpush1.bf16.msra.mxu0 %v2449
        %2511 = vmatprep.subr.bf16.mxu0 0
        %2512 = vmatpush1.bf16.msra.mxu0 %v2450
        %2513 = vmatprep.subr.bf16.mxu0 0
        %2514 = vmatpush1.bf16.msra.mxu0 %v2451
        %2515 = vmatprep.subr.bf16.mxu0 0
        %2516 = vmatpush1.bf16.msra.mxu0 %v2452
        %2517 = vmatprep.mubr.bf16.mxu0 %v2269
        %2518 = vmatmul.mubr.bf16.gmra.mrb[0].mxu0 %v2268
        %v2519 = vpop.f32.mrb[0].mxu0
        %v2520 = vadd.f32 0.0, %v2519
        %v2521 = vpop.f32.mrb[0].mxu0
        %v2522 = vpop.f32.mrb[0].mxu0
        %v2523 = vadd.f32 0.0, %v2522
        %v2524 = vpop.f32.mrb[0].mxu0
        %2525 = vmatprep.mubr.bf16.mxu0 %v2272
        %2526 = vmatmul.mubr.bf16.gmra.mrb[0].mxu0 %v2271
        %v2527 = vpop.f32.mrb[0].mxu0
        %v2528 = vadd.f32 0.0, %v2527
        %v2529 = vpop.f32.mrb[0].mxu0
        %v2530 = vpop.f32.mrb[0].mxu0
        %v2531 = vpop.f32.mrb[0].mxu0
        %2532 = vmatprep.mubr.bf16.mxu0 %v2275
        %2533 = vmatmul.mubr.bf16.gmra.mrb[0].mxu0 %v2274
        %v2534 = vpop.f32.mrb[0].mxu0
        %v2535 = vadd.f32 0.0, %v2534
        %v2536 = vpop.f32.mrb[0].mxu0
        %v2537 = vpop.f32.mrb[0].mxu0
        %v2538 = vadd.f32 0.0, %v2537
        %v2539 = vpop.f32.mrb[0].mxu0
        %2540 = vmatprep.mubr.bf16.mxu0 %v2278
        %2541 = vmatmul.mubr.bf16.gmra.mrb[0].mxu0 %v2277
        %v2542 = vpop.f32.mrb[0].mxu0
        %v2543 = vadd.f32 0.0, %v2542
        %v2544 = vpop.f32.mrb[0].mxu0
        %v2545 = vpop.f32.mrb[0].mxu0
        %v2546 = vpop.f32.mrb[0].mxu0
        %2547 = vmatprep.mubr.bf16.mxu0 %v2281
        %2548 = vmatmul.mubr.bf16.gmra.mrb[0].mxu0 %v2280
        %v2549 = vpop.f32.mrb[0].mxu0
        %v2550 = vadd.f32 0.0, %v2549
        %v2551 = vpop.f32.mrb[0].mxu0
        %v2552 = vpop.f32.mrb[0].mxu0
        %v2553 = vadd.f32 0.0, %v2552
        %v2554 = vpop.f32.mrb[0].mxu0
        %2555 = vmatprep.mubr.bf16.mxu0 %v2284
        %2556 = vmatmul.mubr.bf16.gmra.mrb[0].mxu0 %v2283
        %v2557 = vpop.f32.mrb[0].mxu0
        %v2558 = vadd.f32 0.0, %v2557
        %v2559 = vpop.f32.mrb[0].mxu0
        %v2560 = vpop.f32.mrb[0].mxu0
        %v2561 = vpop.f32.mrb[0].mxu0
        %2562 = vmatprep.mubr.bf16.mxu0 %v2287
        %2563 = vmatmul.mubr.bf16.gmra.mrb[0].mxu0 %v2286
        %v2564 = vpop.f32.mrb[0].mxu0
        %v2565 = vadd.f32 0.0, %v2564
        %v2566 = vpop.f32.mrb[0].mxu0
        %v2567 = vpop.f32.mrb[0].mxu0
        %v2568 = vadd.f32 0.0, %v2567
        %v2569 = vpop.f32.mrb[0].mxu0
        %2570 = vmatprep.mubr.bf16.mxu0 %v2290
        %2571 = vmatmul.mubr.bf16.gmra.mrb[0].mxu0 %v2289
        %v2572 = vpop.f32.mrb[0].mxu0
        %v2573 = vadd.f32 0.0, %v2572
        %v2574 = vpop.f32.mrb[0].mxu0
        %v2575 = vpop.f32.mrb[0].mxu0
        %v2576 = vpop.f32.mrb[0].mxu0
        %2577 = vdwg.mxu0
        %2578 = vmatprep.subr.bf16.mxu0 0
        %2579 = vmatpush1.bf16.msra.mxu0 %v2453
        %2580 = vmatprep.subr.bf16.mxu0 0
        %2581 = vmatpush1.bf16.msra.mxu0 %v2454
        %2582 = vmatprep.subr.bf16.mxu0 0
        %2583 = vmatpush1.bf16.msra.mxu0 %v2455
        %2584 = vmatprep.subr.bf16.mxu0 0
        %2585 = vmatpush1.bf16.msra.mxu0 %v2456
        %2586 = vmatprep.subr.bf16.mxu0 0
        %2587 = vmatpush1.bf16.msra.mxu0 %v2457
        %2588 = vmatprep.subr.bf16.mxu0 0
        %2589 = vmatpush1.bf16.msra.mxu0 %v2458
        %2590 = vmatprep.subr.bf16.mxu0 0
        %2591 = vmatpush1.bf16.msra.mxu0 %v2459
        %2592 = vmatprep.subr.bf16.mxu0 0
        %2593 = vmatpush1.bf16.msra.mxu0 %v2460
        %2594 = vmatprep.subr.bf16.mxu0 0
        %2595 = vmatpush1.bf16.msra.mxu0 0
        %2596 = vmatprep.subr.bf16.mxu0 0
        %2597 = vmatpush1.bf16.msra.mxu0 0
        %2598 = vmatprep.subr.bf16.mxu0 0
        %2599 = vmatpush1.bf16.msra.mxu0 0
        %2600 = vmatprep.subr.bf16.mxu0 0
        %2601 = vmatpush1.bf16.msra.mxu0 0
        %2602 = vmatprep.subr.bf16.mxu0 0
        %2603 = vmatpush1.bf16.msra.mxu0 0
        %2604 = vmatprep.subr.bf16.mxu0 0
        %2605 = vmatpush1.bf16.msra.mxu0 0
        %2606 = vmatprep.subr.bf16.mxu0 0
        %2607 = vmatpush1.bf16.msra.mxu0 0
        %2608 = vmatprep.subr.bf16.mxu0 0
        %2609 = vmatpush1.bf16.msra.mxu0 0
        %2610 = vmatprep.mubr.bf16.mxu0 0
        %2611 = vmatmul.mubr.bf16.gmra.mrb[0].mxu0 %v2270
        %v2612 = vpop.f32.mrb[0].mxu0
        %v2613 = vadd.f32 %v2520, %v2612
        %v2614 = vpop.f32.mrb[0].mxu0
        %v2615 = vpop.f32.mrb[0].mxu0
        %v2616 = vadd.f32 %v2523, %v2615
        %v2617 = vpop.f32.mrb[0].mxu0
        %2618 = vmatprep.mubr.bf16.mxu0 0
        %2619 = vmatmul.mubr.bf16.gmra.mrb[0].mxu0 %v2273
        %v2620 = vpop.f32.mrb[0].mxu0
        %v2621 = vadd.f32 %v2528, %v2620
        %v2622 = vpop.f32.mrb[0].mxu0
        %v2623 = vpop.f32.mrb[0].mxu0
        %v2624 = vpop.f32.mrb[0].mxu0
        %2625 = vmatprep.mubr.bf16.mxu0 0
        %2626 = vmatmul.mubr.bf16.gmra.mrb[0].mxu0 %v2276
        %v2627 = vpop.f32.mrb[0].mxu0
        %v2628 = vadd.f32 %v2535, %v2627
        %v2629 = vpop.f32.mrb[0].mxu0
        %v2630 = vpop.f32.mrb[0].mxu0
        %v2631 = vadd.f32 %v2538, %v2630
        %v2632 = vpop.f32.mrb[0].mxu0
        %2633 = vmatprep.mubr.bf16.mxu0 0
        %2634 = vmatmul.mubr.bf16.gmra.mrb[0].mxu0 %v2279
        %v2635 = vpop.f32.mrb[0].mxu0
        %v2636 = vadd.f32 %v2543, %v2635
        %v2637 = vpop.f32.mrb[0].mxu0
        %v2638 = vpop.f32.mrb[0].mxu0
        %v2639 = vpop.f32.mrb[0].mxu0
        %2640 = vmatprep.mubr.bf16.mxu0 0
        %2641 = vmatmul.mubr.bf16.gmra.mrb[0].mxu0 %v2282
        %v2642 = vpop.f32.mrb[0].mxu0
        %v2643 = vadd.f32 %v2550, %v2642
        %v2644 = vpop.f32.mrb[0].mxu0
        %v2645 = vpop.f32.mrb[0].mxu0
        %v2646 = vadd.f32 %v2553, %v2645
        %v2647 = vpop.f32.mrb[0].mxu0
        %2648 = vmatprep.mubr.bf16.mxu0 0
        %2649 = vmatmul.mubr.bf16.gmra.mrb[0].mxu0 %v2285
        %v2650 = vpop.f32.mrb[0].mxu0
        %v2651 = vadd.f32 %v2558, %v2650
        %v2652 = vpop.f32.mrb[0].mxu0
        %v2653 = vpop.f32.mrb[0].mxu0
        %v2654 = vpop.f32.mrb[0].mxu0
        %2655 = vmatprep.mubr.bf16.mxu0 0
        %2656 = vmatmul.mubr.bf16.gmra.mrb[0].mxu0 %v2288
        %v2657 = vpop.f32.mrb[0].mxu0
        %v2658 = vadd.f32 %v2565, %v2657
        %v2659 = vpop.f32.mrb[0].mxu0
        %v2660 = vpop.f32.mrb[0].mxu0
        %v2661 = vadd.f32 %v2568, %v2660
        %v2662 = vpop.f32.mrb[0].mxu0
        %2663 = vmatprep.mubr.bf16.mxu0 0
        %2664 = vmatmul.mubr.bf16.gmra.mrb[0].mxu0 %v2291
        %v2665 = vpop.f32.mrb[0].mxu0
        %v2666 = vadd.f32 %v2573, %v2665
        %v2667 = vpop.f32.mrb[0].mxu0
        %v2668 = vpop.f32.mrb[0].mxu0
        %v2669 = vpop.f32.mrb[0].mxu0
        %2670 = vdwg.mxu0
        %v2719 = vunpack.c.l.b16 %v2219
        %v2720 = vunpack.c.l.b16 %v2220
        %v2721 = vunpack.c.l.b16 %v2221
        %v2722 = vunpack.c.l.b16 %v2222
        %v2723 = vunpack.c.l.b16 %v2223
        %v2724 = vunpack.c.l.b16 %v2224
        %v2725 = vunpack.c.l.b16 %v2225
        %v2726 = vunpack.c.l.b16 %v2226
        %v2727 = vunpack.c.l.b16 %v2227
        %v2728 = vunpack.c.l.b16 %v2228
        %v2729 = vunpack.c.l.b16 %v2229
        %v2730 = vunpack.c.l.b16 %v2230
        %v2731 = vunpack.c.l.b16 %v2231
        %v2732 = vunpack.c.l.b16 %v2232
        %v2733 = vunpack.c.l.b16 %v2233
        %v2734 = vunpack.c.l.b16 %v2234
        %v2735 = vunpack.c.l.b16 %v2235
        %v2736 = vunpack.c.l.b16 %v2236
        %v2737 = vunpack.c.l.b16 %v2237
        %v2738 = vunpack.c.l.b16 %v2238
        %v2739 = vunpack.c.l.b16 %v2239
        %v2740 = vunpack.c.l.b16 %v2240
        %v2741 = vunpack.c.l.b16 %v2241
        %v2742 = vunpack.c.l.b16 %v2242
        %v2743 = vunpack.c.l.b16 %v2243
        %v2744 = vunpack.c.l.b16 %v2244
        %v2745 = vunpack.c.l.b16 %v2245
        %v2746 = vunpack.c.l.b16 %v2246
        %v2747 = vunpack.c.l.b16 %v2247
        %v2748 = vunpack.c.l.b16 %v2248
        %v2749 = vunpack.c.l.b16 %v2249
        %v2750 = vunpack.c.l.b16 %v2250
        %v2751 = vunpack.c.l.b16 %v2251
        %v2752 = vunpack.c.l.b16 %v2252
        %v2753 = vunpack.c.l.b16 %v2253
        %v2754 = vunpack.c.l.b16 %v2254
        %v2755 = vunpack.c.l.b16 %v2255
        %v2756 = vunpack.c.l.b16 %v2256
        %v2757 = vunpack.c.l.b16 %v2257
        %v2758 = vunpack.c.l.b16 %v2258
        %v2759 = vunpack.c.l.b16 %v2259
        %v2760 = vunpack.c.l.b16 %v2260
        %v2761 = vunpack.c.l.b16 %v2261
        %v2762 = vunpack.c.l.b16 %v2262
        %v2763 = vunpack.c.l.b16 %v2263
        %v2764 = vunpack.c.l.b16 %v2264
        %v2765 = vunpack.c.l.b16 %v2265
        %v2766 = vunpack.c.l.b16 %v2266
        %v2767 = vpack.c.b16 %v2720, %v2719
        %v2768 = vpack.c.b16 %v2722, %v2721
        %v2769 = vpack.c.b16 %v2724, %v2723
        %v2770 = vpack.c.b16 %v2726, %v2725
        %v2771 = vpack.c.b16 %v2728, %v2727
        %v2772 = vpack.c.b16 %v2730, %v2729
        %v2773 = vpack.c.b16 %v2732, %v2731
        %v2774 = vpack.c.b16 %v2734, %v2733
        %v2775 = vpack.c.b16 %v2736, %v2735
        %v2776 = vpack.c.b16 %v2738, %v2737
        %v2777 = vpack.c.b16 %v2740, %v2739
        %v2778 = vpack.c.b16 %v2742, %v2741
        %v2779 = vpack.c.b16 %v2744, %v2743
        %v2780 = vpack.c.b16 %v2746, %v2745
        %v2781 = vpack.c.b16 %v2748, %v2747
        %v2782 = vpack.c.b16 %v2750, %v2749
        %v2783 = vpack.c.b16 %v2752, %v2751
        %v2784 = vpack.c.b16 %v2754, %v2753
        %v2785 = vpack.c.b16 %v2756, %v2755
        %v2786 = vpack.c.b16 %v2758, %v2757
        %v2787 = vpack.c.b16 %v2760, %v2759
        %v2788 = vpack.c.b16 %v2762, %v2761
        %v2789 = vpack.c.b16 %v2764, %v2763
        %v2790 = vpack.c.b16 %v2766, %v2765
        %2815 = vmatprep.subr.bf16.mxu0 0
        %2816 = vmatpush1.bf16.msra.mxu0 %v2767
        %2817 = vmatprep.subr.bf16.mxu0 0
        %2818 = vmatpush1.bf16.msra.mxu0 %v2768
        %2819 = vmatprep.subr.bf16.mxu0 0
        %2820 = vmatpush1.bf16.msra.mxu0 %v2769
        %2821 = vmatprep.subr.bf16.mxu0 0
        %2822 = vmatpush1.bf16.msra.mxu0 %v2770
        %2823 = vmatprep.subr.bf16.mxu0 0
        %2824 = vmatpush1.bf16.msra.mxu0 %v2771
        %2825 = vmatprep.subr.bf16.mxu0 0
        %2826 = vmatpush1.bf16.msra.mxu0 %v2772
        %2827 = vmatprep.subr.bf16.mxu0 0
        %2828 = vmatpush1.bf16.msra.mxu0 %v2773
        %2829 = vmatprep.subr.bf16.mxu0 0
        %2830 = vmatpush1.bf16.msra.mxu0 %v2774
        %2831 = vmatprep.subr.bf16.mxu0 0
        %2832 = vmatpush1.bf16.msra.mxu0 %v2775
        %2833 = vmatprep.subr.bf16.mxu0 0
        %2834 = vmatpush1.bf16.msra.mxu0 %v2776
        %2835 = vmatprep.subr.bf16.mxu0 0
        %2836 = vmatpush1.bf16.msra.mxu0 %v2777
        %2837 = vmatprep.subr.bf16.mxu0 0
        %2838 = vmatpush1.bf16.msra.mxu0 %v2778
        %2839 = vmatprep.subr.bf16.mxu0 0
        %2840 = vmatpush1.bf16.msra.mxu0 %v2779
        %2841 = vmatprep.subr.bf16.mxu0 0
        %2842 = vmatpush1.bf16.msra.mxu0 %v2780
        %2843 = vmatprep.subr.bf16.mxu0 0
        %2844 = vmatpush1.bf16.msra.mxu0 %v2781
        %2845 = vmatprep.subr.bf16.mxu0 0
        %2846 = vmatpush1.bf16.msra.mxu0 %v2782
        %2847 = vmatprep.mubr.bf16.mxu0 %v2196
        %2848 = vmatmul.mubr.bf16.gmra.mrb[0].mxu0 %v2195
        %v2849 = vpop.f32.mrb[0].mxu0
        %v2850 = vadd.f32 %v2613, %v2849
        %v2851 = vpop.f32.mrb[0].mxu0
        %v2852 = vpop.f32.mrb[0].mxu0
        %v2853 = vadd.f32 %v2616, %v2852
        %v2854 = vpop.f32.mrb[0].mxu0
        %2855 = vmatprep.mubr.bf16.mxu0 %v2199
        %2856 = vmatmul.mubr.bf16.gmra.mrb[0].mxu0 %v2198
        %v2857 = vpop.f32.mrb[0].mxu0
        %v2858 = vadd.f32 %v2621, %v2857
        %v2859 = vpop.f32.mrb[0].mxu0
        %v2860 = vpop.f32.mrb[0].mxu0
        %v2861 = vpop.f32.mrb[0].mxu0
        %2862 = vmatprep.mubr.bf16.mxu0 %v2202
        %2863 = vmatmul.mubr.bf16.gmra.mrb[0].mxu0 %v2201
        %v2864 = vpop.f32.mrb[0].mxu0
        %v2865 = vadd.f32 %v2628, %v2864
        %v2866 = vpop.f32.mrb[0].mxu0
        %v2867 = vpop.f32.mrb[0].mxu0
        %v2868 = vadd.f32 %v2631, %v2867
        %v2869 = vpop.f32.mrb[0].mxu0
        %2870 = vmatprep.mubr.bf16.mxu0 %v2205
        %2871 = vmatmul.mubr.bf16.gmra.mrb[0].mxu0 %v2204
        %v2872 = vpop.f32.mrb[0].mxu0
        %v2873 = vadd.f32 %v2636, %v2872
        %v2874 = vpop.f32.mrb[0].mxu0
        %v2875 = vpop.f32.mrb[0].mxu0
        %v2876 = vpop.f32.mrb[0].mxu0
        %2877 = vmatprep.mubr.bf16.mxu0 %v2208
        %2878 = vmatmul.mubr.bf16.gmra.mrb[0].mxu0 %v2207
        %v2879 = vpop.f32.mrb[0].mxu0
        %v2880 = vadd.f32 %v2643, %v2879
        %v2881 = vpop.f32.mrb[0].mxu0
        %v2882 = vpop.f32.mrb[0].mxu0
        %v2883 = vadd.f32 %v2646, %v2882
        %v2884 = vpop.f32.mrb[0].mxu0
        %2885 = vmatprep.mubr.bf16.mxu0 %v2211
        %2886 = vmatmul.mubr.bf16.gmra.mrb[0].mxu0 %v2210
        %v2887 = vpop.f32.mrb[0].mxu0
        %v2888 = vadd.f32 %v2651, %v2887
        %v2889 = vpop.f32.mrb[0].mxu0
        %v2890 = vpop.f32.mrb[0].mxu0
        %v2891 = vpop.f32.mrb[0].mxu0
        %2892 = vmatprep.mubr.bf16.mxu0 %v2214
        %2893 = vmatmul.mubr.bf16.gmra.mrb[0].mxu0 %v2213
        %v2894 = vpop.f32.mrb[0].mxu0
        %v2895 = vadd.f32 %v2658, %v2894
        %v2896 = vpop.f32.mrb[0].mxu0
        %v2897 = vpop.f32.mrb[0].mxu0
        %v2898 = vadd.f32 %v2661, %v2897
        %v2899 = vpop.f32.mrb[0].mxu0
        %2900 = vmatprep.mubr.bf16.mxu0 %v2217
        %2901 = vmatmul.mubr.bf16.gmra.mrb[0].mxu0 %v2216
        %v2902 = vpop.f32.mrb[0].mxu0
        %v2903 = vadd.f32 %v2666, %v2902
        %v2904 = vpop.f32.mrb[0].mxu0
        %v2905 = vpop.f32.mrb[0].mxu0
        %v2906 = vpop.f32.mrb[0].mxu0
        %2907 = vdwg.mxu0
        %2908 = vmatprep.subr.bf16.mxu0 0
        %2909 = vmatpush1.bf16.msra.mxu0 %v2783
        %2910 = vmatprep.subr.bf16.mxu0 0
        %2911 = vmatpush1.bf16.msra.mxu0 %v2784
        %2912 = vmatprep.subr.bf16.mxu0 0
        %2913 = vmatpush1.bf16.msra.mxu0 %v2785
        %2914 = vmatprep.subr.bf16.mxu0 0
        %2915 = vmatpush1.bf16.msra.mxu0 %v2786
        %2916 = vmatprep.subr.bf16.mxu0 0
        %2917 = vmatpush1.bf16.msra.mxu0 %v2787
        %2918 = vmatprep.subr.bf16.mxu0 0
        %2919 = vmatpush1.bf16.msra.mxu0 %v2788
        %2920 = vmatprep.subr.bf16.mxu0 0
        %2921 = vmatpush1.bf16.msra.mxu0 %v2789
        %2922 = vmatprep.subr.bf16.mxu0 0
        %2923 = vmatpush1.bf16.msra.mxu0 %v2790
        %2924 = vmatprep.subr.bf16.mxu0 0
        %2925 = vmatpush1.bf16.msra.mxu0 0
        %2926 = vmatprep.subr.bf16.mxu0 0
        %2927 = vmatpush1.bf16.msra.mxu0 0
        %2928 = vmatprep.subr.bf16.mxu0 0
        %2929 = vmatpush1.bf16.msra.mxu0 0
        %2930 = vmatprep.subr.bf16.mxu0 0
        %2931 = vmatpush1.bf16.msra.mxu0 0
        %2932 = vmatprep.subr.bf16.mxu0 0
        %2933 = vmatpush1.bf16.msra.mxu0 0
        %2934 = vmatprep.subr.bf16.mxu0 0
        %2935 = vmatpush1.bf16.msra.mxu0 0
        %2936 = vmatprep.subr.bf16.mxu0 0
        %2937 = vmatpush1.bf16.msra.mxu0 0
        %2938 = vmatprep.subr.bf16.mxu0 0
        %2939 = vmatpush1.bf16.msra.mxu0 0
        %2940 = vmatprep.mubr.bf16.mxu0 0
        %2941 = vmatmul.mubr.bf16.gmra.mrb[0].mxu0 %v2197
        %v2942 = vpop.f32.mrb[0].mxu0
        %v2943 = vadd.f32 %v2850, %v2942
        %v2944 = vpop.f32.mrb[0].mxu0
        %v2945 = vpop.f32.mrb[0].mxu0
        %v2946 = vadd.f32 %v2853, %v2945
        %v2947 = vpop.f32.mrb[0].mxu0
        %2948 = vmatprep.mubr.bf16.mxu0 0
        %2949 = vmatmul.mubr.bf16.gmra.mrb[0].mxu0 %v2200
        %v2950 = vpop.f32.mrb[0].mxu0
        %v2951 = vadd.f32 %v2858, %v2950
        %v2952 = vpop.f32.mrb[0].mxu0
        %v2953 = vpop.f32.mrb[0].mxu0
        %v2954 = vpop.f32.mrb[0].mxu0
        %2955 = vmatprep.mubr.bf16.mxu0 0
        %2956 = vmatmul.mubr.bf16.gmra.mrb[0].mxu0 %v2203
        %v2957 = vpop.f32.mrb[0].mxu0
        %v2958 = vadd.f32 %v2865, %v2957
        %v2959 = vpop.f32.mrb[0].mxu0
        %v2960 = vpop.f32.mrb[0].mxu0
        %v2961 = vadd.f32 %v2868, %v2960
        %v2962 = vpop.f32.mrb[0].mxu0
        %2963 = vmatprep.mubr.bf16.mxu0 0
        %2964 = vmatmul.mubr.bf16.gmra.mrb[0].mxu0 %v2206
        %v2965 = vpop.f32.mrb[0].mxu0
        %v2966 = vadd.f32 %v2873, %v2965
        %v2967 = vpop.f32.mrb[0].mxu0
        %v2968 = vpop.f32.mrb[0].mxu0
        %v2969 = vpop.f32.mrb[0].mxu0
        %2970 = vmatprep.mubr.bf16.mxu0 0
        %2971 = vmatmul.mubr.bf16.gmra.mrb[0].mxu0 %v2209
        %v2972 = vpop.f32.mrb[0].mxu0
        %v2973 = vadd.f32 %v2880, %v2972
        %v2974 = vpop.f32.mrb[0].mxu0
        %v2975 = vpop.f32.mrb[0].mxu0
        %v2976 = vadd.f32 %v2883, %v2975
        %v2977 = vpop.f32.mrb[0].mxu0
        %2978 = vmatprep.mubr.bf16.mxu0 0
        %2979 = vmatmul.mubr.bf16.gmra.mrb[0].mxu0 %v2212
        %v2980 = vpop.f32.mrb[0].mxu0
        %v2981 = vadd.f32 %v2888, %v2980
        %v2982 = vpop.f32.mrb[0].mxu0
        %v2983 = vpop.f32.mrb[0].mxu0
        %v2984 = vpop.f32.mrb[0].mxu0
        %2985 = vmatprep.mubr.bf16.mxu0 0
        %2986 = vmatmul.mubr.bf16.gmra.mrb[0].mxu0 %v2215
        %v2987 = vpop.f32.mrb[0].mxu0
        %v2988 = vadd.f32 %v2895, %v2987
        %v2989 = vpop.f32.mrb[0].mxu0
        %v2990 = vpop.f32.mrb[0].mxu0
        %v2991 = vadd.f32 %v2898, %v2990
        %v2992 = vpop.f32.mrb[0].mxu0
        %2993 = vmatprep.mubr.bf16.mxu0 0
        %2994 = vmatmul.mubr.bf16.gmra.mrb[0].mxu0 %v2218
        %v2995 = vpop.f32.mrb[0].mxu0
        %v2996 = vadd.f32 %v2903, %v2995
        %v2997 = vpop.f32.mrb[0].mxu0
        %v2998 = vpop.f32.mrb[0].mxu0
        %v2999 = vpop.f32.mrb[0].mxu0
        %3000 = vdwg.mxu0
        %s3001 = scalar_lea.vmem [#allocation4], 96
        %v3002 = vld [vmem:[%s3001] sm:$0xff]
        %v3003 = vld [vmem:[%s3001 + $0x8] sm:$0xff]
        %v3004 = vld [vmem:[%s3001 + $0x10] sm:$0xff]
        %v3005 = vld [vmem:[%s3001 + $0x18] sm:$0xff]
        %v3006 = vld [vmem:[%s3001 + $0x20] sm:$0xff]
        %v3007 = vld [vmem:[%s3001 + $0x28] sm:$0xff]
        %v3008 = vld [vmem:[%s3001 + $0x30] sm:$0xff]
        %v3009 = vld [vmem:[%s3001 + $0x38] sm:$0xff]
        %v3010 = vld [vmem:[%s3001 + $0x40] sm:$0xff]
        %v3011 = vld [vmem:[%s3001 + $0x48] sm:$0xff]
        %v3012 = vld [vmem:[%s3001 + $0x50] sm:$0xff]
        %v3013 = vld [vmem:[%s3001 + $0x58] sm:$0xff]
        %v3014 = vld [vmem:[%s3001 + $0x60] sm:$0xff]
        %v3015 = vld [vmem:[%s3001 + $0x68] sm:$0xff]
        %v3016 = vld [vmem:[%s3001 + $0x70] sm:$0xff]
        %v3017 = vld [vmem:[%s3001 + $0x78] sm:$0xff]
        %v3018 = vld [vmem:[%s3001 + $0x80] sm:$0xff]
        %v3019 = vld [vmem:[%s3001 + $0x88] sm:$0xff]
        %v3020 = vld [vmem:[%s3001 + $0x90] sm:$0xff]
        %v3021 = vld [vmem:[%s3001 + $0x98] sm:$0xff]
        %v3022 = vld [vmem:[%s3001 + $0xa0] sm:$0xff]
        %v3023 = vld [vmem:[%s3001 + $0xa8] sm:$0xff]
        %v3024 = vld [vmem:[%s3001 + $0xb0] sm:$0xff]
        %v3025 = vld [vmem:[%s3001 + $0xb8] sm:$0xff]
        %s3026 = scalar_lea.vmem [#allocation8], 384
        %v3027 = vld [vmem:[%s3026] sm:$0xf]
        %v3028 = vld [vmem:[%s3026 + $0x4] sm:$0xf]
        %v3029 = vld [vmem:[%s3026 + $0x8] sm:$0xf]
        %v3030 = vld [vmem:[%s3026 + $0xc] sm:$0xf]
        %v3031 = vld [vmem:[%s3026 + $0x10] sm:$0xf]
        %v3032 = vld [vmem:[%s3026 + $0x14] sm:$0xf]
        %v3033 = vld [vmem:[%s3026 + $0x18] sm:$0xf]
        %v3034 = vld [vmem:[%s3026 + $0x1c] sm:$0xf]
        %v3035 = vld [vmem:[%s3026 + $0x20] sm:$0xf]
        %v3036 = vld [vmem:[%s3026 + $0x24] sm:$0xf]
        %v3037 = vld [vmem:[%s3026 + $0x28] sm:$0xf]
        %v3038 = vld [vmem:[%s3026 + $0x2c] sm:$0xf]
        %v3039 = vld [vmem:[%s3026 + $0x30] sm:$0xf]
        %v3040 = vld [vmem:[%s3026 + $0x34] sm:$0xf]
        %v3041 = vld [vmem:[%s3026 + $0x38] sm:$0xf]
        %v3042 = vld [vmem:[%s3026 + $0x3c] sm:$0xf]
        %v3043 = vld [vmem:[%s3026 + $0x40] sm:$0xf]
        %v3044 = vld [vmem:[%s3026 + $0x44] sm:$0xf]
        %v3045 = vld [vmem:[%s3026 + $0x48] sm:$0xf]
        %v3046 = vld [vmem:[%s3026 + $0x4c] sm:$0xf]
        %v3047 = vld [vmem:[%s3026 + $0x50] sm:$0xf]
        %v3048 = vld [vmem:[%s3026 + $0x54] sm:$0xf]
        %v3049 = vld [vmem:[%s3026 + $0x58] sm:$0xf]
        %v3050 = vld [vmem:[%s3026 + $0x5c] sm:$0xf]
        %v3051 = vld [vmem:[%s3026 + $0x60] sm:$0xf]
        %v3052 = vld [vmem:[%s3026 + $0x64] sm:$0xf]
        %v3053 = vld [vmem:[%s3026 + $0x68] sm:$0xf]
        %v3054 = vld [vmem:[%s3026 + $0x6c] sm:$0xf]
        %v3055 = vld [vmem:[%s3026 + $0x70] sm:$0xf]
        %v3056 = vld [vmem:[%s3026 + $0x74] sm:$0xf]
        %v3057 = vld [vmem:[%s3026 + $0x78] sm:$0xf]
        %v3058 = vld [vmem:[%s3026 + $0x7c] sm:$0xf]
        %v3059 = vld [vmem:[%s3026 + $0x80] sm:$0xf]
        %v3060 = vld [vmem:[%s3026 + $0x84] sm:$0xf]
        %v3061 = vld [vmem:[%s3026 + $0x88] sm:$0xf]
        %v3062 = vld [vmem:[%s3026 + $0x8c] sm:$0xf]
        %v3063 = vld [vmem:[%s3026 + $0x90] sm:$0xf]
        %v3064 = vld [vmem:[%s3026 + $0x94] sm:$0xf]
        %v3065 = vld [vmem:[%s3026 + $0x98] sm:$0xf]
        %v3066 = vld [vmem:[%s3026 + $0x9c] sm:$0xf]
        %v3067 = vld [vmem:[%s3026 + $0xa0] sm:$0xf]
        %v3068 = vld [vmem:[%s3026 + $0xa4] sm:$0xf]
        %v3069 = vld [vmem:[%s3026 + $0xa8] sm:$0xf]
        %v3070 = vld [vmem:[%s3026 + $0xac] sm:$0xf]
        %v3071 = vld [vmem:[%s3026 + $0xb0] sm:$0xf]
        %v3072 = vld [vmem:[%s3026 + $0xb4] sm:$0xf]
        %v3073 = vld [vmem:[%s3026 + $0xb8] sm:$0xf]
        %v3074 = vld [vmem:[%s3026 + $0xbc] sm:$0xf]
        %v3123 = vunpack.c.l.b16 %v3027
        %v3124 = vunpack.c.l.b16 %v3028
        %v3125 = vunpack.c.l.b16 %v3029
        %v3126 = vunpack.c.l.b16 %v3030
        %v3127 = vunpack.c.l.b16 %v3031
        %v3128 = vunpack.c.l.b16 %v3032
        %v3129 = vunpack.c.l.b16 %v3033
        %v3130 = vunpack.c.l.b16 %v3034
        %v3131 = vunpack.c.l.b16 %v3035
        %v3132 = vunpack.c.l.b16 %v3036
        %v3133 = vunpack.c.l.b16 %v3037
        %v3134 = vunpack.c.l.b16 %v3038
        %v3135 = vunpack.c.l.b16 %v3039
        %v3136 = vunpack.c.l.b16 %v3040
        %v3137 = vunpack.c.l.b16 %v3041
        %v3138 = vunpack.c.l.b16 %v3042
        %v3139 = vunpack.c.l.b16 %v3043
        %v3140 = vunpack.c.l.b16 %v3044
        %v3141 = vunpack.c.l.b16 %v3045
        %v3142 = vunpack.c.l.b16 %v3046
        %v3143 = vunpack.c.l.b16 %v3047
        %v3144 = vunpack.c.l.b16 %v3048
        %v3145 = vunpack.c.l.b16 %v3049
        %v3146 = vunpack.c.l.b16 %v3050
        %v3147 = vunpack.c.l.b16 %v3051
        %v3148 = vunpack.c.l.b16 %v3052
        %v3149 = vunpack.c.l.b16 %v3053
        %v3150 = vunpack.c.l.b16 %v3054
        %v3151 = vunpack.c.l.b16 %v3055
        %v3152 = vunpack.c.l.b16 %v3056
        %v3153 = vunpack.c.l.b16 %v3057
        %v3154 = vunpack.c.l.b16 %v3058
        %v3155 = vunpack.c.l.b16 %v3059
        %v3156 = vunpack.c.l.b16 %v3060
        %v3157 = vunpack.c.l.b16 %v3061
        %v3158 = vunpack.c.l.b16 %v3062
        %v3159 = vunpack.c.l.b16 %v3063
        %v3160 = vunpack.c.l.b16 %v3064
        %v3161 = vunpack.c.l.b16 %v3065
        %v3162 = vunpack.c.l.b16 %v3066
        %v3163 = vunpack.c.l.b16 %v3067
        %v3164 = vunpack.c.l.b16 %v3068
        %v3165 = vunpack.c.l.b16 %v3069
        %v3166 = vunpack.c.l.b16 %v3070
        %v3167 = vunpack.c.l.b16 %v3071
        %v3168 = vunpack.c.l.b16 %v3072
        %v3169 = vunpack.c.l.b16 %v3073
        %v3170 = vunpack.c.l.b16 %v3074
        %v3171 = vpack.c.b16 %v3124, %v3123
        %v3172 = vpack.c.b16 %v3126, %v3125
        %v3173 = vpack.c.b16 %v3128, %v3127
        %v3174 = vpack.c.b16 %v3130, %v3129
        %v3175 = vpack.c.b16 %v3132, %v3131
        %v3176 = vpack.c.b16 %v3134, %v3133
        %v3177 = vpack.c.b16 %v3136, %v3135
        %v3178 = vpack.c.b16 %v3138, %v3137
        %v3179 = vpack.c.b16 %v3140, %v3139
        %v3180 = vpack.c.b16 %v3142, %v3141
        %v3181 = vpack.c.b16 %v3144, %v3143
        %v3182 = vpack.c.b16 %v3146, %v3145
        %v3183 = vpack.c.b16 %v3148, %v3147
        %v3184 = vpack.c.b16 %v3150, %v3149
        %v3185 = vpack.c.b16 %v3152, %v3151
        %v3186 = vpack.c.b16 %v3154, %v3153
        %v3187 = vpack.c.b16 %v3156, %v3155
        %v3188 = vpack.c.b16 %v3158, %v3157
        %v3189 = vpack.c.b16 %v3160, %v3159
        %v3190 = vpack.c.b16 %v3162, %v3161
        %v3191 = vpack.c.b16 %v3164, %v3163
        %v3192 = vpack.c.b16 %v3166, %v3165
        %v3193 = vpack.c.b16 %v3168, %v3167
        %v3194 = vpack.c.b16 %v3170, %v3169
        %3219 = vmatprep.subr.bf16.mxu0 0
        %3220 = vmatpush1.bf16.msra.mxu0 %v3171
        %3221 = vmatprep.subr.bf16.mxu0 0
        %3222 = vmatpush1.bf16.msra.mxu0 %v3172
        %3223 = vmatprep.subr.bf16.mxu0 0
        %3224 = vmatpush1.bf16.msra.mxu0 %v3173
        %3225 = vmatprep.subr.bf16.mxu0 0
        %3226 = vmatpush1.bf16.msra.mxu0 %v3174
        %3227 = vmatprep.subr.bf16.mxu0 0
        %3228 = vmatpush1.bf16.msra.mxu0 %v3175
        %3229 = vmatprep.subr.bf16.mxu0 0
        %3230 = vmatpush1.bf16.msra.mxu0 %v3176
        %3231 = vmatprep.subr.bf16.mxu0 0
        %3232 = vmatpush1.bf16.msra.mxu0 %v3177
        %3233 = vmatprep.subr.bf16.mxu0 0
        %3234 = vmatpush1.bf16.msra.mxu0 %v3178
        %3235 = vmatprep.subr.bf16.mxu0 0
        %3236 = vmatpush1.bf16.msra.mxu0 %v3179
        %3237 = vmatprep.subr.bf16.mxu0 0
        %3238 = vmatpush1.bf16.msra.mxu0 %v3180
        %3239 = vmatprep.subr.bf16.mxu0 0
        %3240 = vmatpush1.bf16.msra.mxu0 %v3181
        %3241 = vmatprep.subr.bf16.mxu0 0
        %3242 = vmatpush1.bf16.msra.mxu0 %v3182
        %3243 = vmatprep.subr.bf16.mxu0 0
        %3244 = vmatpush1.bf16.msra.mxu0 %v3183
        %3245 = vmatprep.subr.bf16.mxu0 0
        %3246 = vmatpush1.bf16.msra.mxu0 %v3184
        %3247 = vmatprep.subr.bf16.mxu0 0
        %3248 = vmatpush1.bf16.msra.mxu0 %v3185
        %3249 = vmatprep.subr.bf16.mxu0 0
        %3250 = vmatpush1.bf16.msra.mxu0 %v3186
        %3251 = vmatprep.mubr.bf16.mxu0 %v3003
        %3252 = vmatmul.mubr.bf16.gmra.mrb[0].mxu0 %v3002
        %v3253 = vpop.f32.mrb[0].mxu0
        %v3254 = vadd.f32 0.0, %v3253
        %v3255 = vpop.f32.mrb[0].mxu0
        %v3256 = vpop.f32.mrb[0].mxu0
        %v3257 = vadd.f32 0.0, %v3256
        %v3258 = vpop.f32.mrb[0].mxu0
        %3259 = vmatprep.mubr.bf16.mxu0 %v3006
        %3260 = vmatmul.mubr.bf16.gmra.mrb[0].mxu0 %v3005
        %v3261 = vpop.f32.mrb[0].mxu0
        %v3262 = vadd.f32 0.0, %v3261
        %v3263 = vpop.f32.mrb[0].mxu0
        %v3264 = vpop.f32.mrb[0].mxu0
        %v3265 = vpop.f32.mrb[0].mxu0
        %3266 = vmatprep.mubr.bf16.mxu0 %v3009
        %3267 = vmatmul.mubr.bf16.gmra.mrb[0].mxu0 %v3008
        %v3268 = vpop.f32.mrb[0].mxu0
        %v3269 = vadd.f32 0.0, %v3268
        %v3270 = vpop.f32.mrb[0].mxu0
        %v3271 = vpop.f32.mrb[0].mxu0
        %v3272 = vadd.f32 0.0, %v3271
        %v3273 = vpop.f32.mrb[0].mxu0
        %3274 = vmatprep.mubr.bf16.mxu0 %v3012
        %3275 = vmatmul.mubr.bf16.gmra.mrb[0].mxu0 %v3011
        %v3276 = vpop.f32.mrb[0].mxu0
        %v3277 = vadd.f32 0.0, %v3276
        %v3278 = vpop.f32.mrb[0].mxu0
        %v3279 = vpop.f32.mrb[0].mxu0
        %v3280 = vpop.f32.mrb[0].mxu0
        %3281 = vmatprep.mubr.bf16.mxu0 %v3015
        %3282 = vmatmul.mubr.bf16.gmra.mrb[0].mxu0 %v3014
        %v3283 = vpop.f32.mrb[0].mxu0
        %v3284 = vadd.f32 0.0, %v3283
        %v3285 = vpop.f32.mrb[0].mxu0
        %v3286 = vpop.f32.mrb[0].mxu0
        %v3287 = vadd.f32 0.0, %v3286
        %v3288 = vpop.f32.mrb[0].mxu0
        %3289 = vmatprep.mubr.bf16.mxu0 %v3018
        %3290 = vmatmul.mubr.bf16.gmra.mrb[0].mxu0 %v3017
        %v3291 = vpop.f32.mrb[0].mxu0
        %v3292 = vadd.f32 0.0, %v3291
        %v3293 = vpop.f32.mrb[0].mxu0
        %v3294 = vpop.f32.mrb[0].mxu0
        %v3295 = vpop.f32.mrb[0].mxu0
        %3296 = vmatprep.mubr.bf16.mxu0 %v3021
        %3297 = vmatmul.mubr.bf16.gmra.mrb[0].mxu0 %v3020
        %v3298 = vpop.f32.mrb[0].mxu0
        %v3299 = vadd.f32 0.0, %v3298
        %v3300 = vpop.f32.mrb[0].mxu0
        %v3301 = vpop.f32.mrb[0].mxu0
        %v3302 = vadd.f32 0.0, %v3301
        %v3303 = vpop.f32.mrb[0].mxu0
        %3304 = vmatprep.mubr.bf16.mxu0 %v3024
        %3305 = vmatmul.mubr.bf16.gmra.mrb[0].mxu0 %v3023
        %v3306 = vpop.f32.mrb[0].mxu0
        %v3307 = vadd.f32 0.0, %v3306
        %v3308 = vpop.f32.mrb[0].mxu0
        %v3309 = vpop.f32.mrb[0].mxu0
        %v3310 = vpop.f32.mrb[0].mxu0
        %3311 = vdwg.mxu0
        %3312 = vmatprep.subr.bf16.mxu0 0
        %3313 = vmatpush1.bf16.msra.mxu0 %v3187
        %3314 = vmatprep.subr.bf16.mxu0 0
        %3315 = vmatpush1.bf16.msra.mxu0 %v3188
        %3316 = vmatprep.subr.bf16.mxu0 0
        %3317 = vmatpush1.bf16.msra.mxu0 %v3189
        %3318 = vmatprep.subr.bf16.mxu0 0
        %3319 = vmatpush1.bf16.msra.mxu0 %v3190
        %3320 = vmatprep.subr.bf16.mxu0 0
        %3321 = vmatpush1.bf16.msra.mxu0 %v3191
        %3322 = vmatprep.subr.bf16.mxu0 0
        %3323 = vmatpush1.bf16.msra.mxu0 %v3192
        %3324 = vmatprep.subr.bf16.mxu0 0
        %3325 = vmatpush1.bf16.msra.mxu0 %v3193
        %3326 = vmatprep.subr.bf16.mxu0 0
        %3327 = vmatpush1.bf16.msra.mxu0 %v3194
        %3328 = vmatprep.subr.bf16.mxu0 0
        %3329 = vmatpush1.bf16.msra.mxu0 0
        %3330 = vmatprep.subr.bf16.mxu0 0
        %3331 = vmatpush1.bf16.msra.mxu0 0
        %3332 = vmatprep.subr.bf16.mxu0 0
        %3333 = vmatpush1.bf16.msra.mxu0 0
        %3334 = vmatprep.subr.bf16.mxu0 0
        %3335 = vmatpush1.bf16.msra.mxu0 0
        %3336 = vmatprep.subr.bf16.mxu0 0
        %3337 = vmatpush1.bf16.msra.mxu0 0
        %3338 = vmatprep.subr.bf16.mxu0 0
        %3339 = vmatpush1.bf16.msra.mxu0 0
        %3340 = vmatprep.subr.bf16.mxu0 0
        %3341 = vmatpush1.bf16.msra.mxu0 0
        %3342 = vmatprep.subr.bf16.mxu0 0
        %3343 = vmatpush1.bf16.msra.mxu0 0
        %3344 = vmatprep.mubr.bf16.mxu0 0
        %3345 = vmatmul.mubr.bf16.gmra.mrb[0].mxu0 %v3004
        %v3346 = vpop.f32.mrb[0].mxu0
        %v3347 = vadd.f32 %v3254, %v3346
        %v3348 = vpop.f32.mrb[0].mxu0
        %v3349 = vpop.f32.mrb[0].mxu0
        %v3350 = vadd.f32 %v3257, %v3349
        %v3351 = vpop.f32.mrb[0].mxu0
        %3352 = vmatprep.mubr.bf16.mxu0 0
        %3353 = vmatmul.mubr.bf16.gmra.mrb[0].mxu0 %v3007
        %v3354 = vpop.f32.mrb[0].mxu0
        %v3355 = vadd.f32 %v3262, %v3354
        %v3356 = vpop.f32.mrb[0].mxu0
        %v3357 = vpop.f32.mrb[0].mxu0
        %v3358 = vpop.f32.mrb[0].mxu0
        %3359 = vmatprep.mubr.bf16.mxu0 0
        %3360 = vmatmul.mubr.bf16.gmra.mrb[0].mxu0 %v3010
        %v3361 = vpop.f32.mrb[0].mxu0
        %v3362 = vadd.f32 %v3269, %v3361
        %v3363 = vpop.f32.mrb[0].mxu0
        %v3364 = vpop.f32.mrb[0].mxu0
        %v3365 = vadd.f32 %v3272, %v3364
        %v3366 = vpop.f32.mrb[0].mxu0
        %3367 = vmatprep.mubr.bf16.mxu0 0
        %3368 = vmatmul.mubr.bf16.gmra.mrb[0].mxu0 %v3013
        %v3369 = vpop.f32.mrb[0].mxu0
        %v3370 = vadd.f32 %v3277, %v3369
        %v3371 = vpop.f32.mrb[0].mxu0
        %v3372 = vpop.f32.mrb[0].mxu0
        %v3373 = vpop.f32.mrb[0].mxu0
        %3374 = vmatprep.mubr.bf16.mxu0 0
        %3375 = vmatmul.mubr.bf16.gmra.mrb[0].mxu0 %v3016
        %v3376 = vpop.f32.mrb[0].mxu0
        %v3377 = vadd.f32 %v3284, %v3376
        %v3378 = vpop.f32.mrb[0].mxu0
        %v3379 = vpop.f32.mrb[0].mxu0
        %v3380 = vadd.f32 %v3287, %v3379
        %v3381 = vpop.f32.mrb[0].mxu0
        %3382 = vmatprep.mubr.bf16.mxu0 0
        %3383 = vmatmul.mubr.bf16.gmra.mrb[0].mxu0 %v3019
        %v3384 = vpop.f32.mrb[0].mxu0
        %v3385 = vadd.f32 %v3292, %v3384
        %v3386 = vpop.f32.mrb[0].mxu0
        %v3387 = vpop.f32.mrb[0].mxu0
        %v3388 = vpop.f32.mrb[0].mxu0
        %3389 = vmatprep.mubr.bf16.mxu0 0
        %3390 = vmatmul.mubr.bf16.gmra.mrb[0].mxu0 %v3022
        %v3391 = vpop.f32.mrb[0].mxu0
        %v3392 = vadd.f32 %v3299, %v3391
        %v3393 = vpop.f32.mrb[0].mxu0
        %v3394 = vpop.f32.mrb[0].mxu0
        %v3395 = vadd.f32 %v3302, %v3394
        %v3396 = vpop.f32.mrb[0].mxu0
        %3397 = vmatprep.mubr.bf16.mxu0 0
        %3398 = vmatmul.mubr.bf16.gmra.mrb[0].mxu0 %v3025
        %v3399 = vpop.f32.mrb[0].mxu0
        %v3400 = vadd.f32 %v3307, %v3399
        %v3401 = vpop.f32.mrb[0].mxu0
        %v3402 = vpop.f32.mrb[0].mxu0
        %v3403 = vpop.f32.mrb[0].mxu0
        %3404 = vdwg.mxu0
        %v3405 = vadd.f32 %v2943, %v3347
        %v3406 = vadd.f32 %v2946, %v3350
        %v3407 = vadd.f32 %v2951, %v3355
        %v3408 = vadd.f32 %v2958, %v3362
        %v3409 = vadd.f32 %v2961, %v3365
        %v3410 = vadd.f32 %v2966, %v3370
        %v3411 = vadd.f32 %v2973, %v3377
        %v3412 = vadd.f32 %v2976, %v3380
        %v3413 = vadd.f32 %v2981, %v3385
        %v3414 = vadd.f32 %v2988, %v3392
        %v3415 = vadd.f32 %v2991, %v3395
        %v3416 = vadd.f32 %v2996, %v3400
        %v3417 = vld [vmem:[%s4] sm:$0x1]
        %v3419 = vlaneseq
        %v3420 = vshrl.u32 %v3419, 7
        %v3421 = vsub.s32 0, %v3420
        %v3422 = vrot.slane %v3417, %v3421
        %v3424 = vadd.f32 %v3405, %v3422
        %v3425 = vadd.f32 %v3406, %v3422
        %v3426 = vadd.f32 %v3407, %v3422
        %v3427 = vadd.f32 %v3408, %v3422
        %v3428 = vadd.f32 %v3409, %v3422
        %v3429 = vadd.f32 %v3410, %v3422
        %v3430 = vadd.f32 %v3411, %v3422
        %v3431 = vadd.f32 %v3412, %v3422
        %v3432 = vadd.f32 %v3413, %v3422
        %v3433 = vadd.f32 %v3414, %v3422
        %v3434 = vadd.f32 %v3415, %v3422
        %v3435 = vadd.f32 %v3416, %v3422
        %v3436 = vmax.f32 %v3424, 0.0
        %v3437 = vmax.f32 %v3425, 0.0
        %v3438 = vmax.f32 %v3426, 0.0
        %v3439 = vmax.f32 %v3427, 0.0
        %v3440 = vmax.f32 %v3428, 0.0
        %v3441 = vmax.f32 %v3429, 0.0
        %v3442 = vmax.f32 %v3430, 0.0
        %v3443 = vmax.f32 %v3431, 0.0
        %v3444 = vmax.f32 %v3432, 0.0
        %v3445 = vmax.f32 %v3433, 0.0
        %v3446 = vmax.f32 %v3434, 0.0
        %v3447 = vmax.f32 %v3435, 0.0
        %3448 = vst [vmem:[%s220 - $0x1] sm:$0xfe] %v3436
        %3449 = vst [vmem:[%s220 + $0x7] sm:$0xff] %v3437
        %3450 = vst [vmem:[%s220 + $0xf] sm:$0x1] %v3438
        %3451 = vst [vmem:[%s220 + $0xf] sm:$0xfe] %v3439
        %3452 = vst [vmem:[%s220 + $0x17] sm:$0xff] %v3440
        %3453 = vst [vmem:[%s220 + $0x1f] sm:$0x1] %v3441
        %3454 = vst [vmem:[%s220 + $0x1f] sm:$0xfe] %v3442
        %3455 = vst [vmem:[%s220 + $0x27] sm:$0xff] %v3443
        %3456 = vst [vmem:[%s220 + $0x2f] sm:$0x1] %v3444
        %3457 = vst [vmem:[%s220 + $0x2f] sm:$0xfe] %v3445
        %3458 = vst [vmem:[%s220 + $0x37] sm:$0xff] %v3446
        %3459 = vst [vmem:[%s220 + $0x3f] sm:$0x1] %v3447
        %s3460 = sand.u32 %s127, 1
        %s3461 = scalar_lea.sflag [#allocation7], %s3460
        %s3462 = sand.u32 %s127, 1
        %s3463 = smul.addr %s3462, 64
        %s3464 = scalar_lea.vmem [#allocation10], %s3463
        // Predicated region
        $region58: #{tpu_custom_call.1} parent=35 // pred_check
          %p3465 = pneg %p137
        $region59: #{tpu_custom_call.1} parent=35 // pred_check_branch
          %3467 = sbr.rel (%p3465) target = $region61
        $region60: #{tpu_custom_call.1} parent=35 // pred_region
          %s3468 = smul.u32 4, %s26
          %s3470 = ssub.s32 1024, 1024
          %3471 = vsyncadd %s3461, %s3470
          %s3472 = smul.addr %s3468, 2
          %s3473 = smul.addr %s25, 32
          %s3474 = sadd.s32 %s3472, %s3473
          %s3475 = smul.addr %s3474, 128
          %s3476 = scalar_lea.hbm %s5, %s3475
          %s3477 = sshll.u32 %s3464, 4
          %s3478 = int_to_ptr.vmem [resolvable:$true] %s3477
          %3483 = dma.vmem_to_hbm [thread:$0]  %s3478, 1024, %s3476, %s3461, 128, 128, 8
        $region61: #{tpu_custom_call.1} parent=35 // pred_fallthru
          _
      $region36: #{tpu_custom_call.1} parent=5 // pred_fallthru
        _
      %p3484 = scmp.le.s32.totalorder 2, %s16
      // Predicated region
      $region62: #{tpu_custom_call.1} parent=5 // pred_check
        %p3485 = pneg %p3484
      $region63: #{tpu_custom_call.1} parent=5 // pred_check_branch
        %3487 = sbr.rel (%p3485) target = $region65
      $region64: #{tpu_custom_call.1} parent=5 // pred_region
        %s3488 = ssub.s32 %s16, 2
        // Predicated region
        $region66: #{tpu_custom_call.1} parent=64 // pred_check
          %p3489 = pneg %p143
        $region67: #{tpu_custom_call.1} parent=64 // pred_check_branch
          %3491 = sbr.rel (%p3489) target = $region69
        $region68: #{tpu_custom_call.1} parent=64 // pred_region
          %s3492 = sand.u32 %s128, 1
          %s3493 = scalar_lea.sflag [#allocation7], %s3492
          %s3494 = sand.u32 %s128, 1
          %s3495 = smul.addr %s3494, 64
          %s3496 = scalar_lea.vmem [#allocation10], %s3495
          %3497 = dma.done %s3493, 1024
        $region69: #{tpu_custom_call.1} parent=64 // pred_fallthru
          _
      $region65: #{tpu_custom_call.1} parent=5 // pred_fallthru
        _
    $region6: #{tpu_custom_call.1} parent=1 // loop_footer
      %s20 = sadd.s32 1, %s16
    $region7: #{tpu_custom_call.1} parent=1 // loop_footer_branch
      %15 = sbr.rel target = $region3
    $region8: #{tpu_custom_call.1} parent=1 // loop_exit
      _
    %3498 = vsyncpa [#allocation6], 1
    %s3499 = scalar_lea.sflag [#allocation6], 1
    %3500 = vsyncpa %s3499, 1
    %3501 = vsyncpa [#allocation9], 1
    %3502 = vsyncpa [#allocation7], 1
    %s3503 = scalar_lea.sflag [#allocation7], 1
    %3504 = vsyncpa %s3503, 1

</llo_original>
